<compile_context>
chip_gen: v6e
topology: v6e:2x2x1
jax: 0.10.0
libtpu: 0.0.40
codegen_flags: <defaults>
</compile_context>

<pallas_src>
import math
import functools

import jax
import jax.numpy as jnp
from jax.experimental import pallas as pl
from jax.experimental.pallas import tpu as pltpu


# --------------------------- per-generation tuning ----------------------------

def _device_kind() -> str:
    try:
        return jax.devices()[0].device_kind.lower()
    except Exception:
        return ""


_KIND = _device_kind()
_IS_V7 = ("v7" in _KIND) or ("7x" in _KIND)
# v4 / v5e / v5p / v6e have an integer MXU datapath; v7x is bf16/fp8 only.
_HAS_INT8_MXU = (not _IS_V7) and any(t in _KIND for t in ("v4", "v5", "v6"))

if _IS_V7:
    _VMEM_LIMIT = 56 * 1024 * 1024      # leave headroom under v7x's 64 MiB physical
elif _HAS_INT8_MXU:
    _VMEM_LIMIT = 100 * 1024 * 1024     # v5e / v6e have 128 MiB physical VMEM
else:
    _VMEM_LIMIT = 48 * 1024 * 1024      # unknown chip: stay conservative

_TM_PREF = 512 if _HAS_INT8_MXU else 256   # bigger M tiles amortize weight re-streaming


def _pick_tile(dim, preferred, align):
    """Largest tile <= `preferred` that divides `dim` and is a multiple of `align`.
    Falls back to the full dim (a full-extent block is always legal)."""
    if dim <= preferred:
        return dim
    t = (preferred // align) * align
    while t >= align:
        if dim % t == 0:
            return t
        t -= align
    return dim


def _quantize_rows(y, q_ref, s_ref):
    """Per-row symmetric dynamic int8 quant (awq invoke_quant semantics).
    One exact reciprocal per row (EUP/scalar-ish) then a multiply, instead of a
    full (rows, cols) divide on the VALU."""
    amax = jnp.max(jnp.abs(y), axis=-1, keepdims=True)
    scale = amax * (1.0 / 127.0)
    safe = jnp.where(scale > 0.0, scale, 1.0)
    inv = pl.reciprocal(safe)
    q_ref[...] = jnp.clip(jnp.round(y * inv), -127.0, 127.0).astype(jnp.int8)
    s_ref[...] = scale


# --------------------------- W8A8 linear (+ fused epilogues) -----------------

def _make_w8a8_kernel(has_residual, fuse_gelu, quant_out, use_int8):
    def kernel(*refs):
        qa_ref, sa_ref, w_ref, sw_ref, b_ref = refs[:5]
        pos = 5
        res_ref = None
        if has_residual:
            res_ref = refs[pos]
            pos += 1
        if quant_out:
            qo_ref, so_ref = refs[pos], refs[pos + 1]
            pos += 2
        else:
            y_ref = refs[pos]
            pos += 1
        acc_ref = refs[pos]

        k = pl.program_id(2)

        @pl.when(k == 0)
        def _():
            acc_ref[...] = jnp.zeros_like(acc_ref)

        if use_int8:
            # Native integer MXU path (v4/v5/v6): s8 x s8 -> s32, no per-step casts.
            acc_ref[...] += jnp.dot(qa_ref[...], w_ref[...],
                                    preferred_element_type=jnp.int32)
        else:
            # v7x / unknown: int8 -> bf16 is exact (|x| <= 127); bf16 MXU path.
            acc_ref[...] += jnp.dot(qa_ref[...].astype(jnp.bfloat16),
                                    w_ref[...].astype(jnp.bfloat16),
                                    preferred_element_type=jnp.float32)

        # Epilogue only on the last K step (keeps broadcasts out of the K loop).
        @pl.when(k == pl.num_programs(2) - 1)
        def _():
            y = acc_ref[...].astype(jnp.float32) * sa_ref[...] * sw_ref[...] + b_ref[...]
            if has_residual:
                y = y + res_ref[...].astype(jnp.float32)
            if fuse_gelu:
                y = jax.nn.gelu(y, approximate=True)
            if quant_out:
                _quantize_rows(y, qo_ref, so_ref)
            else:
                y_ref[...] = y.astype(y_ref.dtype)
    return kernel


def w8a8_linear(q_in, in_scale, qw, ws, b, *, residual=None, fuse_gelu=False,
                quant_out=False, out_dtype=jnp.bfloat16,
                tm_pref=None, to_pref=512, tk_pref=512):
    """W8A8OF16LinearDynamicInputScale with optional fused residual-add and
    gelu_and_quant / invoke_quant epilogues.

    out = (q_in @ qw) * in_scale * w_scale + bias [+ residual] [-> gelu -> int8 quant]
    `qw` is pre-transposed to (K, O) so output tiles are lane-dense. Grid =
    (M tiles, O tiles, K tiles), K last with a VMEM accumulator (int32 on chips
    with an integer MXU, fp32 otherwise). When quant_out the O axis is a single
    full block (per-row amax).
    """
    n, kdim = q_in.shape
    odim = qw.shape[1]
    if tm_pref is None:
        tm_pref = _TM_PREF
    if quant_out and _IS_V7:
        # full-width O accumulator: cap the working set on v7x's 64 MiB VMEM.
        # TODO(synk): running per-row amax across O tiles would restore O tiling here.
        tm_pref = min(tm_pref, 128)
        tk_pref = min(tk_pref, 256)

    tm = _pick_tile(n, tm_pref, 32)           # 32-aligned rows (int8 sublane packing)
    tk = _pick_tile(kdim, tk_pref, 128)
    to = odim if quant_out else _pick_tile(odim, to_pref, 128)
    grid = (n // tm, odim // to, kdim // tk)

    in_specs = [
        pl.BlockSpec((tm, tk), lambda i, j, k: (i, k)),   # int8 activations
        pl.BlockSpec((tm, 1), lambda i, j, k: (i, 0)),    # per-row input scale
        # TODO(synk): on v5e a pipeline_mode=pl.Buffered(3) weight buffer hides DMA jitter.
        pl.BlockSpec((tk, to), lambda i, j, k: (k, j)),   # int8 weight, (K, O)
        pl.BlockSpec((1, to), lambda i, j, k: (0, j)),    # per-channel weight scale
        pl.BlockSpec((1, to), lambda i, j, k: (0, j)),    # bias
    ]
    inputs = [q_in, in_scale, qw, ws, b]
    if residual is not None:
        in_specs.append(pl.BlockSpec((tm, to), lambda i, j, k: (i, j)))
        inputs.append(residual)

    if quant_out:
        out_shape = (jax.ShapeDtypeStruct((n, odim), jnp.int8),
                     jax.ShapeDtypeStruct((n, 1), jnp.float32))
        out_specs = (pl.BlockSpec((tm, odim), lambda i, j, k: (i, 0)),
                     pl.BlockSpec((tm, 1), lambda i, j, k: (i, 0)))
    else:
        out_shape = jax.ShapeDtypeStruct((n, odim), out_dtype)
        out_specs = pl.BlockSpec((tm, to), lambda i, j, k: (i, j))

    acc_dtype = jnp.int32 if _HAS_INT8_MXU else jnp.float32
    kern = _make_w8a8_kernel(residual is not None, fuse_gelu, quant_out, _HAS_INT8_MXU)
    return pl.pallas_call(
        kern,
        out_shape=out_shape,
        grid=grid,
        in_specs=in_specs,
        out_specs=out_specs,
        scratch_shapes=[pltpu.VMEM((tm, to), acc_dtype)],
        compiler_params=pltpu.CompilerParams(
            dimension_semantics=("parallel", "parallel", "arbitrary"),
            vmem_limit_bytes=_VMEM_LIMIT),
        cost_estimate=pl.CostEstimate(
            flops=2 * n * kdim * odim,
            transcendentals=(n * odim) if fuse_gelu else 0,
            bytes_accessed=n * kdim + kdim * odim + 2 * n * odim),
    )(*inputs)


# ------------------- LayerNorm (+ adaLN modulation) (+ fused quant) ----------

def _make_ln_kernel(eps, modulate, quant_out):
    def kernel(*refs):
        x_ref = refs[0]
        pos = 1
        if modulate:
            sc_ref, sh_ref = refs[1], refs[2]
            pos = 3
        x = x_ref[...].astype(jnp.float32)                       # (tq, D)
        # one-pass stats: var = E[x^2] - E[x]^2
        mu = jnp.mean(x, axis=-1, keepdims=True)
        ex2 = jnp.mean(x * x, axis=-1, keepdims=True)
        var = jnp.maximum(ex2 - mu * mu, 0.0)
        y = (x - mu) * jax.lax.rsqrt(var + eps)
        if modulate:
            y = (y * (1.0 + sc_ref[...].astype(jnp.float32))
                 + sh_ref[...].astype(jnp.float32))
        if quant_out:
            _quantize_rows(y, refs[pos], refs[pos + 1])
        else:
            refs[pos][...] = y.astype(refs[pos].dtype)
    return kernel


def layernorm_modulate(x, scale, shift, *, eps, quant_out=False,
                       out_dtype=jnp.bfloat16, tq_pref=256):
    """LayerNorm (no affine) over the last dim, optional per-batch x*(1+scale)+shift
    modulation (ada_norm / norm_out), optionally fused with per-row dynamic int8
    quant (invoke_quant). x: (bsz, qlen, D); scale/shift: (bsz, 1, D) or None."""
    b, qlen, d = x.shape
    modulate = scale is not None
    tq = _pick_tile(qlen, tq_pref, 32)
    grid = (b, qlen // tq)

    in_specs = [pl.BlockSpec((None, tq, d), lambda bi, i: (bi, i, 0))]
    inputs = [x]
    if modulate:
        in_specs.append(pl.BlockSpec((None, 1, d), lambda bi, i: (bi, 0, 0)))
        in_specs.append(pl.BlockSpec((None, 1, d), lambda bi, i: (bi, 0, 0)))
        inputs += [scale, shift]

    if quant_out:
        out_shape = (jax.ShapeDtypeStruct((b, qlen, d), jnp.int8),
                     jax.ShapeDtypeStruct((b, qlen, 1), jnp.float32))
        out_specs = (pl.BlockSpec((None, tq, d), lambda bi, i: (bi, i, 0)),
                     pl.BlockSpec((None, tq, 1), lambda bi, i: (bi, i, 0)))
    else:
        out_shape = jax.ShapeDtypeStruct((b, qlen, d), out_dtype)
        out_specs = pl.BlockSpec((None, tq, d), lambda bi, i: (bi, i, 0))

    kern = _make_ln_kernel(eps, modulate, quant_out)
    return pl.pallas_call(
        kern, out_shape=out_shape, grid=grid, in_specs=in_specs, out_specs=out_specs,
        compiler_params=pltpu.CompilerParams(
            dimension_semantics=("parallel", "parallel"),
            vmem_limit_bytes=_VMEM_LIMIT),
    )(*inputs)


# ----------------------------- standalone row quant --------------------------

def _row_quant_kernel(x_ref, q_ref, s_ref):
    _quantize_rows(x_ref[...].astype(jnp.float32), q_ref, s_ref)


def row_quant(x, *, tm_pref=512):
    """Per-row dynamic int8 quant (awq invoke_quant): (q int8 [N,D], scale f32 [N,1]).
    Only used for the encoder_hidden_states pre-quantization; the per-block
    attention-output quant is fused into the attention kernel's finalize."""
    n, d = x.shape
    tm = _pick_tile(n, tm_pref, 32)
    return pl.pallas_call(
        _row_quant_kernel,
        out_shape=(jax.ShapeDtypeStruct((n, d), jnp.int8),
                   jax.ShapeDtypeStruct((n, 1), jnp.float32)),
        grid=(n // tm,),
        in_specs=[pl.BlockSpec((tm, d), lambda i: (i, 0))],
        out_specs=(pl.BlockSpec((tm, d), lambda i: (i, 0)),
                   pl.BlockSpec((tm, 1), lambda i: (i, 0))),
        compiler_params=pltpu.CompilerParams(
            dimension_semantics=("parallel",),
            vmem_limit_bytes=_VMEM_LIMIT),
    )(x)


# --------------------- fused multi-head attention + output quant --------------

def _make_mha_kernel(heads, dh, single_kv):
    """Attention on flat (tokens, D) tiles: the kernel statically loops over heads
    slicing lane chunks of width `dh`, so no (B,H,L,dh) transpose ever touches HBM.
    The softmax scale is pre-folded into the Q projection (weight-scale + bias).
    The attention-output per-row int8 quant (invoke_quant) is fused in the finalize.
    """
    if single_kv:
        # KV fits one tile: plain single-pass softmax, no online-rescale work.
        def kernel(q_ref, k_ref, v_ref, qo_ref, so_ref, acc_sc):
            kblk = k_ref[...]
            vblk = v_ref[...]
            for h in range(heads):
                sl = slice(h * dh, (h + 1) * dh)
                s = jax.lax.dot_general(q_ref[:, sl], kblk[:, sl],
                                        (((1,), (1,)), ((), ())),
                                        preferred_element_type=jnp.float32)
                m = jnp.max(s, axis=-1, keepdims=True)
                p = jnp.exp(s - m)
                l = jnp.sum(p, axis=-1, keepdims=True)
                o = jnp.dot(p.astype(vblk.dtype), vblk[:, sl],
                            preferred_element_type=jnp.float32)
                acc_sc[:, sl] = o * pl.reciprocal(l)
            _quantize_rows(acc_sc[...], qo_ref, so_ref)
        return kernel

    def kernel(q_ref, k_ref, v_ref, qo_ref, so_ref, m_sc, l_sc, acc_sc):
        kv = pl.program_id(2)

        @pl.when(kv == 0)
        def _():
            m_sc[...] = jnp.full(m_sc.shape, -jnp.inf, m_sc.dtype)
            l_sc[...] = jnp.zeros(l_sc.shape, l_sc.dtype)
            acc_sc[...] = jnp.zeros(acc_sc.shape, acc_sc.dtype)

        kblk = k_ref[...]
        vblk = v_ref[...]
        for h in range(heads):
            sl = slice(h * dh, (h + 1) * dh)
            s = jax.lax.dot_general(q_ref[:, sl], kblk[:, sl],
                                    (((1,), (1,)), ((), ())),
                                    preferred_element_type=jnp.float32)
            m_prev = m_sc[h]
            m_new = jnp.maximum(m_prev, jnp.max(s, axis=-1, keepdims=True))
            alpha = jnp.exp(m_prev - m_new)
            p = jnp.exp(s - m_new)
            l_sc[h] = alpha * l_sc[h] + jnp.sum(p, axis=-1, keepdims=True)
            acc_sc[:, sl] = alpha * acc_sc[:, sl] + jnp.dot(
                p.astype(vblk.dtype), vblk[:, sl], preferred_element_type=jnp.float32)
            m_sc[h] = m_new

        @pl.when(kv == pl.num_programs(2) - 1)
        def _():
            for h in range(heads):
                sl = slice(h * dh, (h + 1) * dh)
                acc_sc[:, sl] = acc_sc[:, sl] * pl.reciprocal(l_sc[h])
            _quantize_rows(acc_sc[...], qo_ref, so_ref)
    return kernel


def mha_quant(q, k, v, *, heads, tq_pref=256, tk_pref=1024):
    """Non-causal flash attention on the flat layout, fused with invoke_quant.
    q: (B, Lq, D); k, v: (B, Lk, D) -> (int8 (B, Lq, D), f32 (B, Lq, 1)).
    The softmax scale is already folded into the Q projection."""
    b, lq, d = q.shape
    lk = k.shape[1]
    assert d % heads == 0
    dh = d // heads
    tq = _pick_tile(lq, tq_pref, 8)
    tk = lk if lk <= tk_pref else _pick_tile(lk, tk_pref, 8)
    single_kv = (tk == lk)
    grid = (b, lq // tq, lk // tk)

    scratch = [pltpu.VMEM((tq, d), jnp.float32)]
    if not single_kv:
        scratch = [pltpu.VMEM((heads, tq, 1), jnp.float32),
                   pltpu.VMEM((heads, tq, 1), jnp.float32)] + scratch

    kern = _make_mha_kernel(heads, dh, single_kv)
    return pl.pallas_call(
        kern,
        out_shape=(jax.ShapeDtypeStruct((b, lq, d), jnp.int8),
                   jax.ShapeDtypeStruct((b, lq, 1), jnp.float32)),
        grid=grid,
        in_specs=[pl.BlockSpec((None, tq, d), lambda bi, i, j: (bi, i, 0)),
                  pl.BlockSpec((None, tk, d), lambda bi, i, j: (bi, j, 0)),
                  pl.BlockSpec((None, tk, d), lambda bi, i, j: (bi, j, 0))],
        out_specs=(pl.BlockSpec((None, tq, d), lambda bi, i, j: (bi, i, 0)),
                   pl.BlockSpec((None, tq, 1), lambda bi, i, j: (bi, i, 0))),
        scratch_shapes=scratch,
        compiler_params=pltpu.CompilerParams(
            dimension_semantics=("parallel", "parallel", "arbitrary"),
            vmem_limit_bytes=_VMEM_LIMIT),
        cost_estimate=pl.CostEstimate(
            flops=4 * b * lq * lk * d,
            transcendentals=b * heads * lq * lk,
            bytes_accessed=b * (2 * lq * d + 4 * lk * d + lq * d + 4 * lq)),
    )(q, k, v)


# --------------------------- parameter construction ---------------------------

def _quantize_weight(w):
    """Per-output-channel symmetric int8 quantization (W8A8 from_linear).
    Returns weight pre-transposed to (K, O) for lane-dense MXU output tiles."""
    s = jnp.max(jnp.abs(w), axis=1, keepdims=True) / 127.0
    s = jnp.where(s > 0.0, s, 1.0)
    qw = jnp.clip(jnp.round(w / s), -127.0, 127.0).astype(jnp.int8)
    return jnp.transpose(qw), s.reshape(1, -1)


def make_w8a8(key, out_f, in_f):
    kw, kb = jax.random.split(key)
    w = 0.02 * jax.random.normal(kw, (out_f, in_f), jnp.float32)
    qw_t, ws = _quantize_weight(w)
    b = 0.01 * jax.random.normal(kb, (out_f,), jnp.float32).reshape(1, -1)
    return dict(qw=qw_t, ws=ws, b=b)


def make_fp_linear(key, out_f, in_f):
    kw, kb = jax.random.split(key)
    w = 0.02 * jax.random.normal(kw, (in_f, out_f), jnp.float32)   # stored (K, O)
    b = 0.01 * jax.random.normal(kb, (out_f,), jnp.float32)
    return dict(w=w, b=b)


def make_params(key, hidden, intermediate, num_blocks, out_dim, head_dim):
    keys = jax.random.split(key, 4 + num_blocks)
    params = dict(
        t1=make_fp_linear(keys[0], hidden, hidden),        # timestep MLP linear1
        t2=make_fp_linear(keys[1], hidden, hidden),        # timestep MLP linear2
        p1=make_fp_linear(keys[2], 2 * hidden, hidden),    # proj_out_1
        p2=make_fp_linear(keys[3], out_dim, hidden),       # proj_out_2
        blocks=[],
    )
    inv_sqrt_dh = 1.0 / math.sqrt(head_dim)
    for i in range(num_blocks):
        bkeys = jax.random.split(keys[4 + i], 7)
        qproj = make_w8a8(bkeys[1], hidden, hidden)
        # Fold the attention softmax scale into the Q projection: scale both the
        # per-channel weight scale and the bias so q_proj outputs q / sqrt(dh).
        qproj['ws'] = qproj['ws'] * inv_sqrt_dh
        qproj['b'] = qproj['b'] * inv_sqrt_dh
        params['blocks'].append(dict(
            ada=make_fp_linear(bkeys[0], 2 * hidden, hidden),   # AdaLayerNorm linear
            q=qproj,
            k=make_w8a8(bkeys[2], hidden, hidden),
            v=make_w8a8(bkeys[3], hidden, hidden),
            o=make_w8a8(bkeys[4], hidden, hidden),
            fc1=make_w8a8(bkeys[5], intermediate, hidden),
            fc2=make_w8a8(bkeys[6], hidden, intermediate),
        ))
    return params


# -------------------------------- forward pass --------------------------------

def sinusoidal_embedding(t, dim):
    half = dim // 2
    freqs = jnp.exp(-math.log(10000.0) * jnp.arange(half, dtype=jnp.float32) / half)
    args = t.astype(jnp.float32)[:, None] * freqs[None, :]
    return jnp.concatenate([jnp.cos(args), jnp.sin(args)], axis=-1)


def transformer_block(h, temb, enc_q, enc_s, bp, bsz, qlen, kvlen, heads, cross):
    D = h.shape[-1]
    N = bsz * qlen
    h3 = h.reshape(bsz, qlen, D)

    # ada_norm norm1 + modulation + invoke_input_quant   (one fused kernel)
    emb = jax.nn.silu(temb) @ bp['ada']['w'] + bp['ada']['b']
    scale1, shift1 = jnp.split(emb, 2, axis=1)
    q_in, s_in = layernorm_modulate(h3, scale1[:, None, :], shift1[:, None, :],
                                    eps=1e-5, quant_out=True)
    q_in = q_in.reshape(N, D)
    s_in = s_in.reshape(N, 1)

    # attn1 projections (self or cross K/V source, alternating per block)
    qp = w8a8_linear(q_in, s_in, **bp['q'])               # softmax scale pre-folded
    if cross:
        kp = w8a8_linear(enc_q, enc_s, **bp['k'])
        vp = w8a8_linear(enc_q, enc_s, **bp['v'])
        klen = kvlen
    else:
        kp = w8a8_linear(q_in, s_in, **bp['k'])
        vp = w8a8_linear(q_in, s_in, **bp['v'])
        klen = qlen

    # attention + fused invoke_quant on the flat layout (only free reshapes here)
    qa, sa = mha_quant(qp.reshape(bsz, qlen, D),
                       kp.reshape(bsz, klen, D),
                       vp.reshape(bsz, klen, D), heads=heads)
    qa = qa.reshape(N, D)
    sa = sa.reshape(N, 1)

    # out_proj with fused residual add
    h1 = w8a8_linear(qa, sa, **bp['o'], residual=h)

    # layer_norm3 + quant (fused); QuantMLP: fc1+gelu+quant (fused), fc2 + residual
    q3, s3 = layernorm_modulate(h1.reshape(bsz, qlen, D), None, None,
                                eps=1e-5, quant_out=True)
    qg, sg = w8a8_linear(q3.reshape(N, D), s3.reshape(N, 1), **bp['fc1'],
                         fuse_gelu=True, quant_out=True)
    h2 = w8a8_linear(qg, sg, **bp['fc2'], residual=h1)
    return h2


def quant_dit_forward(params, hidden_states, encoder_hidden_states, timestep,
                      heads, head_dim):
    del head_dim  # derived inside mha_quant from D // heads
    bsz, qlen, D = hidden_states.shape
    kvlen = encoder_hidden_states.shape[1]

    # timestep_encoder: sinusoidal -> linear -> silu -> linear  (tiny glue, plain XLA)
    temb = sinusoidal_embedding(timestep, D)
    temb = jax.nn.silu(temb @ params['t1']['w'] + params['t1']['b'])
    temb = temb @ params['t2']['w'] + params['t2']['b']                 # (bsz, D)

    # quantize encoder_hidden_states once (cross-attn K/V source)
    enc = encoder_hidden_states.astype(jnp.bfloat16).reshape(bsz * kvlen, D)
    enc_q, enc_s = row_quant(enc)

    h = hidden_states.astype(jnp.bfloat16).reshape(bsz * qlen, D)
    for idx, bp in enumerate(params['blocks']):
        cross = (idx % 2 == 0)                  # block index % 2 == 0 -> cross attention
        h = transformer_block(h, temb, enc_q, enc_s, bp, bsz, qlen, kvlen,
                              heads, cross)

    # output head: shift, scale = proj_out_1(silu(temb)).chunk(2); norm_out; proj_out_2.
    # proj_out_{1,2} have tiny lane dims (would force masked stores) -> plain XLA.
    ss = jax.nn.silu(temb) @ params['p1']['w'] + params['p1']['b']
    shift, scale = jnp.split(ss, 2, axis=1)
    hn = layernorm_modulate(h.reshape(bsz, qlen, D), scale[:, None, :],
                            shift[:, None, :], eps=1e-6, quant_out=False,
                            out_dtype=jnp.float32)
    out = hn.reshape(bsz * qlen, D) @ params['p2']['w'] + params['p2']['b']
    return out.reshape(bsz, qlen, -1)


# ------------------------------------ main -------------------------------------

if __name__ == "__main__":
    # small config consistent with the module's forward (lane-friendly hidden dim)
    bsz, qlen, kvlen = 2, 16, 24
    hidden, heads = 128, 2
    head_dim = hidden // heads
    intermediate = 256
    num_blocks = 2          # block 0: cross-attn, block 1: self-attn
    out_dim = 8

    key = jax.random.PRNGKey(0)
    kp, kx, ke, kt = jax.random.split(key, 4)
    params = make_params(kp, hidden, intermediate, num_blocks, out_dim, head_dim)

    hidden_states = jax.random.normal(kx, (bsz, qlen, hidden), jnp.float32)
    encoder_hidden_states = jax.random.normal(ke, (bsz, kvlen, hidden), jnp.float32)
    timestep = jax.random.randint(kt, (bsz,), 0, 1000)

    fwd = jax.jit(functools.partial(quant_dit_forward, heads=heads, head_dim=head_dim))
    out = fwd(params, hidden_states, encoder_hidden_states, timestep)
    jax.block_until_ready(out)
    assert out.shape == (bsz, qlen, out_dim)
    assert bool(jnp.all(jnp.isfinite(out)))
    print("KERNEL_OK")
</pallas_src>

<mosaic_0001>
module attributes {stable_mosaic.version = 11 : i64} {
  func.func @_row_quant_kernel(%arg0: i32, %arg1: memref<48x128xbf16, #tpu.memory_space<vmem>>, %arg2: memref<48x128xi8, #tpu.memory_space<vmem>>, %arg3: memref<48x1xf32, #tpu.memory_space<vmem>>) attributes {dimension_semantics = [#tpu.dimension_semantics<parallel>], iteration_bounds = array<i64: 1>, scalar_prefetch = 0 : i64, scratch_operands = 0 : i64, tpu.core_type = #tpu.core_type<tc>, window_params = [{transform_indices = @transform_0, window_bounds = array<i64: 48, 128>}, {transform_indices = @transform_1, window_bounds = array<i64: 48, 128>}, {transform_indices = @transform_2, window_bounds = array<i64: 48, 1>}]} {
    %c0 = arith.constant 0 : index
    %c0_0 = arith.constant 0 : index
    %0 = vector.load %arg1[%c0, %c0_0] : memref<48x128xbf16, #tpu.memory_space<vmem>>, vector<48x128xbf16>
    %1 = arith.extf %0 : vector<48x128xbf16> to vector<48x128xf32>
    %2 = math.absf %1 : vector<48x128xf32>
    %cst = arith.constant dense<0xFF800000> : vector<48xf32>
    %3 = vector.multi_reduction <maximumf>, %2, %cst [1] : vector<48x128xf32> to vector<48xf32>
    %4 = vector.shape_cast %3 : vector<48xf32> to vector<48x1xf32>
    %cst_1 = arith.constant 0.00787401571 : f32
    %5 = vector.broadcast %cst_1 : f32 to vector<48x1xf32>
    %6 = arith.mulf %4, %5 : vector<48x1xf32>
    %cst_2 = arith.constant 0.000000e+00 : f32
    %7 = vector.broadcast %cst_2 : f32 to vector<48x1xf32>
    %8 = arith.cmpf ogt, %6, %7 : vector<48x1xf32>
    %cst_3 = arith.constant 1.000000e+00 : f32
    %9 = vector.broadcast %cst_3 : f32 to vector<48x1xf32>
    %10 = arith.select %8, %6, %9 : vector<48x1xi1>, vector<48x1xf32>
    %11 = tpu.reciprocal %10 : vector<48x1xf32> -> vector<48x1xf32>
    %12 = vector.broadcast %11 : vector<48x1xf32> to vector<48x128xf32>
    %13 = arith.mulf %1, %12 : vector<48x128xf32>
    %14 = math.roundeven %13 : vector<48x128xf32>
    %cst_4 = arith.constant -1.270000e+02 : f32
    %cst_5 = arith.constant 1.270000e+02 : f32
    %15 = vector.broadcast %cst_4 : f32 to vector<48x128xf32>
    %16 = arith.maximumf %15, %14 : vector<48x128xf32>
    %17 = vector.broadcast %cst_5 : f32 to vector<48x128xf32>
    %18 = arith.minimumf %17, %16 : vector<48x128xf32>
    %19 = arith.fptosi %18 : vector<48x128xf32> to vector<48x128xi8>
    %c0_6 = arith.constant 0 : index
    %c0_7 = arith.constant 0 : index
    %20 = vector.load %arg2[%c0_6, %c0_7] : memref<48x128xi8, #tpu.memory_space<vmem>>, vector<48x128xi8>
    tpu.vector_store %arg2[%c0_6, %c0_7], %19 {strides = array<i32>} : memref<48x128xi8, #tpu.memory_space<vmem>>, vector<48x128xi8>,
    %c0_8 = arith.constant 0 : index
    %c0_9 = arith.constant 0 : index
    %21 = vector.load %arg3[%c0_8, %c0_9] : memref<48x1xf32, #tpu.memory_space<vmem>>, vector<48x1xf32>
    tpu.vector_store %arg3[%c0_8, %c0_9], %6 {strides = array<i32>} : memref<48x1xf32, #tpu.memory_space<vmem>>, vector<48x1xf32>,
    return
  }
  func.func @transform_0(%arg0: i32) -> (i32, i32) {
    %c0_i32 = arith.constant 0 : i32
    %c0_i32_0 = arith.constant 0 : i32
    return %arg0, %c0_i32 : i32, i32
  }
  func.func @transform_1(%arg0: i32) -> (i32, i32) {
    %c0_i32 = arith.constant 0 : i32
    %c0_i32_0 = arith.constant 0 : i32
    return %arg0, %c0_i32 : i32, i32
  }
  func.func @transform_2(%arg0: i32) -> (i32, i32) {
    %c0_i32 = arith.constant 0 : i32
    %c0_i32_0 = arith.constant 0 : i32
    return %arg0, %c0_i32 : i32, i32
  }
}

module attributes {stable_mosaic.version = 11 : i64} {
  func.func @kernel(%arg0: i32, %arg1: i32, %arg2: i32, %arg3: memref<48x128xi8, #tpu.memory_space<vmem>>, %arg4: memref<48x1xf32, #tpu.memory_space<vmem>>, %arg5: memref<128x128xi8, #tpu.memory_space<vmem>>, %arg6: memref<1x128xf32, #tpu.memory_space<vmem>>, %arg7: memref<1x128xf32, #tpu.memory_space<vmem>>, %arg8: memref<48x128xbf16, #tpu.memory_space<vmem>>, %arg9: memref<48x128xf32, #tpu.memory_space<vmem>>) attributes {dimension_semantics = [#tpu.dimension_semantics<parallel>, #tpu.dimension_semantics<parallel>, #tpu.dimension_semantics<arbitrary>], iteration_bounds = array<i64: 1, 1, 1>, scalar_prefetch = 0 : i64, scratch_operands = 1 : i64, tpu.core_type = #tpu.core_type<tc>, window_params = [{transform_indices = @transform_0, window_bounds = array<i64: 48, 128>}, {transform_indices = @transform_1, window_bounds = array<i64: 48, 1>}, {transform_indices = @transform_2, window_bounds = array<i64: 128, 128>}, {transform_indices = @transform_3, window_bounds = array<i64: 1, 128>}, {transform_indices = @transform_4, window_bounds = array<i64: 1, 128>}, {transform_indices = @transform_5, window_bounds = array<i64: 48, 128>}]} {
    %c0_i32 = arith.constant 0 : i32
    %0 = arith.cmpi eq, %arg2, %c0_i32 : i32
    %1 = arith.extui %0 : i1 to i32
    %c0_i32_0 = arith.constant 0 : i32
    %2 = arith.cmpi ne, %1, %c0_i32_0 : i32
    scf.if %2 {
      %cst_10 = arith.constant 0.000000e+00 : f32
      %14 = vector.broadcast %cst_10 : f32 to vector<48x128xf32>
      %c0_11 = arith.constant 0 : index
      %c0_12 = arith.constant 0 : index
      %15 = vector.load %arg9[%c0_11, %c0_12] : memref<48x128xf32, #tpu.memory_space<vmem>>, vector<48x128xf32>
      tpu.vector_store %arg9[%c0_11, %c0_12], %14 {strides = array<i32>} : memref<48x128xf32, #tpu.memory_space<vmem>>, vector<48x128xf32>,
    } else {
    }
    %c0 = arith.constant 0 : index
    %c0_1 = arith.constant 0 : index
    %3 = vector.load %arg9[%c0, %c0_1] : memref<48x128xf32, #tpu.memory_space<vmem>>, vector<48x128xf32>
    %c0_2 = arith.constant 0 : index
    %c0_3 = arith.constant 0 : index
    %4 = vector.load %arg3[%c0_2, %c0_3] : memref<48x128xi8, #tpu.memory_space<vmem>>, vector<48x128xi8>
    %5 = arith.sitofp %4 : vector<48x128xi8> to vector<48x128xbf16>
    %c0_4 = arith.constant 0 : index
    %c0_5 = arith.constant 0 : index
    %6 = vector.load %arg5[%c0_4, %c0_5] : memref<128x128xi8, #tpu.memory_space<vmem>>, vector<128x128xi8>
    %7 = arith.sitofp %6 : vector<128x128xi8> to vector<128x128xbf16>
    %cst = arith.constant dense<0.000000e+00> : vector<48x128xf32>
    %8 = tpu.matmul %5, %7, %cst {dimension_numbers = #tpu.dot_dimension_numbers<[1], [0], [0], [1], [0, 0, 1, 1], [], []>} : vector<48x128xbf16>, vector<128x128xbf16>, vector<48x128xf32> -> vector<48x128xf32>
    %9 = arith.addf %3, %8 : vector<48x128xf32>
    %c0_6 = arith.constant 0 : index
    %c0_7 = arith.constant 0 : index
    %10 = vector.load %arg9[%c0_6, %c0_7] : memref<48x128xf32, #tpu.memory_space<vmem>>, vector<48x128xf32>
    tpu.vector_store %arg9[%c0_6, %c0_7], %9 {strides = array<i32>} : memref<48x128xf32, #tpu.memory_space<vmem>>, vector<48x128xf32>,
    %c0_i32_8 = arith.constant 0 : i32
    %11 = arith.cmpi eq, %arg2, %c0_i32_8 : i32
    %12 = arith.extui %11 : i1 to i32
    %c0_i32_9 = arith.constant 0 : i32
    %13 = arith.cmpi ne, %12, %c0_i32_9 : i32
    scf.if %13 {
      %c0_10 = arith.constant 0 : index
      %c0_11 = arith.constant 0 : index
      %14 = vector.load %arg9[%c0_10, %c0_11] : memref<48x128xf32, #tpu.memory_space<vmem>>, vector<48x128xf32>
      %c0_12 = arith.constant 0 : index
      %c0_13 = arith.constant 0 : index
      %15 = vector.load %arg4[%c0_12, %c0_13] : memref<48x1xf32, #tpu.memory_space<vmem>>, vector<48x1xf32>
      %16 = vector.broadcast %15 : vector<48x1xf32> to vector<48x128xf32>
      %17 = arith.mulf %14, %16 : vector<48x128xf32>
      %c0_14 = arith.constant 0 : index
      %c0_15 = arith.constant 0 : index
      %18 = vector.load %arg6[%c0_14, %c0_15] : memref<1x128xf32, #tpu.memory_space<vmem>>, vector<1x128xf32>
      %19 = vector.broadcast %18 : vector<1x128xf32> to vector<48x128xf32>
      %20 = arith.mulf %17, %19 : vector<48x128xf32>
      %c0_16 = arith.constant 0 : index
      %c0_17 = arith.constant 0 : index
      %21 = vector.load %arg7[%c0_16, %c0_17] : memref<1x128xf32, #tpu.memory_space<vmem>>, vector<1x128xf32>
      %22 = vector.broadcast %21 : vector<1x128xf32> to vector<48x128xf32>
      %23 = arith.addf %20, %22 : vector<48x128xf32>
      %24 = arith.truncf %23 : vector<48x128xf32> to vector<48x128xbf16>
      %c0_18 = arith.constant 0 : index
      %c0_19 = arith.constant 0 : index
      %25 = vector.load %arg8[%c0_18, %c0_19] : memref<48x128xbf16, #tpu.memory_space<vmem>>, vector<48x128xbf16>
      tpu.vector_store %arg8[%c0_18, %c0_19], %24 {strides = array<i32>} : memref<48x128xbf16, #tpu.memory_space<vmem>>, vector<48x128xbf16>,
    } else {
    }
    return
  }
  func.func @transform_0(%arg0: i32, %arg1: i32, %arg2: i32) -> (i32, i32) {
    %c0_i32 = arith.constant 0 : i32
    return %arg0, %arg2 : i32, i32
  }
  func.func @transform_1(%arg0: i32, %arg1: i32, %arg2: i32) -> (i32, i32) {
    %c0_i32 = arith.constant 0 : i32
    %c0_i32_0 = arith.constant 0 : i32
    return %arg0, %c0_i32 : i32, i32
  }
  func.func @transform_2(%arg0: i32, %arg1: i32, %arg2: i32) -> (i32, i32) {
    %c0_i32 = arith.constant 0 : i32
    return %arg2, %arg1 : i32, i32
  }
  func.func @transform_3(%arg0: i32, %arg1: i32, %arg2: i32) -> (i32, i32) {
    %c0_i32 = arith.constant 0 : i32
    %c0_i32_0 = arith.constant 0 : i32
    return %c0_i32, %arg1 : i32, i32
  }
  func.func @transform_4(%arg0: i32, %arg1: i32, %arg2: i32) -> (i32, i32) {
    %c0_i32 = arith.constant 0 : i32
    %c0_i32_0 = arith.constant 0 : i32
    return %c0_i32, %arg1 : i32, i32
  }
  func.func @transform_5(%arg0: i32, %arg1: i32, %arg2: i32) -> (i32, i32) {
    %c0_i32 = arith.constant 0 : i32
    return %arg0, %arg1 : i32, i32
  }
}

module attributes {stable_mosaic.version = 11 : i64} {
  func.func @kernel(%arg0: i32, %arg1: i32, %arg2: memref<1x16x128xbf16, #tpu.memory_space<vmem>>, %arg3: memref<1x1x128xf32, #tpu.memory_space<vmem>>, %arg4: memref<1x1x128xf32, #tpu.memory_space<vmem>>, %arg5: memref<1x16x128xi8, #tpu.memory_space<vmem>>, %arg6: memref<1x16x1xf32, #tpu.memory_space<vmem>>) attributes {dimension_semantics = [#tpu.dimension_semantics<parallel>, #tpu.dimension_semantics<parallel>], iteration_bounds = array<i64: 2, 1>, scalar_prefetch = 0 : i64, scratch_operands = 0 : i64, tpu.core_type = #tpu.core_type<tc>, window_params = [{transform_indices = @transform_0, window_bounds = array<i64: 1, 16, 128>}, {transform_indices = @transform_1, window_bounds = array<i64: 1, 1, 128>}, {transform_indices = @transform_2, window_bounds = array<i64: 1, 1, 128>}, {transform_indices = @transform_3, window_bounds = array<i64: 1, 16, 128>}, {transform_indices = @transform_4, window_bounds = array<i64: 1, 16, 1>}]} {
    %c0 = arith.constant 0 : index
    %c0_0 = arith.constant 0 : index
    %c0_1 = arith.constant 0 : index
    %0 = vector.load %arg2[%c0, %c0_0, %c0_1] : memref<1x16x128xbf16, #tpu.memory_space<vmem>>, vector<1x16x128xbf16>
    %1 = vector.shape_cast %0 : vector<1x16x128xbf16> to vector<16x128xbf16>
    %2 = arith.extf %1 : vector<16x128xbf16> to vector<16x128xf32>
    %cst = arith.constant dense<0.000000e+00> : vector<16xf32>
    %3 = vector.multi_reduction <add>, %2, %cst [1] : vector<16x128xf32> to vector<16xf32>
    %4 = vector.shape_cast %3 : vector<16xf32> to vector<16x1xf32>
    %cst_2 = arith.constant 1.280000e+02 : f32
    %5 = vector.broadcast %cst_2 : f32 to vector<16x1xf32>
    %6 = arith.divf %4, %5 : vector<16x1xf32>
    %7 = arith.mulf %2, %2 : vector<16x128xf32>
    %cst_3 = arith.constant dense<0.000000e+00> : vector<16xf32>
    %8 = vector.multi_reduction <add>, %7, %cst_3 [1] : vector<16x128xf32> to vector<16xf32>
    %9 = vector.shape_cast %8 : vector<16xf32> to vector<16x1xf32>
    %cst_4 = arith.constant 1.280000e+02 : f32
    %10 = vector.broadcast %cst_4 : f32 to vector<16x1xf32>
    %11 = arith.divf %9, %10 : vector<16x1xf32>
    %12 = arith.mulf %6, %6 : vector<16x1xf32>
    %13 = arith.subf %11, %12 : vector<16x1xf32>
    %cst_5 = arith.constant 0.000000e+00 : f32
    %14 = vector.broadcast %cst_5 : f32 to vector<16x1xf32>
    %15 = arith.maximumf %13, %14 : vector<16x1xf32>
    %16 = vector.broadcast %6 : vector<16x1xf32> to vector<16x128xf32>
    %17 = arith.subf %2, %16 : vector<16x128xf32>
    %cst_6 = arith.constant 9.99999974E-6 : f32
    %18 = vector.broadcast %cst_6 : f32 to vector<16x1xf32>
    %19 = arith.addf %15, %18 : vector<16x1xf32>
    %20 = math.rsqrt %19 : vector<16x1xf32>
    %21 = vector.broadcast %20 : vector<16x1xf32> to vector<16x128xf32>
    %22 = arith.mulf %17, %21 : vector<16x128xf32>
    %c0_7 = arith.constant 0 : index
    %c0_8 = arith.constant 0 : index
    %c0_9 = arith.constant 0 : index
    %23 = vector.load %arg3[%c0_7, %c0_8, %c0_9] : memref<1x1x128xf32, #tpu.memory_space<vmem>>, vector<1x1x128xf32>
    %24 = vector.shape_cast %23 : vector<1x1x128xf32> to vector<1x128xf32>
    %cst_10 = arith.constant 1.000000e+00 : f32
    %25 = vector.broadcast %cst_10 : f32 to vector<1x128xf32>
    %26 = arith.addf %25, %24 : vector<1x128xf32>
    %27 = vector.broadcast %26 : vector<1x128xf32> to vector<16x128xf32>
    %28 = arith.mulf %22, %27 : vector<16x128xf32>
    %c0_11 = arith.constant 0 : index
    %c0_12 = arith.constant 0 : index
    %c0_13 = arith.constant 0 : index
    %29 = vector.load %arg4[%c0_11, %c0_12, %c0_13] : memref<1x1x128xf32, #tpu.memory_space<vmem>>, vector<1x1x128xf32>
    %30 = vector.shape_cast %29 : vector<1x1x128xf32> to vector<1x128xf32>
    %31 = vector.broadcast %30 : vector<1x128xf32> to vector<16x128xf32>
    %32 = arith.addf %28, %31 : vector<16x128xf32>
    %33 = math.absf %32 : vector<16x128xf32>
    %cst_14 = arith.constant dense<0xFF800000> : vector<16xf32>
    %34 = vector.multi_reduction <maximumf>, %33, %cst_14 [1] : vector<16x128xf32> to vector<16xf32>
    %35 = vector.shape_cast %34 : vector<16xf32> to vector<16x1xf32>
    %cst_15 = arith.constant 0.00787401571 : f32
    %36 = vector.broadcast %cst_15 : f32 to vector<16x1xf32>
    %37 = arith.mulf %35, %36 : vector<16x1xf32>
    %cst_16 = arith.constant 0.000000e+00 : f32
    %38 = vector.broadcast %cst_16 : f32 to vector<16x1xf32>
    %39 = arith.cmpf ogt, %37, %38 : vector<16x1xf32>
    %cst_17 = arith.constant 1.000000e+00 : f32
    %40 = vector.broadcast %cst_17 : f32 to vector<16x1xf32>
    %41 = arith.select %39, %37, %40 : vector<16x1xi1>, vector<16x1xf32>
    %42 = tpu.reciprocal %41 : vector<16x1xf32> -> vector<16x1xf32>
    %43 = vector.broadcast %42 : vector<16x1xf32> to vector<16x128xf32>
    %44 = arith.mulf %32, %43 : vector<16x128xf32>
    %45 = math.roundeven %44 : vector<16x128xf32>
    %cst_18 = arith.constant -1.270000e+02 : f32
    %cst_19 = arith.constant 1.270000e+02 : f32
    %46 = vector.broadcast %cst_18 : f32 to vector<16x128xf32>
    %47 = arith.maximumf %46, %45 : vector<16x128xf32>
    %48 = vector.broadcast %cst_19 : f32 to vector<16x128xf32>
    %49 = arith.minimumf %48, %47 : vector<16x128xf32>
    %50 = arith.fptosi %49 : vector<16x128xf32> to vector<16x128xi8>
    %c0_20 = arith.constant 0 : index
    %c0_21 = arith.constant 0 : index
    %c0_22 = arith.constant 0 : index
    %51 = vector.load %arg5[%c0_20, %c0_21, %c0_22] : memref<1x16x128xi8, #tpu.memory_space<vmem>>, vector<1x16x128xi8>
    %52 = vector.shape_cast %51 : vector<1x16x128xi8> to vector<16x128xi8>
    %53 = vector.shape_cast %50 : vector<16x128xi8> to vector<1x16x128xi8>
    tpu.vector_store %arg5[%c0_20, %c0_21, %c0_22], %53 {strides = array<i32>} : memref<1x16x128xi8, #tpu.memory_space<vmem>>, vector<1x16x128xi8>,
    %c0_23 = arith.constant 0 : index
    %c0_24 = arith.constant 0 : index
    %c0_25 = arith.constant 0 : index
    %54 = vector.load %arg6[%c0_23, %c0_24, %c0_25] : memref<1x16x1xf32, #tpu.memory_space<vmem>>, vector<1x16x1xf32>
    %55 = vector.shape_cast %54 : vector<1x16x1xf32> to vector<16x1xf32>
    %56 = vector.shape_cast %37 : vector<16x1xf32> to vector<1x16x1xf32>
    tpu.vector_store %arg6[%c0_23, %c0_24, %c0_25], %56 {strides = array<i32>} : memref<1x16x1xf32, #tpu.memory_space<vmem>>, vector<1x16x1xf32>,
    return
  }
  func.func @transform_0(%arg0: i32, %arg1: i32) -> (i32, i32, i32) {
    %c0_i32 = arith.constant 0 : i32
    %c0_i32_0 = arith.constant 0 : i32
    return %arg0, %arg1, %c0_i32 : i32, i32, i32
  }
  func.func @transform_1(%arg0: i32, %arg1: i32) -> (i32, i32, i32) {
    %c0_i32 = arith.constant 0 : i32
    %c0_i32_0 = arith.constant 0 : i32
    %c0_i32_1 = arith.constant 0 : i32
    return %arg0, %c0_i32, %c0_i32_0 : i32, i32, i32
  }
  func.func @transform_2(%arg0: i32, %arg1: i32) -> (i32, i32, i32) {
    %c0_i32 = arith.constant 0 : i32
    %c0_i32_0 = arith.constant 0 : i32
    %c0_i32_1 = arith.constant 0 : i32
    return %arg0, %c0_i32, %c0_i32_0 : i32, i32, i32
  }
  func.func @transform_3(%arg0: i32, %arg1: i32) -> (i32, i32, i32) {
    %c0_i32 = arith.constant 0 : i32
    %c0_i32_0 = arith.constant 0 : i32
    return %arg0, %arg1, %c0_i32 : i32, i32, i32
  }
  func.func @transform_4(%arg0: i32, %arg1: i32) -> (i32, i32, i32) {
    %c0_i32 = arith.constant 0 : i32
    %c0_i32_0 = arith.constant 0 : i32
    return %arg0, %arg1, %c0_i32 : i32, i32, i32
  }
}

module attributes {stable_mosaic.version = 11 : i64} {
  func.func @kernel(%arg0: i32, %arg1: i32, %arg2: i32, %arg3: memref<32x128xi8, #tpu.memory_space<vmem>>, %arg4: memref<32x1xf32, #tpu.memory_space<vmem>>, %arg5: memref<128x128xi8, #tpu.memory_space<vmem>>, %arg6: memref<1x128xf32, #tpu.memory_space<vmem>>, %arg7: memref<1x128xf32, #tpu.memory_space<vmem>>, %arg8: memref<32x128xbf16, #tpu.memory_space<vmem>>, %arg9: memref<32x128xf32, #tpu.memory_space<vmem>>) attributes {dimension_semantics = [#tpu.dimension_semantics<parallel>, #tpu.dimension_semantics<parallel>, #tpu.dimension_semantics<arbitrary>], iteration_bounds = array<i64: 1, 1, 1>, scalar_prefetch = 0 : i64, scratch_operands = 1 : i64, tpu.core_type = #tpu.core_type<tc>, window_params = [{transform_indices = @transform_0, window_bounds = array<i64: 32, 128>}, {transform_indices = @transform_1, window_bounds = array<i64: 32, 1>}, {transform_indices = @transform_2, window_bounds = array<i64: 128, 128>}, {transform_indices = @transform_3, window_bounds = array<i64: 1, 128>}, {transform_indices = @transform_4, window_bounds = array<i64: 1, 128>}, {transform_indices = @transform_5, window_bounds = array<i64: 32, 128>}]} {
    %c0_i32 = arith.constant 0 : i32
    %0 = arith.cmpi eq, %arg2, %c0_i32 : i32
    %1 = arith.extui %0 : i1 to i32
    %c0_i32_0 = arith.constant 0 : i32
    %2 = arith.cmpi ne, %1, %c0_i32_0 : i32
    scf.if %2 {
      %cst_10 = arith.constant 0.000000e+00 : f32
      %14 = vector.broadcast %cst_10 : f32 to vector<32x128xf32>
      %c0_11 = arith.constant 0 : index
      %c0_12 = arith.constant 0 : index
      %15 = vector.load %arg9[%c0_11, %c0_12] : memref<32x128xf32, #tpu.memory_space<vmem>>, vector<32x128xf32>
      tpu.vector_store %arg9[%c0_11, %c0_12], %14 {strides = array<i32>} : memref<32x128xf32, #tpu.memory_space<vmem>>, vector<32x128xf32>,
    } else {
    }
    %c0 = arith.constant 0 : index
    %c0_1 = arith.constant 0 : index
    %3 = vector.load %arg9[%c0, %c0_1] : memref<32x128xf32, #tpu.memory_space<vmem>>, vector<32x128xf32>
    %c0_2 = arith.constant 0 : index
    %c0_3 = arith.constant 0 : index
    %4 = vector.load %arg3[%c0_2, %c0_3] : memref<32x128xi8, #tpu.memory_space<vmem>>, vector<32x128xi8>
    %5 = arith.sitofp %4 : vector<32x128xi8> to vector<32x128xbf16>
    %c0_4 = arith.constant 0 : index
    %c0_5 = arith.constant 0 : index
    %6 = vector.load %arg5[%c0_4, %c0_5] : memref<128x128xi8, #tpu.memory_space<vmem>>, vector<128x128xi8>
    %7 = arith.sitofp %6 : vector<128x128xi8> to vector<128x128xbf16>
    %cst = arith.constant dense<0.000000e+00> : vector<32x128xf32>
    %8 = tpu.matmul %5, %7, %cst {dimension_numbers = #tpu.dot_dimension_numbers<[1], [0], [0], [1], [0, 0, 1, 1], [], []>} : vector<32x128xbf16>, vector<128x128xbf16>, vector<32x128xf32> -> vector<32x128xf32>
    %9 = arith.addf %3, %8 : vector<32x128xf32>
    %c0_6 = arith.constant 0 : index
    %c0_7 = arith.constant 0 : index
    %10 = vector.load %arg9[%c0_6, %c0_7] : memref<32x128xf32, #tpu.memory_space<vmem>>, vector<32x128xf32>
    tpu.vector_store %arg9[%c0_6, %c0_7], %9 {strides = array<i32>} : memref<32x128xf32, #tpu.memory_space<vmem>>, vector<32x128xf32>,
    %c0_i32_8 = arith.constant 0 : i32
    %11 = arith.cmpi eq, %arg2, %c0_i32_8 : i32
    %12 = arith.extui %11 : i1 to i32
    %c0_i32_9 = arith.constant 0 : i32
    %13 = arith.cmpi ne, %12, %c0_i32_9 : i32
    scf.if %13 {
      %c0_10 = arith.constant 0 : index
      %c0_11 = arith.constant 0 : index
      %14 = vector.load %arg9[%c0_10, %c0_11] : memref<32x128xf32, #tpu.memory_space<vmem>>, vector<32x128xf32>
      %c0_12 = arith.constant 0 : index
      %c0_13 = arith.constant 0 : index
      %15 = vector.load %arg4[%c0_12, %c0_13] : memref<32x1xf32, #tpu.memory_space<vmem>>, vector<32x1xf32>
      %16 = vector.broadcast %15 : vector<32x1xf32> to vector<32x128xf32>
      %17 = arith.mulf %14, %16 : vector<32x128xf32>
      %c0_14 = arith.constant 0 : index
      %c0_15 = arith.constant 0 : index
      %18 = vector.load %arg6[%c0_14, %c0_15] : memref<1x128xf32, #tpu.memory_space<vmem>>, vector<1x128xf32>
      %19 = vector.broadcast %18 : vector<1x128xf32> to vector<32x128xf32>
      %20 = arith.mulf %17, %19 : vector<32x128xf32>
      %c0_16 = arith.constant 0 : index
      %c0_17 = arith.constant 0 : index
      %21 = vector.load %arg7[%c0_16, %c0_17] : memref<1x128xf32, #tpu.memory_space<vmem>>, vector<1x128xf32>
      %22 = vector.broadcast %21 : vector<1x128xf32> to vector<32x128xf32>
      %23 = arith.addf %20, %22 : vector<32x128xf32>
      %24 = arith.truncf %23 : vector<32x128xf32> to vector<32x128xbf16>
      %c0_18 = arith.constant 0 : index
      %c0_19 = arith.constant 0 : index
      %25 = vector.load %arg8[%c0_18, %c0_19] : memref<32x128xbf16, #tpu.memory_space<vmem>>, vector<32x128xbf16>
      tpu.vector_store %arg8[%c0_18, %c0_19], %24 {strides = array<i32>} : memref<32x128xbf16, #tpu.memory_space<vmem>>, vector<32x128xbf16>,
    } else {
    }
    return
  }
  func.func @transform_0(%arg0: i32, %arg1: i32, %arg2: i32) -> (i32, i32) {
    %c0_i32 = arith.constant 0 : i32
    return %arg0, %arg2 : i32, i32
  }
  func.func @transform_1(%arg0: i32, %arg1: i32, %arg2: i32) -> (i32, i32) {
    %c0_i32 = arith.constant 0 : i32
    %c0_i32_0 = arith.constant 0 : i32
    return %arg0, %c0_i32 : i32, i32
  }
  func.func @transform_2(%arg0: i32, %arg1: i32, %arg2: i32) -> (i32, i32) {
    %c0_i32 = arith.constant 0 : i32
    return %arg2, %arg1 : i32, i32
  }
  func.func @transform_3(%arg0: i32, %arg1: i32, %arg2: i32) -> (i32, i32) {
    %c0_i32 = arith.constant 0 : i32
    %c0_i32_0 = arith.constant 0 : i32
    return %c0_i32, %arg1 : i32, i32
  }
  func.func @transform_4(%arg0: i32, %arg1: i32, %arg2: i32) -> (i32, i32) {
    %c0_i32 = arith.constant 0 : i32
    %c0_i32_0 = arith.constant 0 : i32
    return %c0_i32, %arg1 : i32, i32
  }
  func.func @transform_5(%arg0: i32, %arg1: i32, %arg2: i32) -> (i32, i32) {
    %c0_i32 = arith.constant 0 : i32
    return %arg0, %arg1 : i32, i32
  }
}

module attributes {stable_mosaic.version = 11 : i64} {
  func.func @kernel(%arg0: i32, %arg1: i32, %arg2: i32, %arg3: memref<1x16x128xbf16, #tpu.memory_space<vmem>>, %arg4: memref<1x24x128xbf16, #tpu.memory_space<vmem>>, %arg5: memref<1x24x128xbf16, #tpu.memory_space<vmem>>, %arg6: memref<1x16x128xi8, #tpu.memory_space<vmem>>, %arg7: memref<1x16x1xf32, #tpu.memory_space<vmem>>, %arg8: memref<16x128xf32, #tpu.memory_space<vmem>>) attributes {dimension_semantics = [#tpu.dimension_semantics<parallel>, #tpu.dimension_semantics<parallel>, #tpu.dimension_semantics<arbitrary>], iteration_bounds = array<i64: 2, 1, 1>, scalar_prefetch = 0 : i64, scratch_operands = 1 : i64, tpu.core_type = #tpu.core_type<tc>, window_params = [{transform_indices = @transform_0, window_bounds = array<i64: 1, 16, 128>}, {transform_indices = @transform_1, window_bounds = array<i64: 1, 24, 128>}, {transform_indices = @transform_2, window_bounds = array<i64: 1, 24, 128>}, {transform_indices = @transform_3, window_bounds = array<i64: 1, 16, 128>}, {transform_indices = @transform_4, window_bounds = array<i64: 1, 16, 1>}]} {
    %c0 = arith.constant 0 : index
    %c0_0 = arith.constant 0 : index
    %c0_1 = arith.constant 0 : index
    %0 = vector.load %arg4[%c0, %c0_0, %c0_1] : memref<1x24x128xbf16, #tpu.memory_space<vmem>>, vector<1x24x128xbf16>
    %1 = vector.shape_cast %0 : vector<1x24x128xbf16> to vector<24x128xbf16>
    %c0_2 = arith.constant 0 : index
    %c0_3 = arith.constant 0 : index
    %c0_4 = arith.constant 0 : index
    %2 = vector.load %arg5[%c0_2, %c0_3, %c0_4] : memref<1x24x128xbf16, #tpu.memory_space<vmem>>, vector<1x24x128xbf16>
    %3 = vector.shape_cast %2 : vector<1x24x128xbf16> to vector<24x128xbf16>
    %c0_5 = arith.constant 0 : index
    %c0_6 = arith.constant 0 : index
    %c0_7 = arith.constant 0 : index
    %4 = vector.load %arg3[%c0_5, %c0_6, %c0_7] : memref<1x16x128xbf16, #tpu.memory_space<vmem>>, vector<1x16x64xbf16>
    %5 = vector.shape_cast %4 : vector<1x16x64xbf16> to vector<16x64xbf16>
    %6 = vector.extract_strided_slice %1 {offsets = [0, 0], sizes = [24, 64], strides = [1, 1]} : vector<24x128xbf16> to vector<24x64xbf16>
    %cst = arith.constant dense<0.000000e+00> : vector<16x24xf32>
    %7 = tpu.matmul %5, %6, %cst {dimension_numbers = #tpu.dot_dimension_numbers<[1], [1], [0], [0], [0, 0, 1, 0], [], []>} : vector<16x64xbf16>, vector<24x64xbf16>, vector<16x24xf32> -> vector<16x24xf32>
    %cst_8 = arith.constant dense<0xFF800000> : vector<16xf32>
    %8 = vector.multi_reduction <maximumf>, %7, %cst_8 [1] : vector<16x24xf32> to vector<16xf32>
    %9 = vector.shape_cast %8 : vector<16xf32> to vector<16x1xf32>
    %10 = vector.broadcast %9 : vector<16x1xf32> to vector<16x24xf32>
    %11 = arith.subf %7, %10 : vector<16x24xf32>
    %12 = math.exp %11 : vector<16x24xf32>
    %cst_9 = arith.constant dense<0.000000e+00> : vector<16xf32>
    %13 = vector.multi_reduction <add>, %12, %cst_9 [1] : vector<16x24xf32> to vector<16xf32>
    %14 = vector.shape_cast %13 : vector<16xf32> to vector<16x1xf32>
    %15 = arith.truncf %12 : vector<16x24xf32> to vector<16x24xbf16>
    %16 = vector.extract_strided_slice %3 {offsets = [0, 0], sizes = [24, 64], strides = [1, 1]} : vector<24x128xbf16> to vector<24x64xbf16>
    %cst_10 = arith.constant dense<0.000000e+00> : vector<16x64xf32>
    %17 = tpu.matmul %15, %16, %cst_10 {dimension_numbers = #tpu.dot_dimension_numbers<[1], [0], [0], [1], [0, 0, 1, 1], [], []>} : vector<16x24xbf16>, vector<24x64xbf16>, vector<16x64xf32> -> vector<16x64xf32>
    %18 = tpu.reciprocal %14 : vector<16x1xf32> -> vector<16x1xf32>
    %19 = vector.broadcast %18 : vector<16x1xf32> to vector<16x64xf32>
    %20 = arith.mulf %17, %19 : vector<16x64xf32>
    %c0_11 = arith.constant 0 : index
    %c0_12 = arith.constant 0 : index
    %21 = vector.load %arg8[%c0_11, %c0_12] : memref<16x128xf32, #tpu.memory_space<vmem>>, vector<16x64xf32>
    tpu.vector_store %arg8[%c0_11, %c0_12], %20 {strides = array<i32>} : memref<16x128xf32, #tpu.memory_space<vmem>>, vector<16x64xf32>,
    %c0_13 = arith.constant 0 : index
    %c0_14 = arith.constant 0 : index
    %c64 = arith.constant 64 : index
    %22 = vector.load %arg3[%c0_13, %c0_14, %c64] : memref<1x16x128xbf16, #tpu.memory_space<vmem>>, vector<1x16x64xbf16>
    %23 = vector.shape_cast %22 : vector<1x16x64xbf16> to vector<16x64xbf16>
    %24 = vector.extract_strided_slice %1 {offsets = [0, 64], sizes = [24, 64], strides = [1, 1]} : vector<24x128xbf16> to vector<24x64xbf16>
    %cst_15 = arith.constant dense<0.000000e+00> : vector<16x24xf32>
    %25 = tpu.matmul %23, %24, %cst_15 {dimension_numbers = #tpu.dot_dimension_numbers<[1], [1], [0], [0], [0, 0, 1, 0], [], []>} : vector<16x64xbf16>, vector<24x64xbf16>, vector<16x24xf32> -> vector<16x24xf32>
    %cst_16 = arith.constant dense<0xFF800000> : vector<16xf32>
    %26 = vector.multi_reduction <maximumf>, %25, %cst_16 [1] : vector<16x24xf32> to vector<16xf32>
    %27 = vector.shape_cast %26 : vector<16xf32> to vector<16x1xf32>
    %28 = vector.broadcast %27 : vector<16x1xf32> to vector<16x24xf32>
    %29 = arith.subf %25, %28 : vector<16x24xf32>
    %30 = math.exp %29 : vector<16x24xf32>
    %cst_17 = arith.constant dense<0.000000e+00> : vector<16xf32>
    %31 = vector.multi_reduction <add>, %30, %cst_17 [1] : vector<16x24xf32> to vector<16xf32>
    %32 = vector.shape_cast %31 : vector<16xf32> to vector<16x1xf32>
    %33 = arith.truncf %30 : vector<16x24xf32> to vector<16x24xbf16>
    %34 = vector.extract_strided_slice %3 {offsets = [0, 64], sizes = [24, 64], strides = [1, 1]} : vector<24x128xbf16> to vector<24x64xbf16>
    %cst_18 = arith.constant dense<0.000000e+00> : vector<16x64xf32>
    %35 = tpu.matmul %33, %34, %cst_18 {dimension_numbers = #tpu.dot_dimension_numbers<[1], [0], [0], [1], [0, 0, 1, 1], [], []>} : vector<16x24xbf16>, vector<24x64xbf16>, vector<16x64xf32> -> vector<16x64xf32>
    %36 = tpu.reciprocal %32 : vector<16x1xf32> -> vector<16x1xf32>
    %37 = vector.broadcast %36 : vector<16x1xf32> to vector<16x64xf32>
    %38 = arith.mulf %35, %37 : vector<16x64xf32>
    %c0_19 = arith.constant 0 : index
    %c64_20 = arith.constant 64 : index
    %39 = vector.load %arg8[%c0_19, %c64_20] : memref<16x128xf32, #tpu.memory_space<vmem>>, vector<16x64xf32>
    tpu.vector_store %arg8[%c0_19, %c64_20], %38 {strides = array<i32>} : memref<16x128xf32, #tpu.memory_space<vmem>>, vector<16x64xf32>,
    %c0_21 = arith.constant 0 : index
    %c0_22 = arith.constant 0 : index
    %40 = vector.load %arg8[%c0_21, %c0_22] : memref<16x128xf32, #tpu.memory_space<vmem>>, vector<16x128xf32>
    %41 = math.absf %40 : vector<16x128xf32>
    %cst_23 = arith.constant dense<0xFF800000> : vector<16xf32>
    %42 = vector.multi_reduction <maximumf>, %41, %cst_23 [1] : vector<16x128xf32> to vector<16xf32>
    %43 = vector.shape_cast %42 : vector<16xf32> to vector<16x1xf32>
    %cst_24 = arith.constant 0.00787401571 : f32
    %44 = vector.broadcast %cst_24 : f32 to vector<16x1xf32>
    %45 = arith.mulf %43, %44 : vector<16x1xf32>
    %cst_25 = arith.constant 0.000000e+00 : f32
    %46 = vector.broadcast %cst_25 : f32 to vector<16x1xf32>
    %47 = arith.cmpf ogt, %45, %46 : vector<16x1xf32>
    %cst_26 = arith.constant 1.000000e+00 : f32
    %48 = vector.broadcast %cst_26 : f32 to vector<16x1xf32>
    %49 = arith.select %47, %45, %48 : vector<16x1xi1>, vector<16x1xf32>
    %50 = tpu.reciprocal %49 : vector<16x1xf32> -> vector<16x1xf32>
    %51 = vector.broadcast %50 : vector<16x1xf32> to vector<16x128xf32>
    %52 = arith.mulf %40, %51 : vector<16x128xf32>
    %53 = math.roundeven %52 : vector<16x128xf32>
    %cst_27 = arith.constant -1.270000e+02 : f32
    %cst_28 = arith.constant 1.270000e+02 : f32
    %54 = vector.broadcast %cst_27 : f32 to vector<16x128xf32>
    %55 = arith.maximumf %54, %53 : vector<16x128xf32>
    %56 = vector.broadcast %cst_28 : f32 to vector<16x128xf32>
    %57 = arith.minimumf %56, %55 : vector<16x128xf32>
    %58 = arith.fptosi %57 : vector<16x128xf32> to vector<16x128xi8>
    %c0_29 = arith.constant 0 : index
    %c0_30 = arith.constant 0 : index
    %c0_31 = arith.constant 0 : index
    %59 = vector.load %arg6[%c0_29, %c0_30, %c0_31] : memref<1x16x128xi8, #tpu.memory_space<vmem>>, vector<1x16x128xi8>
    %60 = vector.shape_cast %59 : vector<1x16x128xi8> to vector<16x128xi8>
    %61 = vector.shape_cast %58 : vector<16x128xi8> to vector<1x16x128xi8>
    tpu.vector_store %arg6[%c0_29, %c0_30, %c0_31], %61 {strides = array<i32>} : memref<1x16x128xi8, #tpu.memory_space<vmem>>, vector<1x16x128xi8>,
    %c0_32 = arith.constant 0 : index
    %c0_33 = arith.constant 0 : index
    %c0_34 = arith.constant 0 : index
    %62 = vector.load %arg7[%c0_32, %c0_33, %c0_34] : memref<1x16x1xf32, #tpu.memory_space<vmem>>, vector<1x16x1xf32>
    %63 = vector.shape_cast %62 : vector<1x16x1xf32> to vector<16x1xf32>
    %64 = vector.shape_cast %45 : vector<16x1xf32> to vector<1x16x1xf32>
    tpu.vector_store %arg7[%c0_32, %c0_33, %c0_34], %64 {strides = array<i32>} : memref<1x16x1xf32, #tpu.memory_space<vmem>>, vector<1x16x1xf32>,
    return
  }
  func.func @transform_0(%arg0: i32, %arg1: i32, %arg2: i32) -> (i32, i32, i32) {
    %c0_i32 = arith.constant 0 : i32
    %c0_i32_0 = arith.constant 0 : i32
    return %arg0, %arg1, %c0_i32 : i32, i32, i32
  }
  func.func @transform_1(%arg0: i32, %arg1: i32, %arg2: i32) -> (i32, i32, i32) {
    %c0_i32 = arith.constant 0 : i32
    %c0_i32_0 = arith.constant 0 : i32
    return %arg0, %arg2, %c0_i32 : i32, i32, i32
  }
  func.func @transform_2(%arg0: i32, %arg1: i32, %arg2: i32) -> (i32, i32, i32) {
    %c0_i32 = arith.constant 0 : i32
    %c0_i32_0 = arith.constant 0 : i32
    return %arg0, %arg2, %c0_i32 : i32, i32, i32
  }
  func.func @transform_3(%arg0: i32, %arg1: i32, %arg2: i32) -> (i32, i32, i32) {
    %c0_i32 = arith.constant 0 : i32
    %c0_i32_0 = arith.constant 0 : i32
    return %arg0, %arg1, %c0_i32 : i32, i32, i32
  }
  func.func @transform_4(%arg0: i32, %arg1: i32, %arg2: i32) -> (i32, i32, i32) {
    %c0_i32 = arith.constant 0 : i32
    %c0_i32_0 = arith.constant 0 : i32
    return %arg0, %arg1, %c0_i32 : i32, i32, i32
  }
}

module attributes {stable_mosaic.version = 11 : i64} {
  func.func @kernel(%arg0: i32, %arg1: i32, %arg2: memref<1x16x128xbf16, #tpu.memory_space<vmem>>, %arg3: memref<1x16x128xi8, #tpu.memory_space<vmem>>, %arg4: memref<1x16x1xf32, #tpu.memory_space<vmem>>) attributes {dimension_semantics = [#tpu.dimension_semantics<parallel>, #tpu.dimension_semantics<parallel>], iteration_bounds = array<i64: 2, 1>, scalar_prefetch = 0 : i64, scratch_operands = 0 : i64, tpu.core_type = #tpu.core_type<tc>, window_params = [{transform_indices = @transform_0, window_bounds = array<i64: 1, 16, 128>}, {transform_indices = @transform_1, window_bounds = array<i64: 1, 16, 128>}, {transform_indices = @transform_2, window_bounds = array<i64: 1, 16, 1>}]} {
    %c0 = arith.constant 0 : index
    %c0_0 = arith.constant 0 : index
    %c0_1 = arith.constant 0 : index
    %0 = vector.load %arg2[%c0, %c0_0, %c0_1] : memref<1x16x128xbf16, #tpu.memory_space<vmem>>, vector<1x16x128xbf16>
    %1 = vector.shape_cast %0 : vector<1x16x128xbf16> to vector<16x128xbf16>
    %2 = arith.extf %1 : vector<16x128xbf16> to vector<16x128xf32>
    %cst = arith.constant dense<0.000000e+00> : vector<16xf32>
    %3 = vector.multi_reduction <add>, %2, %cst [1] : vector<16x128xf32> to vector<16xf32>
    %4 = vector.shape_cast %3 : vector<16xf32> to vector<16x1xf32>
    %cst_2 = arith.constant 1.280000e+02 : f32
    %5 = vector.broadcast %cst_2 : f32 to vector<16x1xf32>
    %6 = arith.divf %4, %5 : vector<16x1xf32>
    %7 = arith.mulf %2, %2 : vector<16x128xf32>
    %cst_3 = arith.constant dense<0.000000e+00> : vector<16xf32>
    %8 = vector.multi_reduction <add>, %7, %cst_3 [1] : vector<16x128xf32> to vector<16xf32>
    %9 = vector.shape_cast %8 : vector<16xf32> to vector<16x1xf32>
    %cst_4 = arith.constant 1.280000e+02 : f32
    %10 = vector.broadcast %cst_4 : f32 to vector<16x1xf32>
    %11 = arith.divf %9, %10 : vector<16x1xf32>
    %12 = arith.mulf %6, %6 : vector<16x1xf32>
    %13 = arith.subf %11, %12 : vector<16x1xf32>
    %cst_5 = arith.constant 0.000000e+00 : f32
    %14 = vector.broadcast %cst_5 : f32 to vector<16x1xf32>
    %15 = arith.maximumf %13, %14 : vector<16x1xf32>
    %16 = vector.broadcast %6 : vector<16x1xf32> to vector<16x128xf32>
    %17 = arith.subf %2, %16 : vector<16x128xf32>
    %cst_6 = arith.constant 9.99999974E-6 : f32
    %18 = vector.broadcast %cst_6 : f32 to vector<16x1xf32>
    %19 = arith.addf %15, %18 : vector<16x1xf32>
    %20 = math.rsqrt %19 : vector<16x1xf32>
    %21 = vector.broadcast %20 : vector<16x1xf32> to vector<16x128xf32>
    %22 = arith.mulf %17, %21 : vector<16x128xf32>
    %23 = math.absf %22 : vector<16x128xf32>
    %cst_7 = arith.constant dense<0xFF800000> : vector<16xf32>
    %24 = vector.multi_reduction <maximumf>, %23, %cst_7 [1] : vector<16x128xf32> to vector<16xf32>
    %25 = vector.shape_cast %24 : vector<16xf32> to vector<16x1xf32>
    %cst_8 = arith.constant 0.00787401571 : f32
    %26 = vector.broadcast %cst_8 : f32 to vector<16x1xf32>
    %27 = arith.mulf %25, %26 : vector<16x1xf32>
    %cst_9 = arith.constant 0.000000e+00 : f32
    %28 = vector.broadcast %cst_9 : f32 to vector<16x1xf32>
    %29 = arith.cmpf ogt, %27, %28 : vector<16x1xf32>
    %cst_10 = arith.constant 1.000000e+00 : f32
    %30 = vector.broadcast %cst_10 : f32 to vector<16x1xf32>
    %31 = arith.select %29, %27, %30 : vector<16x1xi1>, vector<16x1xf32>
    %32 = tpu.reciprocal %31 : vector<16x1xf32> -> vector<16x1xf32>
    %33 = vector.broadcast %32 : vector<16x1xf32> to vector<16x128xf32>
    %34 = arith.mulf %22, %33 : vector<16x128xf32>
    %35 = math.roundeven %34 : vector<16x128xf32>
    %cst_11 = arith.constant -1.270000e+02 : f32
    %cst_12 = arith.constant 1.270000e+02 : f32
    %36 = vector.broadcast %cst_11 : f32 to vector<16x128xf32>
    %37 = arith.maximumf %36, %35 : vector<16x128xf32>
    %38 = vector.broadcast %cst_12 : f32 to vector<16x128xf32>
    %39 = arith.minimumf %38, %37 : vector<16x128xf32>
    %40 = arith.fptosi %39 : vector<16x128xf32> to vector<16x128xi8>
    %c0_13 = arith.constant 0 : index
    %c0_14 = arith.constant 0 : index
    %c0_15 = arith.constant 0 : index
    %41 = vector.load %arg3[%c0_13, %c0_14, %c0_15] : memref<1x16x128xi8, #tpu.memory_space<vmem>>, vector<1x16x128xi8>
    %42 = vector.shape_cast %41 : vector<1x16x128xi8> to vector<16x128xi8>
    %43 = vector.shape_cast %40 : vector<16x128xi8> to vector<1x16x128xi8>
    tpu.vector_store %arg3[%c0_13, %c0_14, %c0_15], %43 {strides = array<i32>} : memref<1x16x128xi8, #tpu.memory_space<vmem>>, vector<1x16x128xi8>,
    %c0_16 = arith.constant 0 : index
    %c0_17 = arith.constant 0 : index
    %c0_18 = arith.constant 0 : index
    %44 = vector.load %arg4[%c0_16, %c0_17, %c0_18] : memref<1x16x1xf32, #tpu.memory_space<vmem>>, vector<1x16x1xf32>
    %45 = vector.shape_cast %44 : vector<1x16x1xf32> to vector<16x1xf32>
    %46 = vector.shape_cast %27 : vector<16x1xf32> to vector<1x16x1xf32>
    tpu.vector_store %arg4[%c0_16, %c0_17, %c0_18], %46 {strides = array<i32>} : memref<1x16x1xf32, #tpu.memory_space<vmem>>, vector<1x16x1xf32>,
    return
  }
  func.func @transform_0(%arg0: i32, %arg1: i32) -> (i32, i32, i32) {
    %c0_i32 = arith.constant 0 : i32
    %c0_i32_0 = arith.constant 0 : i32
    return %arg0, %arg1, %c0_i32 : i32, i32, i32
  }
  func.func @transform_1(%arg0: i32, %arg1: i32) -> (i32, i32, i32) {
    %c0_i32 = arith.constant 0 : i32
    %c0_i32_0 = arith.constant 0 : i32
    return %arg0, %arg1, %c0_i32 : i32, i32, i32
  }
  func.func @transform_2(%arg0: i32, %arg1: i32) -> (i32, i32, i32) {
    %c0_i32 = arith.constant 0 : i32
    %c0_i32_0 = arith.constant 0 : i32
    return %arg0, %arg1, %c0_i32 : i32, i32, i32
  }
}

module attributes {stable_mosaic.version = 11 : i64} {
  func.func @kernel(%arg0: i32, %arg1: i32, %arg2: i32, %arg3: memref<32x128xi8, #tpu.memory_space<vmem>>, %arg4: memref<32x1xf32, #tpu.memory_space<vmem>>, %arg5: memref<128x128xi8, #tpu.memory_space<vmem>>, %arg6: memref<1x128xf32, #tpu.memory_space<vmem>>, %arg7: memref<1x128xf32, #tpu.memory_space<vmem>>, %arg8: memref<32x128xbf16, #tpu.memory_space<vmem>>, %arg9: memref<32x128xbf16, #tpu.memory_space<vmem>>, %arg10: memref<32x128xf32, #tpu.memory_space<vmem>>) attributes {dimension_semantics = [#tpu.dimension_semantics<parallel>, #tpu.dimension_semantics<parallel>, #tpu.dimension_semantics<arbitrary>], iteration_bounds = array<i64: 1, 1, 1>, scalar_prefetch = 0 : i64, scratch_operands = 1 : i64, tpu.core_type = #tpu.core_type<tc>, window_params = [{transform_indices = @transform_0, window_bounds = array<i64: 32, 128>}, {transform_indices = @transform_1, window_bounds = array<i64: 32, 1>}, {transform_indices = @transform_2, window_bounds = array<i64: 128, 128>}, {transform_indices = @transform_3, window_bounds = array<i64: 1, 128>}, {transform_indices = @transform_4, window_bounds = array<i64: 1, 128>}, {transform_indices = @transform_5, window_bounds = array<i64: 32, 128>}, {transform_indices = @transform_6, window_bounds = array<i64: 32, 128>}]} {
    %c0_i32 = arith.constant 0 : i32
    %0 = arith.cmpi eq, %arg2, %c0_i32 : i32
    %1 = arith.extui %0 : i1 to i32
    %c0_i32_0 = arith.constant 0 : i32
    %2 = arith.cmpi ne, %1, %c0_i32_0 : i32
    scf.if %2 {
      %cst_10 = arith.constant 0.000000e+00 : f32
      %14 = vector.broadcast %cst_10 : f32 to vector<32x128xf32>
      %c0_11 = arith.constant 0 : index
      %c0_12 = arith.constant 0 : index
      %15 = vector.load %arg10[%c0_11, %c0_12] : memref<32x128xf32, #tpu.memory_space<vmem>>, vector<32x128xf32>
      tpu.vector_store %arg10[%c0_11, %c0_12], %14 {strides = array<i32>} : memref<32x128xf32, #tpu.memory_space<vmem>>, vector<32x128xf32>,
    } else {
    }
    %c0 = arith.constant 0 : index
    %c0_1 = arith.constant 0 : index
    %3 = vector.load %arg10[%c0, %c0_1] : memref<32x128xf32, #tpu.memory_space<vmem>>, vector<32x128xf32>
    %c0_2 = arith.constant 0 : index
    %c0_3 = arith.constant 0 : index
    %4 = vector.load %arg3[%c0_2, %c0_3] : memref<32x128xi8, #tpu.memory_space<vmem>>, vector<32x128xi8>
    %5 = arith.sitofp %4 : vector<32x128xi8> to vector<32x128xbf16>
    %c0_4 = arith.constant 0 : index
    %c0_5 = arith.constant 0 : index
    %6 = vector.load %arg5[%c0_4, %c0_5] : memref<128x128xi8, #tpu.memory_space<vmem>>, vector<128x128xi8>
    %7 = arith.sitofp %6 : vector<128x128xi8> to vector<128x128xbf16>
    %cst = arith.constant dense<0.000000e+00> : vector<32x128xf32>
    %8 = tpu.matmul %5, %7, %cst {dimension_numbers = #tpu.dot_dimension_numbers<[1], [0], [0], [1], [0, 0, 1, 1], [], []>} : vector<32x128xbf16>, vector<128x128xbf16>, vector<32x128xf32> -> vector<32x128xf32>
    %9 = arith.addf %3, %8 : vector<32x128xf32>
    %c0_6 = arith.constant 0 : index
    %c0_7 = arith.constant 0 : index
    %10 = vector.load %arg10[%c0_6, %c0_7] : memref<32x128xf32, #tpu.memory_space<vmem>>, vector<32x128xf32>
    tpu.vector_store %arg10[%c0_6, %c0_7], %9 {strides = array<i32>} : memref<32x128xf32, #tpu.memory_space<vmem>>, vector<32x128xf32>,
    %c0_i32_8 = arith.constant 0 : i32
    %11 = arith.cmpi eq, %arg2, %c0_i32_8 : i32
    %12 = arith.extui %11 : i1 to i32
    %c0_i32_9 = arith.constant 0 : i32
    %13 = arith.cmpi ne, %12, %c0_i32_9 : i32
    scf.if %13 {
      %c0_10 = arith.constant 0 : index
      %c0_11 = arith.constant 0 : index
      %14 = vector.load %arg10[%c0_10, %c0_11] : memref<32x128xf32, #tpu.memory_space<vmem>>, vector<32x128xf32>
      %c0_12 = arith.constant 0 : index
      %c0_13 = arith.constant 0 : index
      %15 = vector.load %arg4[%c0_12, %c0_13] : memref<32x1xf32, #tpu.memory_space<vmem>>, vector<32x1xf32>
      %16 = vector.broadcast %15 : vector<32x1xf32> to vector<32x128xf32>
      %17 = arith.mulf %14, %16 : vector<32x128xf32>
      %c0_14 = arith.constant 0 : index
      %c0_15 = arith.constant 0 : index
      %18 = vector.load %arg6[%c0_14, %c0_15] : memref<1x128xf32, #tpu.memory_space<vmem>>, vector<1x128xf32>
      %19 = vector.broadcast %18 : vector<1x128xf32> to vector<32x128xf32>
      %20 = arith.mulf %17, %19 : vector<32x128xf32>
      %c0_16 = arith.constant 0 : index
      %c0_17 = arith.constant 0 : index
      %21 = vector.load %arg7[%c0_16, %c0_17] : memref<1x128xf32, #tpu.memory_space<vmem>>, vector<1x128xf32>
      %22 = vector.broadcast %21 : vector<1x128xf32> to vector<32x128xf32>
      %23 = arith.addf %20, %22 : vector<32x128xf32>
      %c0_18 = arith.constant 0 : index
      %c0_19 = arith.constant 0 : index
      %24 = vector.load %arg8[%c0_18, %c0_19] : memref<32x128xbf16, #tpu.memory_space<vmem>>, vector<32x128xbf16>
      %25 = arith.extf %24 : vector<32x128xbf16> to vector<32x128xf32>
      %26 = arith.addf %23, %25 : vector<32x128xf32>
      %27 = arith.truncf %26 : vector<32x128xf32> to vector<32x128xbf16>
      %c0_20 = arith.constant 0 : index
      %c0_21 = arith.constant 0 : index
      %28 = vector.load %arg9[%c0_20, %c0_21] : memref<32x128xbf16, #tpu.memory_space<vmem>>, vector<32x128xbf16>
      tpu.vector_store %arg9[%c0_20, %c0_21], %27 {strides = array<i32>} : memref<32x128xbf16, #tpu.memory_space<vmem>>, vector<32x128xbf16>,
    } else {
    }
    return
  }
  func.func @transform_0(%arg0: i32, %arg1: i32, %arg2: i32) -> (i32, i32) {
    %c0_i32 = arith.constant 0 : i32
    return %arg0, %arg2 : i32, i32
  }
  func.func @transform_1(%arg0: i32, %arg1: i32, %arg2: i32) -> (i32, i32) {
    %c0_i32 = arith.constant 0 : i32
    %c0_i32_0 = arith.constant 0 : i32
    return %arg0, %c0_i32 : i32, i32
  }
  func.func @transform_2(%arg0: i32, %arg1: i32, %arg2: i32) -> (i32, i32) {
    %c0_i32 = arith.constant 0 : i32
    return %arg2, %arg1 : i32, i32
  }
  func.func @transform_3(%arg0: i32, %arg1: i32, %arg2: i32) -> (i32, i32) {
    %c0_i32 = arith.constant 0 : i32
    %c0_i32_0 = arith.constant 0 : i32
    return %c0_i32, %arg1 : i32, i32
  }
  func.func @transform_4(%arg0: i32, %arg1: i32, %arg2: i32) -> (i32, i32) {
    %c0_i32 = arith.constant 0 : i32
    %c0_i32_0 = arith.constant 0 : i32
    return %c0_i32, %arg1 : i32, i32
  }
  func.func @transform_5(%arg0: i32, %arg1: i32, %arg2: i32) -> (i32, i32) {
    %c0_i32 = arith.constant 0 : i32
    return %arg0, %arg1 : i32, i32
  }
  func.func @transform_6(%arg0: i32, %arg1: i32, %arg2: i32) -> (i32, i32) {
    %c0_i32 = arith.constant 0 : i32
    return %arg0, %arg1 : i32, i32
  }
}

module attributes {stable_mosaic.version = 11 : i64} {
  func.func @kernel(%arg0: i32, %arg1: i32, %arg2: i32, %arg3: memref<32x128xi8, #tpu.memory_space<vmem>>, %arg4: memref<32x1xf32, #tpu.memory_space<vmem>>, %arg5: memref<128x256xi8, #tpu.memory_space<vmem>>, %arg6: memref<1x256xf32, #tpu.memory_space<vmem>>, %arg7: memref<1x256xf32, #tpu.memory_space<vmem>>, %arg8: memref<32x256xi8, #tpu.memory_space<vmem>>, %arg9: memref<32x1xf32, #tpu.memory_space<vmem>>, %arg10: memref<32x256xf32, #tpu.memory_space<vmem>>) attributes {dimension_semantics = [#tpu.dimension_semantics<parallel>, #tpu.dimension_semantics<parallel>, #tpu.dimension_semantics<arbitrary>], iteration_bounds = array<i64: 1, 1, 1>, scalar_prefetch = 0 : i64, scratch_operands = 1 : i64, tpu.core_type = #tpu.core_type<tc>, window_params = [{transform_indices = @transform_0, window_bounds = array<i64: 32, 128>}, {transform_indices = @transform_1, window_bounds = array<i64: 32, 1>}, {transform_indices = @transform_2, window_bounds = array<i64: 128, 256>}, {transform_indices = @transform_3, window_bounds = array<i64: 1, 256>}, {transform_indices = @transform_4, window_bounds = array<i64: 1, 256>}, {transform_indices = @transform_5, window_bounds = array<i64: 32, 256>}, {transform_indices = @transform_6, window_bounds = array<i64: 32, 1>}]} {
    %c0_i32 = arith.constant 0 : i32
    %0 = arith.cmpi eq, %arg2, %c0_i32 : i32
    %1 = arith.extui %0 : i1 to i32
    %c0_i32_0 = arith.constant 0 : i32
    %2 = arith.cmpi ne, %1, %c0_i32_0 : i32
    scf.if %2 {
      %cst_10 = arith.constant 0.000000e+00 : f32
      %14 = vector.broadcast %cst_10 : f32 to vector<32x256xf32>
      %c0_11 = arith.constant 0 : index
      %c0_12 = arith.constant 0 : index
      %15 = vector.load %arg10[%c0_11, %c0_12] : memref<32x256xf32, #tpu.memory_space<vmem>>, vector<32x256xf32>
      tpu.vector_store %arg10[%c0_11, %c0_12], %14 {strides = array<i32>} : memref<32x256xf32, #tpu.memory_space<vmem>>, vector<32x256xf32>,
    } else {
    }
    %c0 = arith.constant 0 : index
    %c0_1 = arith.constant 0 : index
    %3 = vector.load %arg10[%c0, %c0_1] : memref<32x256xf32, #tpu.memory_space<vmem>>, vector<32x256xf32>
    %c0_2 = arith.constant 0 : index
    %c0_3 = arith.constant 0 : index
    %4 = vector.load %arg3[%c0_2, %c0_3] : memref<32x128xi8, #tpu.memory_space<vmem>>, vector<32x128xi8>
    %5 = arith.sitofp %4 : vector<32x128xi8> to vector<32x128xbf16>
    %c0_4 = arith.constant 0 : index
    %c0_5 = arith.constant 0 : index
    %6 = vector.load %arg5[%c0_4, %c0_5] : memref<128x256xi8, #tpu.memory_space<vmem>>, vector<128x256xi8>
    %7 = arith.sitofp %6 : vector<128x256xi8> to vector<128x256xbf16>
    %cst = arith.constant dense<0.000000e+00> : vector<32x256xf32>
    %8 = tpu.matmul %5, %7, %cst {dimension_numbers = #tpu.dot_dimension_numbers<[1], [0], [0], [1], [0, 0, 1, 1], [], []>} : vector<32x128xbf16>, vector<128x256xbf16>, vector<32x256xf32> -> vector<32x256xf32>
    %9 = arith.addf %3, %8 : vector<32x256xf32>
    %c0_6 = arith.constant 0 : index
    %c0_7 = arith.constant 0 : index
    %10 = vector.load %arg10[%c0_6, %c0_7] : memref<32x256xf32, #tpu.memory_space<vmem>>, vector<32x256xf32>
    tpu.vector_store %arg10[%c0_6, %c0_7], %9 {strides = array<i32>} : memref<32x256xf32, #tpu.memory_space<vmem>>, vector<32x256xf32>,
    %c0_i32_8 = arith.constant 0 : i32
    %11 = arith.cmpi eq, %arg2, %c0_i32_8 : i32
    %12 = arith.extui %11 : i1 to i32
    %c0_i32_9 = arith.constant 0 : i32
    %13 = arith.cmpi ne, %12, %c0_i32_9 : i32
    scf.if %13 {
      %c0_10 = arith.constant 0 : index
      %c0_11 = arith.constant 0 : index
      %14 = vector.load %arg10[%c0_10, %c0_11] : memref<32x256xf32, #tpu.memory_space<vmem>>, vector<32x256xf32>
      %c0_12 = arith.constant 0 : index
      %c0_13 = arith.constant 0 : index
      %15 = vector.load %arg4[%c0_12, %c0_13] : memref<32x1xf32, #tpu.memory_space<vmem>>, vector<32x1xf32>
      %16 = vector.broadcast %15 : vector<32x1xf32> to vector<32x256xf32>
      %17 = arith.mulf %14, %16 : vector<32x256xf32>
      %c0_14 = arith.constant 0 : index
      %c0_15 = arith.constant 0 : index
      %18 = vector.load %arg6[%c0_14, %c0_15] : memref<1x256xf32, #tpu.memory_space<vmem>>, vector<1x256xf32>
      %19 = vector.broadcast %18 : vector<1x256xf32> to vector<32x256xf32>
      %20 = arith.mulf %17, %19 : vector<32x256xf32>
      %c0_16 = arith.constant 0 : index
      %c0_17 = arith.constant 0 : index
      %21 = vector.load %arg7[%c0_16, %c0_17] : memref<1x256xf32, #tpu.memory_space<vmem>>, vector<1x256xf32>
      %22 = vector.broadcast %21 : vector<1x256xf32> to vector<32x256xf32>
      %23 = arith.addf %20, %22 : vector<32x256xf32>
      %24 = arith.mulf %23, %23 : vector<32x256xf32>
      %25 = arith.mulf %23, %24 : vector<32x256xf32>
      %cst_18 = arith.constant 4.471500e-02 : f32
      %26 = vector.broadcast %cst_18 : f32 to vector<32x256xf32>
      %27 = arith.mulf %26, %25 : vector<32x256xf32>
      %28 = arith.addf %23, %27 : vector<32x256xf32>
      %cst_19 = arith.constant 0.797884583 : f32
      %29 = vector.broadcast %cst_19 : f32 to vector<32x256xf32>
      %30 = arith.mulf %29, %28 : vector<32x256xf32>
      %31 = math.tanh %30 : vector<32x256xf32>
      %cst_20 = arith.constant 1.000000e+00 : f32
      %32 = vector.broadcast %cst_20 : f32 to vector<32x256xf32>
      %33 = arith.addf %32, %31 : vector<32x256xf32>
      %cst_21 = arith.constant 5.000000e-01 : f32
      %34 = vector.broadcast %cst_21 : f32 to vector<32x256xf32>
      %35 = arith.mulf %34, %33 : vector<32x256xf32>
      %36 = arith.mulf %23, %35 : vector<32x256xf32>
      %37 = math.absf %36 : vector<32x256xf32>
      %cst_22 = arith.constant dense<0xFF800000> : vector<32xf32>
      %38 = vector.multi_reduction <maximumf>, %37, %cst_22 [1] : vector<32x256xf32> to vector<32xf32>
      %39 = vector.shape_cast %38 : vector<32xf32> to vector<32x1xf32>
      %cst_23 = arith.constant 0.00787401571 : f32
      %40 = vector.broadcast %cst_23 : f32 to vector<32x1xf32>
      %41 = arith.mulf %39, %40 : vector<32x1xf32>
      %cst_24 = arith.constant 0.000000e+00 : f32
      %42 = vector.broadcast %cst_24 : f32 to vector<32x1xf32>
      %43 = arith.cmpf ogt, %41, %42 : vector<32x1xf32>
      %cst_25 = arith.constant 1.000000e+00 : f32
      %44 = vector.broadcast %cst_25 : f32 to vector<32x1xf32>
      %45 = arith.select %43, %41, %44 : vector<32x1xi1>, vector<32x1xf32>
      %46 = tpu.reciprocal %45 : vector<32x1xf32> -> vector<32x1xf32>
      %47 = vector.broadcast %46 : vector<32x1xf32> to vector<32x256xf32>
      %48 = arith.mulf %36, %47 : vector<32x256xf32>
      %49 = math.roundeven %48 : vector<32x256xf32>
      %cst_26 = arith.constant -1.270000e+02 : f32
      %cst_27 = arith.constant 1.270000e+02 : f32
      %50 = vector.broadcast %cst_26 : f32 to vector<32x256xf32>
      %51 = arith.maximumf %50, %49 : vector<32x256xf32>
      %52 = vector.broadcast %cst_27 : f32 to vector<32x256xf32>
      %53 = arith.minimumf %52, %51 : vector<32x256xf32>
      %54 = arith.fptosi %53 : vector<32x256xf32> to vector<32x256xi8>
      %c0_28 = arith.constant 0 : index
      %c0_29 = arith.constant 0 : index
      %55 = vector.load %arg8[%c0_28, %c0_29] : memref<32x256xi8, #tpu.memory_space<vmem>>, vector<32x256xi8>
      tpu.vector_store %arg8[%c0_28, %c0_29], %54 {strides = array<i32>} : memref<32x256xi8, #tpu.memory_space<vmem>>, vector<32x256xi8>,
      %c0_30 = arith.constant 0 : index
      %c0_31 = arith.constant 0 : index
      %56 = vector.load %arg9[%c0_30, %c0_31] : memref<32x1xf32, #tpu.memory_space<vmem>>, vector<32x1xf32>
      tpu.vector_store %arg9[%c0_30, %c0_31], %41 {strides = array<i32>} : memref<32x1xf32, #tpu.memory_space<vmem>>, vector<32x1xf32>,
    } else {
    }
    return
  }
  func.func @transform_0(%arg0: i32, %arg1: i32, %arg2: i32) -> (i32, i32) {
    %c0_i32 = arith.constant 0 : i32
    return %arg0, %arg2 : i32, i32
  }
  func.func @transform_1(%arg0: i32, %arg1: i32, %arg2: i32) -> (i32, i32) {
    %c0_i32 = arith.constant 0 : i32
    %c0_i32_0 = arith.constant 0 : i32
    return %arg0, %c0_i32 : i32, i32
  }
  func.func @transform_2(%arg0: i32, %arg1: i32, %arg2: i32) -> (i32, i32) {
    %c0_i32 = arith.constant 0 : i32
    return %arg2, %arg1 : i32, i32
  }
  func.func @transform_3(%arg0: i32, %arg1: i32, %arg2: i32) -> (i32, i32) {
    %c0_i32 = arith.constant 0 : i32
    %c0_i32_0 = arith.constant 0 : i32
    return %c0_i32, %arg1 : i32, i32
  }
  func.func @transform_4(%arg0: i32, %arg1: i32, %arg2: i32) -> (i32, i32) {
    %c0_i32 = arith.constant 0 : i32
    %c0_i32_0 = arith.constant 0 : i32
    return %c0_i32, %arg1 : i32, i32
  }
  func.func @transform_5(%arg0: i32, %arg1: i32, %arg2: i32) -> (i32, i32) {
    %c0_i32 = arith.constant 0 : i32
    %c0_i32_0 = arith.constant 0 : i32
    return %arg0, %c0_i32 : i32, i32
  }
  func.func @transform_6(%arg0: i32, %arg1: i32, %arg2: i32) -> (i32, i32) {
    %c0_i32 = arith.constant 0 : i32
    %c0_i32_0 = arith.constant 0 : i32
    return %arg0, %c0_i32 : i32, i32
  }
}

module attributes {stable_mosaic.version = 11 : i64} {
  func.func @kernel(%arg0: i32, %arg1: i32, %arg2: i32, %arg3: memref<1x16x128xbf16, #tpu.memory_space<vmem>>, %arg4: memref<1x16x128xbf16, #tpu.memory_space<vmem>>, %arg5: memref<1x16x128xbf16, #tpu.memory_space<vmem>>, %arg6: memref<1x16x128xi8, #tpu.memory_space<vmem>>, %arg7: memref<1x16x1xf32, #tpu.memory_space<vmem>>, %arg8: memref<16x128xf32, #tpu.memory_space<vmem>>) attributes {dimension_semantics = [#tpu.dimension_semantics<parallel>, #tpu.dimension_semantics<parallel>, #tpu.dimension_semantics<arbitrary>], iteration_bounds = array<i64: 2, 1, 1>, scalar_prefetch = 0 : i64, scratch_operands = 1 : i64, tpu.core_type = #tpu.core_type<tc>, window_params = [{transform_indices = @transform_0, window_bounds = array<i64: 1, 16, 128>}, {transform_indices = @transform_1, window_bounds = array<i64: 1, 16, 128>}, {transform_indices = @transform_2, window_bounds = array<i64: 1, 16, 128>}, {transform_indices = @transform_3, window_bounds = array<i64: 1, 16, 128>}, {transform_indices = @transform_4, window_bounds = array<i64: 1, 16, 1>}]} {
    %c0 = arith.constant 0 : index
    %c0_0 = arith.constant 0 : index
    %c0_1 = arith.constant 0 : index
    %0 = vector.load %arg4[%c0, %c0_0, %c0_1] : memref<1x16x128xbf16, #tpu.memory_space<vmem>>, vector<1x16x128xbf16>
    %1 = vector.shape_cast %0 : vector<1x16x128xbf16> to vector<16x128xbf16>
    %c0_2 = arith.constant 0 : index
    %c0_3 = arith.constant 0 : index
    %c0_4 = arith.constant 0 : index
    %2 = vector.load %arg5[%c0_2, %c0_3, %c0_4] : memref<1x16x128xbf16, #tpu.memory_space<vmem>>, vector<1x16x128xbf16>
    %3 = vector.shape_cast %2 : vector<1x16x128xbf16> to vector<16x128xbf16>
    %c0_5 = arith.constant 0 : index
    %c0_6 = arith.constant 0 : index
    %c0_7 = arith.constant 0 : index
    %4 = vector.load %arg3[%c0_5, %c0_6, %c0_7] : memref<1x16x128xbf16, #tpu.memory_space<vmem>>, vector<1x16x64xbf16>
    %5 = vector.shape_cast %4 : vector<1x16x64xbf16> to vector<16x64xbf16>
    %6 = vector.extract_strided_slice %1 {offsets = [0, 0], sizes = [16, 64], strides = [1, 1]} : vector<16x128xbf16> to vector<16x64xbf16>
    %cst = arith.constant dense<0.000000e+00> : vector<16x16xf32>
    %7 = tpu.matmul %5, %6, %cst {dimension_numbers = #tpu.dot_dimension_numbers<[1], [1], [0], [0], [0, 0, 1, 0], [], []>} : vector<16x64xbf16>, vector<16x64xbf16>, vector<16x16xf32> -> vector<16x16xf32>
    %cst_8 = arith.constant dense<0xFF800000> : vector<16xf32>
    %8 = vector.multi_reduction <maximumf>, %7, %cst_8 [1] : vector<16x16xf32> to vector<16xf32>
    %9 = vector.shape_cast %8 : vector<16xf32> to vector<16x1xf32>
    %10 = vector.broadcast %9 : vector<16x1xf32> to vector<16x16xf32>
    %11 = arith.subf %7, %10 : vector<16x16xf32>
    %12 = math.exp %11 : vector<16x16xf32>
    %cst_9 = arith.constant dense<0.000000e+00> : vector<16xf32>
    %13 = vector.multi_reduction <add>, %12, %cst_9 [1] : vector<16x16xf32> to vector<16xf32>
    %14 = vector.shape_cast %13 : vector<16xf32> to vector<16x1xf32>
    %15 = arith.truncf %12 : vector<16x16xf32> to vector<16x16xbf16>
    %16 = vector.extract_strided_slice %3 {offsets = [0, 0], sizes = [16, 64], strides = [1, 1]} : vector<16x128xbf16> to vector<16x64xbf16>
    %cst_10 = arith.constant dense<0.000000e+00> : vector<16x64xf32>
    %17 = tpu.matmul %15, %16, %cst_10 {dimension_numbers = #tpu.dot_dimension_numbers<[1], [0], [0], [1], [0, 0, 1, 1], [], []>} : vector<16x16xbf16>, vector<16x64xbf16>, vector<16x64xf32> -> vector<16x64xf32>
    %18 = tpu.reciprocal %14 : vector<16x1xf32> -> vector<16x1xf32>
    %19 = vector.broadcast %18 : vector<16x1xf32> to vector<16x64xf32>
    %20 = arith.mulf %17, %19 : vector<16x64xf32>
    %c0_11 = arith.constant 0 : index
    %c0_12 = arith.constant 0 : index
    %21 = vector.load %arg8[%c0_11, %c0_12] : memref<16x128xf32, #tpu.memory_space<vmem>>, vector<16x64xf32>
    tpu.vector_store %arg8[%c0_11, %c0_12], %20 {strides = array<i32>} : memref<16x128xf32, #tpu.memory_space<vmem>>, vector<16x64xf32>,
    %c0_13 = arith.constant 0 : index
    %c0_14 = arith.constant 0 : index
    %c64 = arith.constant 64 : index
    %22 = vector.load %arg3[%c0_13, %c0_14, %c64] : memref<1x16x128xbf16, #tpu.memory_space<vmem>>, vector<1x16x64xbf16>
    %23 = vector.shape_cast %22 : vector<1x16x64xbf16> to vector<16x64xbf16>
    %24 = vector.extract_strided_slice %1 {offsets = [0, 64], sizes = [16, 64], strides = [1, 1]} : vector<16x128xbf16> to vector<16x64xbf16>
    %cst_15 = arith.constant dense<0.000000e+00> : vector<16x16xf32>
    %25 = tpu.matmul %23, %24, %cst_15 {dimension_numbers = #tpu.dot_dimension_numbers<[1], [1], [0], [0], [0, 0, 1, 0], [], []>} : vector<16x64xbf16>, vector<16x64xbf16>, vector<16x16xf32> -> vector<16x16xf32>
    %cst_16 = arith.constant dense<0xFF800000> : vector<16xf32>
    %26 = vector.multi_reduction <maximumf>, %25, %cst_16 [1] : vector<16x16xf32> to vector<16xf32>
    %27 = vector.shape_cast %26 : vector<16xf32> to vector<16x1xf32>
    %28 = vector.broadcast %27 : vector<16x1xf32> to vector<16x16xf32>
    %29 = arith.subf %25, %28 : vector<16x16xf32>
    %30 = math.exp %29 : vector<16x16xf32>
    %cst_17 = arith.constant dense<0.000000e+00> : vector<16xf32>
    %31 = vector.multi_reduction <add>, %30, %cst_17 [1] : vector<16x16xf32> to vector<16xf32>
    %32 = vector.shape_cast %31 : vector<16xf32> to vector<16x1xf32>
    %33 = arith.truncf %30 : vector<16x16xf32> to vector<16x16xbf16>
    %34 = vector.extract_strided_slice %3 {offsets = [0, 64], sizes = [16, 64], strides = [1, 1]} : vector<16x128xbf16> to vector<16x64xbf16>
    %cst_18 = arith.constant dense<0.000000e+00> : vector<16x64xf32>
    %35 = tpu.matmul %33, %34, %cst_18 {dimension_numbers = #tpu.dot_dimension_numbers<[1], [0], [0], [1], [0, 0, 1, 1], [], []>} : vector<16x16xbf16>, vector<16x64xbf16>, vector<16x64xf32> -> vector<16x64xf32>
    %36 = tpu.reciprocal %32 : vector<16x1xf32> -> vector<16x1xf32>
    %37 = vector.broadcast %36 : vector<16x1xf32> to vector<16x64xf32>
    %38 = arith.mulf %35, %37 : vector<16x64xf32>
    %c0_19 = arith.constant 0 : index
    %c64_20 = arith.constant 64 : index
    %39 = vector.load %arg8[%c0_19, %c64_20] : memref<16x128xf32, #tpu.memory_space<vmem>>, vector<16x64xf32>
    tpu.vector_store %arg8[%c0_19, %c64_20], %38 {strides = array<i32>} : memref<16x128xf32, #tpu.memory_space<vmem>>, vector<16x64xf32>,
    %c0_21 = arith.constant 0 : index
    %c0_22 = arith.constant 0 : index
    %40 = vector.load %arg8[%c0_21, %c0_22] : memref<16x128xf32, #tpu.memory_space<vmem>>, vector<16x128xf32>
    %41 = math.absf %40 : vector<16x128xf32>
    %cst_23 = arith.constant dense<0xFF800000> : vector<16xf32>
    %42 = vector.multi_reduction <maximumf>, %41, %cst_23 [1] : vector<16x128xf32> to vector<16xf32>
    %43 = vector.shape_cast %42 : vector<16xf32> to vector<16x1xf32>
    %cst_24 = arith.constant 0.00787401571 : f32
    %44 = vector.broadcast %cst_24 : f32 to vector<16x1xf32>
    %45 = arith.mulf %43, %44 : vector<16x1xf32>
    %cst_25 = arith.constant 0.000000e+00 : f32
    %46 = vector.broadcast %cst_25 : f32 to vector<16x1xf32>
    %47 = arith.cmpf ogt, %45, %46 : vector<16x1xf32>
    %cst_26 = arith.constant 1.000000e+00 : f32
    %48 = vector.broadcast %cst_26 : f32 to vector<16x1xf32>
    %49 = arith.select %47, %45, %48 : vector<16x1xi1>, vector<16x1xf32>
    %50 = tpu.reciprocal %49 : vector<16x1xf32> -> vector<16x1xf32>
    %51 = vector.broadcast %50 : vector<16x1xf32> to vector<16x128xf32>
    %52 = arith.mulf %40, %51 : vector<16x128xf32>
    %53 = math.roundeven %52 : vector<16x128xf32>
    %cst_27 = arith.constant -1.270000e+02 : f32
    %cst_28 = arith.constant 1.270000e+02 : f32
    %54 = vector.broadcast %cst_27 : f32 to vector<16x128xf32>
    %55 = arith.maximumf %54, %53 : vector<16x128xf32>
    %56 = vector.broadcast %cst_28 : f32 to vector<16x128xf32>
    %57 = arith.minimumf %56, %55 : vector<16x128xf32>
    %58 = arith.fptosi %57 : vector<16x128xf32> to vector<16x128xi8>
    %c0_29 = arith.constant 0 : index
    %c0_30 = arith.constant 0 : index
    %c0_31 = arith.constant 0 : index
    %59 = vector.load %arg6[%c0_29, %c0_30, %c0_31] : memref<1x16x128xi8, #tpu.memory_space<vmem>>, vector<1x16x128xi8>
    %60 = vector.shape_cast %59 : vector<1x16x128xi8> to vector<16x128xi8>
    %61 = vector.shape_cast %58 : vector<16x128xi8> to vector<1x16x128xi8>
    tpu.vector_store %arg6[%c0_29, %c0_30, %c0_31], %61 {strides = array<i32>} : memref<1x16x128xi8, #tpu.memory_space<vmem>>, vector<1x16x128xi8>,
    %c0_32 = arith.constant 0 : index
    %c0_33 = arith.constant 0 : index
    %c0_34 = arith.constant 0 : index
    %62 = vector.load %arg7[%c0_32, %c0_33, %c0_34] : memref<1x16x1xf32, #tpu.memory_space<vmem>>, vector<1x16x1xf32>
    %63 = vector.shape_cast %62 : vector<1x16x1xf32> to vector<16x1xf32>
    %64 = vector.shape_cast %45 : vector<16x1xf32> to vector<1x16x1xf32>
    tpu.vector_store %arg7[%c0_32, %c0_33, %c0_34], %64 {strides = array<i32>} : memref<1x16x1xf32, #tpu.memory_space<vmem>>, vector<1x16x1xf32>,
    return
  }
  func.func @transform_0(%arg0: i32, %arg1: i32, %arg2: i32) -> (i32, i32, i32) {
    %c0_i32 = arith.constant 0 : i32
    %c0_i32_0 = arith.constant 0 : i32
    return %arg0, %arg1, %c0_i32 : i32, i32, i32
  }
  func.func @transform_1(%arg0: i32, %arg1: i32, %arg2: i32) -> (i32, i32, i32) {
    %c0_i32 = arith.constant 0 : i32
    %c0_i32_0 = arith.constant 0 : i32
    return %arg0, %arg2, %c0_i32 : i32, i32, i32
  }
  func.func @transform_2(%arg0: i32, %arg1: i32, %arg2: i32) -> (i32, i32, i32) {
    %c0_i32 = arith.constant 0 : i32
    %c0_i32_0 = arith.constant 0 : i32
    return %arg0, %arg2, %c0_i32 : i32, i32, i32
  }
  func.func @transform_3(%arg0: i32, %arg1: i32, %arg2: i32) -> (i32, i32, i32) {
    %c0_i32 = arith.constant 0 : i32
    %c0_i32_0 = arith.constant 0 : i32
    return %arg0, %arg1, %c0_i32 : i32, i32, i32
  }
  func.func @transform_4(%arg0: i32, %arg1: i32, %arg2: i32) -> (i32, i32, i32) {
    %c0_i32 = arith.constant 0 : i32
    %c0_i32_0 = arith.constant 0 : i32
    return %arg0, %arg1, %c0_i32 : i32, i32, i32
  }
}

module attributes {stable_mosaic.version = 11 : i64} {
  func.func @kernel(%arg0: i32, %arg1: i32, %arg2: memref<1x16x128xbf16, #tpu.memory_space<vmem>>, %arg3: memref<1x1x128xf32, #tpu.memory_space<vmem>>, %arg4: memref<1x1x128xf32, #tpu.memory_space<vmem>>, %arg5: memref<1x16x128xf32, #tpu.memory_space<vmem>>) attributes {dimension_semantics = [#tpu.dimension_semantics<parallel>, #tpu.dimension_semantics<parallel>], iteration_bounds = array<i64: 2, 1>, scalar_prefetch = 0 : i64, scratch_operands = 0 : i64, tpu.core_type = #tpu.core_type<tc>, window_params = [{transform_indices = @transform_0, window_bounds = array<i64: 1, 16, 128>}, {transform_indices = @transform_1, window_bounds = array<i64: 1, 1, 128>}, {transform_indices = @transform_2, window_bounds = array<i64: 1, 1, 128>}, {transform_indices = @transform_3, window_bounds = array<i64: 1, 16, 128>}]} {
    %c0 = arith.constant 0 : index
    %c0_0 = arith.constant 0 : index
    %c0_1 = arith.constant 0 : index
    %0 = vector.load %arg2[%c0, %c0_0, %c0_1] : memref<1x16x128xbf16, #tpu.memory_space<vmem>>, vector<1x16x128xbf16>
    %1 = vector.shape_cast %0 : vector<1x16x128xbf16> to vector<16x128xbf16>
    %2 = arith.extf %1 : vector<16x128xbf16> to vector<16x128xf32>
    %cst = arith.constant dense<0.000000e+00> : vector<16xf32>
    %3 = vector.multi_reduction <add>, %2, %cst [1] : vector<16x128xf32> to vector<16xf32>
    %4 = vector.shape_cast %3 : vector<16xf32> to vector<16x1xf32>
    %cst_2 = arith.constant 1.280000e+02 : f32
    %5 = vector.broadcast %cst_2 : f32 to vector<16x1xf32>
    %6 = arith.divf %4, %5 : vector<16x1xf32>
    %7 = arith.mulf %2, %2 : vector<16x128xf32>
    %cst_3 = arith.constant dense<0.000000e+00> : vector<16xf32>
    %8 = vector.multi_reduction <add>, %7, %cst_3 [1] : vector<16x128xf32> to vector<16xf32>
    %9 = vector.shape_cast %8 : vector<16xf32> to vector<16x1xf32>
    %cst_4 = arith.constant 1.280000e+02 : f32
    %10 = vector.broadcast %cst_4 : f32 to vector<16x1xf32>
    %11 = arith.divf %9, %10 : vector<16x1xf32>
    %12 = arith.mulf %6, %6 : vector<16x1xf32>
    %13 = arith.subf %11, %12 : vector<16x1xf32>
    %cst_5 = arith.constant 0.000000e+00 : f32
    %14 = vector.broadcast %cst_5 : f32 to vector<16x1xf32>
    %15 = arith.maximumf %13, %14 : vector<16x1xf32>
    %16 = vector.broadcast %6 : vector<16x1xf32> to vector<16x128xf32>
    %17 = arith.subf %2, %16 : vector<16x128xf32>
    %cst_6 = arith.constant 9.99999997E-7 : f32
    %18 = vector.broadcast %cst_6 : f32 to vector<16x1xf32>
    %19 = arith.addf %15, %18 : vector<16x1xf32>
    %20 = math.rsqrt %19 : vector<16x1xf32>
    %21 = vector.broadcast %20 : vector<16x1xf32> to vector<16x128xf32>
    %22 = arith.mulf %17, %21 : vector<16x128xf32>
    %c0_7 = arith.constant 0 : index
    %c0_8 = arith.constant 0 : index
    %c0_9 = arith.constant 0 : index
    %23 = vector.load %arg3[%c0_7, %c0_8, %c0_9] : memref<1x1x128xf32, #tpu.memory_space<vmem>>, vector<1x1x128xf32>
    %24 = vector.shape_cast %23 : vector<1x1x128xf32> to vector<1x128xf32>
    %cst_10 = arith.constant 1.000000e+00 : f32
    %25 = vector.broadcast %cst_10 : f32 to vector<1x128xf32>
    %26 = arith.addf %25, %24 : vector<1x128xf32>
    %27 = vector.broadcast %26 : vector<1x128xf32> to vector<16x128xf32>
    %28 = arith.mulf %22, %27 : vector<16x128xf32>
    %c0_11 = arith.constant 0 : index
    %c0_12 = arith.constant 0 : index
    %c0_13 = arith.constant 0 : index
    %29 = vector.load %arg4[%c0_11, %c0_12, %c0_13] : memref<1x1x128xf32, #tpu.memory_space<vmem>>, vector<1x1x128xf32>
    %30 = vector.shape_cast %29 : vector<1x1x128xf32> to vector<1x128xf32>
    %31 = vector.broadcast %30 : vector<1x128xf32> to vector<16x128xf32>
    %32 = arith.addf %28, %31 : vector<16x128xf32>
    %c0_14 = arith.constant 0 : index
    %c0_15 = arith.constant 0 : index
    %c0_16 = arith.constant 0 : index
    %33 = vector.load %arg5[%c0_14, %c0_15, %c0_16] : memref<1x16x128xf32, #tpu.memory_space<vmem>>, vector<1x16x128xf32>
    %34 = vector.shape_cast %33 : vector<1x16x128xf32> to vector<16x128xf32>
    %35 = vector.shape_cast %32 : vector<16x128xf32> to vector<1x16x128xf32>
    tpu.vector_store %arg5[%c0_14, %c0_15, %c0_16], %35 {strides = array<i32>} : memref<1x16x128xf32, #tpu.memory_space<vmem>>, vector<1x16x128xf32>,
    return
  }
  func.func @transform_0(%arg0: i32, %arg1: i32) -> (i32, i32, i32) {
    %c0_i32 = arith.constant 0 : i32
    %c0_i32_0 = arith.constant 0 : i32
    return %arg0, %arg1, %c0_i32 : i32, i32, i32
  }
  func.func @transform_1(%arg0: i32, %arg1: i32) -> (i32, i32, i32) {
    %c0_i32 = arith.constant 0 : i32
    %c0_i32_0 = arith.constant 0 : i32
    %c0_i32_1 = arith.constant 0 : i32
    return %arg0, %c0_i32, %c0_i32_0 : i32, i32, i32
  }
  func.func @transform_2(%arg0: i32, %arg1: i32) -> (i32, i32, i32) {
    %c0_i32 = arith.constant 0 : i32
    %c0_i32_0 = arith.constant 0 : i32
    %c0_i32_1 = arith.constant 0 : i32
    return %arg0, %c0_i32, %c0_i32_0 : i32, i32, i32
  }
  func.func @transform_3(%arg0: i32, %arg1: i32) -> (i32, i32, i32) {
    %c0_i32 = arith.constant 0 : i32
    %c0_i32_0 = arith.constant 0 : i32
    return %arg0, %arg1, %c0_i32 : i32, i32, i32
  }
}

module attributes {stable_mosaic.version = 11 : i64} {
  func.func @kernel(%arg0: i32, %arg1: i32, %arg2: i32, %arg3: memref<32x256xi8, #tpu.memory_space<vmem>>, %arg4: memref<32x1xf32, #tpu.memory_space<vmem>>, %arg5: memref<256x128xi8, #tpu.memory_space<vmem>>, %arg6: memref<1x128xf32, #tpu.memory_space<vmem>>, %arg7: memref<1x128xf32, #tpu.memory_space<vmem>>, %arg8: memref<32x128xbf16, #tpu.memory_space<vmem>>, %arg9: memref<32x128xbf16, #tpu.memory_space<vmem>>, %arg10: memref<32x128xf32, #tpu.memory_space<vmem>>) attributes {dimension_semantics = [#tpu.dimension_semantics<parallel>, #tpu.dimension_semantics<parallel>, #tpu.dimension_semantics<arbitrary>], iteration_bounds = array<i64: 1, 1, 1>, scalar_prefetch = 0 : i64, scratch_operands = 1 : i64, tpu.core_type = #tpu.core_type<tc>, window_params = [{transform_indices = @transform_0, window_bounds = array<i64: 32, 256>}, {transform_indices = @transform_1, window_bounds = array<i64: 32, 1>}, {transform_indices = @transform_2, window_bounds = array<i64: 256, 128>}, {transform_indices = @transform_3, window_bounds = array<i64: 1, 128>}, {transform_indices = @transform_4, window_bounds = array<i64: 1, 128>}, {transform_indices = @transform_5, window_bounds = array<i64: 32, 128>}, {transform_indices = @transform_6, window_bounds = array<i64: 32, 128>}]} {
    %c0_i32 = arith.constant 0 : i32
    %0 = arith.cmpi eq, %arg2, %c0_i32 : i32
    %1 = arith.extui %0 : i1 to i32
    %c0_i32_0 = arith.constant 0 : i32
    %2 = arith.cmpi ne, %1, %c0_i32_0 : i32
    scf.if %2 {
      %cst_10 = arith.constant 0.000000e+00 : f32
      %14 = vector.broadcast %cst_10 : f32 to vector<32x128xf32>
      %c0_11 = arith.constant 0 : index
      %c0_12 = arith.constant 0 : index
      %15 = vector.load %arg10[%c0_11, %c0_12] : memref<32x128xf32, #tpu.memory_space<vmem>>, vector<32x128xf32>
      tpu.vector_store %arg10[%c0_11, %c0_12], %14 {strides = array<i32>} : memref<32x128xf32, #tpu.memory_space<vmem>>, vector<32x128xf32>,
    } else {
    }
    %c0 = arith.constant 0 : index
    %c0_1 = arith.constant 0 : index
    %3 = vector.load %arg10[%c0, %c0_1] : memref<32x128xf32, #tpu.memory_space<vmem>>, vector<32x128xf32>
    %c0_2 = arith.constant 0 : index
    %c0_3 = arith.constant 0 : index
    %4 = vector.load %arg3[%c0_2, %c0_3] : memref<32x256xi8, #tpu.memory_space<vmem>>, vector<32x256xi8>
    %5 = arith.sitofp %4 : vector<32x256xi8> to vector<32x256xbf16>
    %c0_4 = arith.constant 0 : index
    %c0_5 = arith.constant 0 : index
    %6 = vector.load %arg5[%c0_4, %c0_5] : memref<256x128xi8, #tpu.memory_space<vmem>>, vector<256x128xi8>
    %7 = arith.sitofp %6 : vector<256x128xi8> to vector<256x128xbf16>
    %cst = arith.constant dense<0.000000e+00> : vector<32x128xf32>
    %8 = tpu.matmul %5, %7, %cst {dimension_numbers = #tpu.dot_dimension_numbers<[1], [0], [0], [1], [0, 0, 1, 1], [], []>} : vector<32x256xbf16>, vector<256x128xbf16>, vector<32x128xf32> -> vector<32x128xf32>
    %9 = arith.addf %3, %8 : vector<32x128xf32>
    %c0_6 = arith.constant 0 : index
    %c0_7 = arith.constant 0 : index
    %10 = vector.load %arg10[%c0_6, %c0_7] : memref<32x128xf32, #tpu.memory_space<vmem>>, vector<32x128xf32>
    tpu.vector_store %arg10[%c0_6, %c0_7], %9 {strides = array<i32>} : memref<32x128xf32, #tpu.memory_space<vmem>>, vector<32x128xf32>,
    %c0_i32_8 = arith.constant 0 : i32
    %11 = arith.cmpi eq, %arg2, %c0_i32_8 : i32
    %12 = arith.extui %11 : i1 to i32
    %c0_i32_9 = arith.constant 0 : i32
    %13 = arith.cmpi ne, %12, %c0_i32_9 : i32
    scf.if %13 {
      %c0_10 = arith.constant 0 : index
      %c0_11 = arith.constant 0 : index
      %14 = vector.load %arg10[%c0_10, %c0_11] : memref<32x128xf32, #tpu.memory_space<vmem>>, vector<32x128xf32>
      %c0_12 = arith.constant 0 : index
      %c0_13 = arith.constant 0 : index
      %15 = vector.load %arg4[%c0_12, %c0_13] : memref<32x1xf32, #tpu.memory_space<vmem>>, vector<32x1xf32>
      %16 = vector.broadcast %15 : vector<32x1xf32> to vector<32x128xf32>
      %17 = arith.mulf %14, %16 : vector<32x128xf32>
      %c0_14 = arith.constant 0 : index
      %c0_15 = arith.constant 0 : index
      %18 = vector.load %arg6[%c0_14, %c0_15] : memref<1x128xf32, #tpu.memory_space<vmem>>, vector<1x128xf32>
      %19 = vector.broadcast %18 : vector<1x128xf32> to vector<32x128xf32>
      %20 = arith.mulf %17, %19 : vector<32x128xf32>
      %c0_16 = arith.constant 0 : index
      %c0_17 = arith.constant 0 : index
      %21 = vector.load %arg7[%c0_16, %c0_17] : memref<1x128xf32, #tpu.memory_space<vmem>>, vector<1x128xf32>
      %22 = vector.broadcast %21 : vector<1x128xf32> to vector<32x128xf32>
      %23 = arith.addf %20, %22 : vector<32x128xf32>
      %c0_18 = arith.constant 0 : index
      %c0_19 = arith.constant 0 : index
      %24 = vector.load %arg8[%c0_18, %c0_19] : memref<32x128xbf16, #tpu.memory_space<vmem>>, vector<32x128xbf16>
      %25 = arith.extf %24 : vector<32x128xbf16> to vector<32x128xf32>
      %26 = arith.addf %23, %25 : vector<32x128xf32>
      %27 = arith.truncf %26 : vector<32x128xf32> to vector<32x128xbf16>
      %c0_20 = arith.constant 0 : index
      %c0_21 = arith.constant 0 : index
      %28 = vector.load %arg9[%c0_20, %c0_21] : memref<32x128xbf16, #tpu.memory_space<vmem>>, vector<32x128xbf16>
      tpu.vector_store %arg9[%c0_20, %c0_21], %27 {strides = array<i32>} : memref<32x128xbf16, #tpu.memory_space<vmem>>, vector<32x128xbf16>,
    } else {
    }
    return
  }
  func.func @transform_0(%arg0: i32, %arg1: i32, %arg2: i32) -> (i32, i32) {
    %c0_i32 = arith.constant 0 : i32
    return %arg0, %arg2 : i32, i32
  }
  func.func @transform_1(%arg0: i32, %arg1: i32, %arg2: i32) -> (i32, i32) {
    %c0_i32 = arith.constant 0 : i32
    %c0_i32_0 = arith.constant 0 : i32
    return %arg0, %c0_i32 : i32, i32
  }
  func.func @transform_2(%arg0: i32, %arg1: i32, %arg2: i32) -> (i32, i32) {
    %c0_i32 = arith.constant 0 : i32
    return %arg2, %arg1 : i32, i32
  }
  func.func @transform_3(%arg0: i32, %arg1: i32, %arg2: i32) -> (i32, i32) {
    %c0_i32 = arith.constant 0 : i32
    %c0_i32_0 = arith.constant 0 : i32
    return %c0_i32, %arg1 : i32, i32
  }
  func.func @transform_4(%arg0: i32, %arg1: i32, %arg2: i32) -> (i32, i32) {
    %c0_i32 = arith.constant 0 : i32
    %c0_i32_0 = arith.constant 0 : i32
    return %c0_i32, %arg1 : i32, i32
  }
  func.func @transform_5(%arg0: i32, %arg1: i32, %arg2: i32) -> (i32, i32) {
    %c0_i32 = arith.constant 0 : i32
    return %arg0, %arg1 : i32, i32
  }
  func.func @transform_6(%arg0: i32, %arg1: i32, %arg2: i32) -> (i32, i32) {
    %c0_i32 = arith.constant 0 : i32
    return %arg0, %arg1 : i32, i32
  }
}

</mosaic_0001>

<llo_original>
// kernel: quant_dit_forward.20
$region0: #{quant_dit_forward.20}
  #allocation0 [shape = 'u32[]', space=smem, size = 0x4, offset = 0x4, fixed_abs, tag = 'smem constant byte address 0x4 - core index']
  #allocation1 [shape = 'u32[144,128]{1,0:T(1,128)}', space=vmem, size = 0x12000, scoped, tag = 'internal scratch']
  %s0 = inlined_call_operand.vmem [shape: bf16[48,128], index: 0, kind: input, shape index: {}]
  %s1 = inlined_call_operand.vmem [shape: s8[48,128], index: 1, kind: output, shape index: {0}]
  %s2 = inlined_call_operand.vmem [shape: f32[48,1], index: 2, kind: output, shape index: {1}]
  %3 = xla_tuple %s1, %s2
  %s4 = sld [smem:[#allocation0]]
  $region22: #{quant_dit_forward.20} parent=0
    _
  %s6 = ssub.s32 1, %s4
  %s7 = scalar_select 0, %s6, %s4
  // Predicated region
  $region2: #{quant_dit_forward.20} parent=0 // pred_check
    _
  $region3: #{quant_dit_forward.20} parent=0 // pred_check_branch
    %9 = sbr.rel (0) target = $region5
  $region4: #{quant_dit_forward.20} parent=0 // pred_region
    _
  $region5: #{quant_dit_forward.20} parent=0 // pred_fallthru
    _
  %v10 = vld [vmem:[%s0] sm:$0xf]
  %v11 = vld [vmem:[%s0 + $0x4] sm:$0xf]
  %v12 = vld [vmem:[%s0 + $0x8] sm:$0xf]
  %v13 = vld [vmem:[%s0 + $0xc] sm:$0xf]
  %v14 = vld [vmem:[%s0 + $0x10] sm:$0xf]
  %v15 = vld [vmem:[%s0 + $0x14] sm:$0xf]
  %v16 = vunpack.c.l.bf16 %v10
  %v17 = vunpack.c.l.bf16 %v11
  %v18 = vunpack.c.l.bf16 %v12
  %v19 = vunpack.c.l.bf16 %v13
  %v20 = vunpack.c.l.bf16 %v14
  %v21 = vunpack.c.l.bf16 %v15
  %v22 = vand.u32 2147483647, %v16
  %v23 = vand.u32 2147483647, %v17
  %v24 = vand.u32 2147483647, %v18
  %v25 = vand.u32 2147483647, %v19
  %v26 = vand.u32 2147483647, %v20
  %v27 = vand.u32 2147483647, %v21
  %28 = vmax.xlane.f32.xlu0 %v22
  %v29 = vpop.xlane.xlu0 %28
  %30 = vmax.xlane.f32.xlu0 %v23
  %v31 = vpop.xlane.xlu0 %30
  %32 = vmax.xlane.f32.xlu0 %v24
  %v33 = vpop.xlane.xlu0 %32
  %34 = vmax.xlane.f32.xlu0 %v25
  %v35 = vpop.xlane.xlu0 %34
  %36 = vmax.xlane.f32.xlu0 %v26
  %v37 = vpop.xlane.xlu0 %36
  %38 = vmax.xlane.f32.xlu0 %v27
  %v39 = vpop.xlane.xlu0 %38
  %v40 = vmul.f32 %v29, 0.007874016
  %v41 = vmul.f32 %v31, 0.007874016
  %v42 = vmul.f32 %v33, 0.007874016
  %v43 = vmul.f32 %v35, 0.007874016
  %v44 = vmul.f32 %v37, 0.007874016
  %v45 = vmul.f32 %v39, 0.007874016
  %vm46 = vcmp.gt.f32.partialorder %v40, 0.0
  %vm47 = vcmp.gt.f32.partialorder %v41, 0.0
  %vm48 = vcmp.gt.f32.partialorder %v42, 0.0
  %vm49 = vcmp.gt.f32.partialorder %v43, 0.0
  %vm50 = vcmp.gt.f32.partialorder %v44, 0.0
  %vm51 = vcmp.gt.f32.partialorder %v45, 0.0
  %v52 = vsel %vm46, %v40, 1.0
  %v53 = vsel %vm47, %v41, 1.0
  %v54 = vsel %vm48, %v42, 1.0
  %v55 = vsel %vm49, %v43, 1.0
  %v56 = vsel %vm50, %v44, 1.0
  %v57 = vsel %vm51, %v45, 1.0
  %v58 = vrcp.pop %v52
  %v59 = vrcp.pop %v53
  %v60 = vrcp.pop %v54
  %v61 = vrcp.pop %v55
  %v62 = vrcp.pop %v56
  %v63 = vrcp.pop %v57
  %v64 = vmul.f32 %v16, %v58
  %v65 = vmul.f32 %v17, %v59
  %v66 = vmul.f32 %v18, %v60
  %v67 = vmul.f32 %v19, %v61
  %v68 = vmul.f32 %v20, %v62
  %v69 = vmul.f32 %v21, %v63
  %v70 = vround.ne.pseudo %v64
  %v71 = vround.ne.pseudo %v65
  %v72 = vround.ne.pseudo %v66
  %v73 = vround.ne.pseudo %v67
  %v74 = vround.ne.pseudo %v68
  %v75 = vround.ne.pseudo %v69
  %v76 = vmax.f32 %v70, -127.0
  %v77 = vmax.f32 %v71, -127.0
  %v78 = vmax.f32 %v72, -127.0
  %v79 = vmax.f32 %v73, -127.0
  %v80 = vmax.f32 %v74, -127.0
  %v81 = vmax.f32 %v75, -127.0
  %v82 = vmin.f32 %v76, 127.0
  %v83 = vmin.f32 %v77, 127.0
  %v84 = vmin.f32 %v78, 127.0
  %v85 = vmin.f32 %v79, 127.0
  %v86 = vmin.f32 %v80, 127.0
  %v87 = vmin.f32 %v81, 127.0
  %v88 = vmax.f32 %v82, -128.0
  %v89 = vmax.f32 %v83, -128.0
  %v90 = vmax.f32 %v84, -128.0
  %v91 = vmax.f32 %v85, -128.0
  %v92 = vmax.f32 %v86, -128.0
  %v93 = vmax.f32 %v87, -128.0
  %v94 = vmin.f32 %v88, 127.0
  %v95 = vmin.f32 %v89, 127.0
  %v96 = vmin.f32 %v90, 127.0
  %v97 = vmin.f32 %v91, 127.0
  %v98 = vmin.f32 %v92, 127.0
  %v99 = vmin.f32 %v93, 127.0
  %v100 = vcvt.f32.s32.to.zero.pseudo %v94
  %v101 = vcvt.f32.s32.to.zero.pseudo %v95
  %v102 = vcvt.f32.s32.to.zero.pseudo %v96
  %v103 = vcvt.f32.s32.to.zero.pseudo %v97
  %v104 = vcvt.f32.s32.to.zero.pseudo %v98
  %v105 = vcvt.f32.s32.to.zero.pseudo %v99
  %v106 = vpack.c.b16 %v100, %v100
  %v107 = vpack.c.b8 %v106, %v106
  %v108 = vpack.c.b16 %v101, %v101
  %v109 = vpack.c.b8 %v108, %v108
  %v110 = vpack.c.b16 %v102, %v102
  %v111 = vpack.c.b8 %v110, %v110
  %v112 = vpack.c.b16 %v103, %v103
  %v113 = vpack.c.b8 %v112, %v112
  %v114 = vpack.c.b16 %v104, %v104
  %v115 = vpack.c.b8 %v114, %v114
  %v116 = vpack.c.b16 %v105, %v105
  %v117 = vpack.c.b8 %v116, %v116
  %118 = vst [vmem:[%s1] sm:$0x3] %v107
  %119 = vst [vmem:[%s1 + $0x2] sm:$0x3] %v109
  %120 = vst [vmem:[%s1 + $0x4] sm:$0x3] %v111
  %121 = vst [vmem:[%s1 + $0x6] sm:$0x3] %v113
  %122 = vst [vmem:[%s1 + $0x8] sm:$0x3] %v115
  %123 = vst [vmem:[%s1 + $0xa] sm:$0x3] %v117
  %vm124 = vcmask 7168
  %125 = vst.msk [vmem:[%s2] sm:$0xff] %vm124, %v40
  %126 = vst.msk [vmem:[%s2 + $0x8] sm:$0xff] %vm124, %v41
  %127 = vst.msk [vmem:[%s2 + $0x10] sm:$0xff] %vm124, %v42
  %128 = vst.msk [vmem:[%s2 + $0x18] sm:$0xff] %vm124, %v43
  %129 = vst.msk [vmem:[%s2 + $0x20] sm:$0xff] %vm124, %v44
  %130 = vst.msk [vmem:[%s2 + $0x28] sm:$0xff] %vm124, %v45
  // Predicated region
  $region6: #{quant_dit_forward.20} parent=0 // pred_check
    _
  $region7: #{quant_dit_forward.20} parent=0 // pred_check_branch
    %132 = sbr.rel (0) target = $region9
  $region8: #{quant_dit_forward.20} parent=0 // pred_region
    _
  $region9: #{quant_dit_forward.20} parent=0 // pred_fallthru
    _
  // Predicated region
  $region10: #{quant_dit_forward.20} parent=0 // pred_check
    _
  $region11: #{quant_dit_forward.20} parent=0 // pred_check_branch
    %134 = sbr.rel (0) target = $region13
  $region12: #{quant_dit_forward.20} parent=0 // pred_region
    _
  $region13: #{quant_dit_forward.20} parent=0 // pred_fallthru
    _
  // Predicated region
  $region14: #{quant_dit_forward.20} parent=0 // pred_check
    _
  $region15: #{quant_dit_forward.20} parent=0 // pred_check_branch
    %136 = sbr.rel (0) target = $region17
  $region16: #{quant_dit_forward.20} parent=0 // pred_region
    _
  $region17: #{quant_dit_forward.20} parent=0 // pred_fallthru
    _
  // Predicated region
  $region18: #{quant_dit_forward.20} parent=0 // pred_check
    _
  $region19: #{quant_dit_forward.20} parent=0 // pred_check_branch
    %138 = sbr.rel (0) target = $region21
  $region20: #{quant_dit_forward.20} parent=0 // pred_region
    _
  $region21: #{quant_dit_forward.20} parent=0 // pred_fallthru
    _

// kernel: quant_dit_forward.21
$region0: #{quant_dit_forward.21}
  #allocation0 [shape = 'u32[]', space=smem, size = 0x4, offset = 0x4, fixed_abs, tag = 'smem constant byte address 0x4 - core index']
  #allocation1 [shape = 'u32[144,128]{1,0:T(1,128)}', space=vmem, size = 0x12000, scoped, tag = 'internal scratch']
  %s0 = inlined_call_operand.vmem [shape: bf16[2,16,128], index: 0, kind: input, shape index: {}]
  %s1 = inlined_call_operand.vmem [shape: f32[2,1,128], index: 1, kind: input, shape index: {}]
  %s2 = inlined_call_operand.vmem [shape: f32[2,1,128], index: 2, kind: input, shape index: {}]
  %s3 = inlined_call_operand.vmem [shape: s8[2,16,128], index: 3, kind: output, shape index: {0}]
  %s4 = inlined_call_operand.vmem [shape: f32[2,16,1], index: 4, kind: output, shape index: {1}]
  %5 = xla_tuple %s3, %s4
  %s6 = sld [smem:[#allocation0]]
  $region53: #{quant_dit_forward.21} parent=0
    _
  %s8 = ssub.s32 1, %s6
  %s9 = scalar_select 0, %s8, %s6
  loop: start=0, step=1, limit=4
  $region2: #{quant_dit_forward.21} parent=0 // loop_pre_header
    _
  $region3: #{quant_dit_forward.21} parent=0 // loop_header
    %s11 = sphi 0, %s15
    %p12 = scmp.ge.s32.totalorder %s11, 4
    %s18 = sphi 0, %s30
    %s19 = sphi 0, %s26
    %s20 = sphi 0, %s18
    %s21 = sphi 0, %s19
    %s22 = sphi 0, %s20
    %s23 = sphi 0, %s21
    %s35 = sphi 0, %s37
    %s38 = sphi 0, %s35
    %s39 = sphi 0, %s38
    %s55 = sphi 0, %s39
    %s61 = sphi 0, %s63
    %s64 = sphi 0, %s61
    %s65 = sphi 0, %s64
    %s81 = sphi 0, %s65
    %s87 = sphi 0, %s89
    %s90 = sphi 0, %s87
    %s91 = sphi 0, %s90
    %s107 = sphi 0, %s91
    %s115 = sphi 0, %s117
    %s118 = sphi 0, %s115
    %s119 = sphi 0, %s118
    %s135 = sphi 0, %s119
    %s143 = sphi 0, %s145
    %s146 = sphi 0, %s143
    %s147 = sphi 0, %s146
    %s163 = sphi 0, %s147
  $region4: #{quant_dit_forward.21} parent=0 // loop_header_branch
    %14 = sbr.rel (%p12) target = $region8
  $region5: #{quant_dit_forward.21} parent=0 // loop_body
    %s16 = ssub.s32 %s11, 1
    %s17 = ssub.s32 %s11, 2
    %s24 = sadd.s32 1, %s19
    %p25 = scmp.ge.s32.totalorder %s24, 1
    %s26 = scalar_select %p25, 0, %s24
    %s27 = sadd.s32 1, %s18
    %s28 = scalar_select %p25, %s27, %s18
    %p29 = scmp.ge.s32.totalorder %s28, 2
    %s30 = scalar_select %p29, 0, %s28
    %s31 = ssub.s32 %s18, %s30
    %s32 = ssub.s32 %s19, %s26
    %s33 = sor.u32 %s31, %s32
    %p34 = scmp.eq.s32.totalorder %s33, 0
    %s36 = sadd.s32 %s35, 1
    %s37 = scalar_select %p34, %s35, %s36
    %p40 = pneg %p34
    %p41 = scmp.eq.s32.totalorder %s11, 1
    %p42 = por %p40, %p41
    %p43 = scmp.ne.s32.totalorder %s35, %s38
    %p44 = scmp.eq.s32.totalorder %s11, 0
    %p45 = por %p43, %p44
    %p46 = scmp.ne.s32.totalorder %s35, %s38
    %p47 = scmp.eq.s32.totalorder %s16, 1
    %p48 = por %p46, %p47
    %p49 = scmp.ne.s32.totalorder %s38, %s39
    %p50 = scmp.eq.s32.totalorder %s16, 0
    %p51 = por %p49, %p50
    %p52 = scmp.ne.s32.totalorder %s38, %s39
    %p53 = scmp.eq.s32.totalorder %s17, 1
    %p54 = por %p52, %p53
    %p56 = scmp.ne.s32.totalorder %s39, %s55
    %p57 = scmp.eq.s32.totalorder %s17, 0
    %p58 = por %p56, %p57
    %s59 = ssub.s32 %s18, %s30
    %p60 = scmp.eq.s32.totalorder %s59, 0
    %s62 = sadd.s32 %s61, 1
    %s63 = scalar_select %p60, %s61, %s62
    %p66 = pneg %p60
    %p67 = scmp.eq.s32.totalorder %s11, 1
    %p68 = por %p66, %p67
    %p69 = scmp.ne.s32.totalorder %s61, %s64
    %p70 = scmp.eq.s32.totalorder %s11, 0
    %p71 = por %p69, %p70
    %p72 = scmp.ne.s32.totalorder %s61, %s64
    %p73 = scmp.eq.s32.totalorder %s16, 1
    %p74 = por %p72, %p73
    %p75 = scmp.ne.s32.totalorder %s64, %s65
    %p76 = scmp.eq.s32.totalorder %s16, 0
    %p77 = por %p75, %p76
    %p78 = scmp.ne.s32.totalorder %s64, %s65
    %p79 = scmp.eq.s32.totalorder %s17, 1
    %p80 = por %p78, %p79
    %p82 = scmp.ne.s32.totalorder %s65, %s81
    %p83 = scmp.eq.s32.totalorder %s17, 0
    %p84 = por %p82, %p83
    %s85 = ssub.s32 %s18, %s30
    %p86 = scmp.eq.s32.totalorder %s85, 0
    %s88 = sadd.s32 %s87, 1
    %s89 = scalar_select %p86, %s87, %s88
    %p92 = pneg %p86
    %p93 = scmp.eq.s32.totalorder %s11, 1
    %p94 = por %p92, %p93
    %p95 = scmp.ne.s32.totalorder %s87, %s90
    %p96 = scmp.eq.s32.totalorder %s11, 0
    %p97 = por %p95, %p96
    %p98 = scmp.ne.s32.totalorder %s87, %s90
    %p99 = scmp.eq.s32.totalorder %s16, 1
    %p100 = por %p98, %p99
    %p101 = scmp.ne.s32.totalorder %s90, %s91
    %p102 = scmp.eq.s32.totalorder %s16, 0
    %p103 = por %p101, %p102
    %p104 = scmp.ne.s32.totalorder %s90, %s91
    %p105 = scmp.eq.s32.totalorder %s17, 1
    %p106 = por %p104, %p105
    %p108 = scmp.ne.s32.totalorder %s91, %s107
    %p109 = scmp.eq.s32.totalorder %s17, 0
    %p110 = por %p108, %p109
    %s111 = ssub.s32 %s18, %s30
    %s112 = ssub.s32 %s19, %s26
    %s113 = sor.u32 %s111, %s112
    %p114 = scmp.eq.s32.totalorder %s113, 0
    %s116 = sadd.s32 %s115, 1
    %s117 = scalar_select %p114, %s115, %s116
    %p120 = pneg %p114
    %p121 = scmp.eq.s32.totalorder %s11, 1
    %p122 = por %p120, %p121
    %p123 = scmp.ne.s32.totalorder %s115, %s118
    %p124 = scmp.eq.s32.totalorder %s11, 0
    %p125 = por %p123, %p124
    %p126 = scmp.ne.s32.totalorder %s115, %s118
    %p127 = scmp.eq.s32.totalorder %s16, 1
    %p128 = por %p126, %p127
    %p129 = scmp.ne.s32.totalorder %s118, %s119
    %p130 = scmp.eq.s32.totalorder %s16, 0
    %p131 = por %p129, %p130
    %p132 = scmp.ne.s32.totalorder %s118, %s119
    %p133 = scmp.eq.s32.totalorder %s17, 1
    %p134 = por %p132, %p133
    %p136 = scmp.ne.s32.totalorder %s119, %s135
    %p137 = scmp.eq.s32.totalorder %s17, 0
    %p138 = por %p136, %p137
    %s139 = ssub.s32 %s18, %s30
    %s140 = ssub.s32 %s19, %s26
    %s141 = sor.u32 %s139, %s140
    %p142 = scmp.eq.s32.totalorder %s141, 0
    %s144 = sadd.s32 %s143, 1
    %s145 = scalar_select %p142, %s143, %s144
    %p148 = pneg %p142
    %p149 = scmp.eq.s32.totalorder %s11, 1
    %p150 = por %p148, %p149
    %p151 = scmp.ne.s32.totalorder %s143, %s146
    %p152 = scmp.eq.s32.totalorder %s11, 0
    %p153 = por %p151, %p152
    %p154 = scmp.ne.s32.totalorder %s143, %s146
    %p155 = scmp.eq.s32.totalorder %s16, 1
    %p156 = por %p154, %p155
    %p157 = scmp.ne.s32.totalorder %s146, %s147
    %p158 = scmp.eq.s32.totalorder %s16, 0
    %p159 = por %p157, %p158
    %p160 = scmp.ne.s32.totalorder %s146, %s147
    %p161 = scmp.eq.s32.totalorder %s17, 1
    %p162 = por %p160, %p161
    %p164 = scmp.ne.s32.totalorder %s147, %s163
    %p165 = scmp.eq.s32.totalorder %s17, 0
    %p166 = por %p164, %p165
    %p167 = scmp.le.s32.totalorder 1, %s11
    %p168 = scmp.lt.s32.totalorder %s11, 3
    %p169 = pnand %p167, %p168
    %p170 = pneg %p169
    // Predicated region
    $region9: #{quant_dit_forward.21} parent=5 // pred_check
      _
    $region10: #{quant_dit_forward.21} parent=5 // pred_check_branch
      %172 = sbr.rel (%p169) target = $region12
    $region11: #{quant_dit_forward.21} parent=5 // pred_region
      %s173 = ssub.s32 %s11, 1
    $region12: #{quant_dit_forward.21} parent=5 // pred_fallthru
      _
    %p174 = scmp.lt.s32.totalorder %s11, 2
    // Predicated region
    $region13: #{quant_dit_forward.21} parent=5 // pred_check
      %p175 = pneg %p174
    $region14: #{quant_dit_forward.21} parent=5 // pred_check_branch
      %177 = sbr.rel (%p175) target = $region16
    $region15: #{quant_dit_forward.21} parent=5 // pred_region
      // Predicated region
      $region17: #{quant_dit_forward.21} parent=15 // pred_check
        %p178 = pneg %p45
      $region18: #{quant_dit_forward.21} parent=15 // pred_check_branch
        %180 = sbr.rel (%p178) target = $region20
      $region19: #{quant_dit_forward.21} parent=15 // pred_region
        %s181 = smul.u32 2, %s19
        %p182 = scmp.lt.s32.totalorder %s18, 1
        %s183 = scalar_select %p182, %s18, 1
        %p184 = scmp.lt.s32.totalorder %s181, 1
        %s185 = scalar_select %p184, %s181, 1
        %s186 = smul.addr %s183, 2
        %s187 = sadd.s32 %s185, %s186
        %s188 = smul.addr %s187, 4
        %s189 = scalar_lea.vmem %s0, %s188
        %s190 = smul.u32 2, %s19
      $region20: #{quant_dit_forward.21} parent=15 // pred_fallthru
        _
      // Predicated region
      $region21: #{quant_dit_forward.21} parent=15 // pred_check
        %p191 = pneg %p71
      $region22: #{quant_dit_forward.21} parent=15 // pred_check_branch
        %193 = sbr.rel (%p191) target = $region24
      $region23: #{quant_dit_forward.21} parent=15 // pred_region
        %p194 = scmp.lt.s32.totalorder %s18, 1
        %s195 = scalar_select %p194, %s18, 1
        %s196 = scalar_lea.vmem %s1, %s195
      $region24: #{quant_dit_forward.21} parent=15 // pred_fallthru
        _
      // Predicated region
      $region25: #{quant_dit_forward.21} parent=15 // pred_check
        %p197 = pneg %p97
      $region26: #{quant_dit_forward.21} parent=15 // pred_check_branch
        %199 = sbr.rel (%p197) target = $region28
      $region27: #{quant_dit_forward.21} parent=15 // pred_region
        %p200 = scmp.lt.s32.totalorder %s18, 1
        %s201 = scalar_select %p200, %s18, 1
        %s202 = scalar_lea.vmem %s2, %s201
      $region28: #{quant_dit_forward.21} parent=15 // pred_fallthru
        _
    $region16: #{quant_dit_forward.21} parent=5 // pred_fallthru
      _
    %p203 = scmp.le.s32.totalorder 1, %s11
    %p204 = scmp.lt.s32.totalorder %s11, 3
    %p205 = pnand %p203, %p204
    %p206 = pneg %p205
    // Predicated region
    $region29: #{quant_dit_forward.21} parent=5 // pred_check
      _
    $region30: #{quant_dit_forward.21} parent=5 // pred_check_branch
      %208 = sbr.rel (%p205) target = $region32
    $region31: #{quant_dit_forward.21} parent=5 // pred_region
      %s209 = ssub.s32 %s11, 1
      %s210 = smul.u32 2, %s21
      %p211 = scmp.lt.s32.totalorder %s20, 1
      %s212 = scalar_select %p211, %s20, 1
      %p213 = scmp.lt.s32.totalorder %s210, 1
      %s214 = scalar_select %p213, %s210, 1
      %s215 = smul.addr %s212, 2
      %s216 = sadd.s32 %s214, %s215
      %s217 = smul.addr %s216, 4
      %s218 = scalar_lea.vmem %s0, %s217
      %p219 = pneg %p51
      %p220 = pneg %p48
      %p221 = scmp.lt.s32.totalorder %s20, 1
      %s222 = scalar_select %p221, %s20, 1
      %s223 = scalar_lea.vmem %s1, %s222
      %p224 = pneg %p77
      %p225 = pneg %p74
      %p226 = scmp.lt.s32.totalorder %s20, 1
      %s227 = scalar_select %p226, %s20, 1
      %s228 = scalar_lea.vmem %s2, %s227
      %p229 = pneg %p103
      %p230 = pneg %p100
      %p231 = pneg %p131
      %p232 = pneg %p128
      %s233 = smul.u32 2, %s21
      %p234 = scmp.lt.s32.totalorder %s20, 1
      %s235 = scalar_select %p234, %s20, 1
      %p236 = scmp.lt.s32.totalorder %s233, 1
      %s237 = scalar_select %p236, %s233, 1
      %s238 = smul.addr %s235, 2
      %s239 = sadd.s32 %s237, %s238
      %s240 = smul.addr %s239, 2
      %s241 = scalar_lea.vmem %s3, %s240
      %p242 = pneg %p159
      %p243 = pneg %p156
      %s244 = smul.u32 2, %s21
      %p245 = scmp.lt.s32.totalorder %s20, 1
      %s246 = scalar_select %p245, %s20, 1
      %p247 = scmp.lt.s32.totalorder %s244, 1
      %s248 = scalar_select %p247, %s244, 1
      %s249 = smul.addr %s246, 2
      %s250 = sadd.s32 %s248, %s249
      %s251 = smul.addr %s250, 8
      %s252 = scalar_lea.vmem %s4, %s251
      %s253 = smul.u32 2, %s21
      %p254 = scmp.lt.s32.totalorder %s20, 1
      %s255 = scalar_select %p254, %s20, 1
      %p256 = scmp.lt.s32.totalorder %s253, 1
      %s257 = scalar_select %p256, %s253, 1
      %s258 = smul.addr %s255, 2
      %s259 = sadd.s32 %s257, %s258
      %s260 = smul.addr %s259, 4
      %s261 = scalar_lea.vmem %s0, %s260
      %s262 = smul.u32 2, %s21
      %p263 = scmp.lt.s32.totalorder %s20, 1
      %s264 = scalar_select %p263, %s20, 1
      %s265 = scalar_lea.vmem %s1, %s264
      %p266 = scmp.lt.s32.totalorder %s20, 1
      %s267 = scalar_select %p266, %s20, 1
      %s268 = scalar_lea.vmem %s2, %s267
      %s269 = smul.u32 2, %s21
      %p270 = scmp.lt.s32.totalorder %s20, 1
      %s271 = scalar_select %p270, %s20, 1
      %p272 = scmp.lt.s32.totalorder %s269, 1
      %s273 = scalar_select %p272, %s269, 1
      %s274 = smul.addr %s271, 2
      %s275 = sadd.s32 %s273, %s274
      %s276 = smul.addr %s275, 2
      %s277 = scalar_lea.vmem %s3, %s276
      %s278 = smul.u32 2, %s21
      %s279 = smul.u32 2, %s21
      %p280 = scmp.lt.s32.totalorder %s20, 1
      %s281 = scalar_select %p280, %s20, 1
      %p282 = scmp.lt.s32.totalorder %s279, 1
      %s283 = scalar_select %p282, %s279, 1
      %s284 = smul.addr %s281, 2
      %s285 = sadd.s32 %s283, %s284
      %s286 = smul.addr %s285, 8
      %s287 = scalar_lea.vmem %s4, %s286
      %s288 = smul.u32 2, %s21
      %v289 = vld [vmem:[%s261] sm:$0xf]
      %v290 = vld [vmem:[%s261 + $0x4] sm:$0xf]
      %v291 = vunpack.c.l.bf16 %v289
      %v292 = vunpack.c.l.bf16 %v290
      %293 = vadd.xlane.f32.xlu0 %v291
      %v294 = vpop.xlane.xlu0 %293
      %295 = vadd.xlane.f32.xlu0 %v292
      %v296 = vpop.xlane.xlu0 %295
      %v297 = vrcp.pop 128.0
      %v298 = vmul.f32 %v294, %v297
      %v299 = vmul.f32 %v296, %v297
      %v300 = vmul.f32 %v291, %v291
      %v301 = vmul.f32 %v292, %v292
      %302 = vadd.xlane.f32.xlu0 %v300
      %v303 = vpop.xlane.xlu0 %302
      %304 = vadd.xlane.f32.xlu0 %v301
      %v305 = vpop.xlane.xlu0 %304
      %v306 = vmul.f32 %v303, %v297
      %v307 = vmul.f32 %v305, %v297
      %v308 = vmul.f32 %v298, %v298
      %v309 = vmul.f32 %v299, %v299
      %v310 = vsub.f32 %v306, %v308
      %v311 = vsub.f32 %v307, %v309
      %v312 = vmax.f32 %v310, 0.0
      %v313 = vmax.f32 %v311, 0.0
      %v314 = vsub.f32 %v291, %v298
      %v315 = vsub.f32 %v292, %v299
      %v316 = vadd.f32 %v312, 1e-05
      %v317 = vadd.f32 %v313, 1e-05
      %v318 = vrsqrt.pop %v316
      %v319 = vrsqrt.pop %v317
      %v320 = vmul.f32 %v314, %v318
      %v321 = vmul.f32 %v315, %v319
      %v322 = vld [vmem:[%s265] sm:$0x1]
      %v323 = vadd.f32 %v322, 1.0
      %v325 = vlaneseq
      %v326 = vshrl.u32 %v325, 7
      %v327 = vsub.s32 0, %v326
      %v328 = vrot.slane %v323, %v327
      %v330 = vmul.f32 %v320, %v328
      %v331 = vmul.f32 %v321, %v328
      %v332 = vld [vmem:[%s268] sm:$0x1]
      %v334 = vlaneseq
      %v335 = vshrl.u32 %v334, 7
      %v336 = vsub.s32 0, %v335
      %v337 = vrot.slane %v332, %v336
      %v339 = vadd.f32 %v330, %v337
      %v340 = vadd.f32 %v331, %v337
      %v341 = vand.u32 2147483647, %v339
      %v342 = vand.u32 2147483647, %v340
      %343 = vmax.xlane.f32.xlu0 %v341
      %v344 = vpop.xlane.xlu0 %343
      %345 = vmax.xlane.f32.xlu0 %v342
      %v346 = vpop.xlane.xlu0 %345
      %v347 = vmul.f32 %v344, 0.007874016
      %v348 = vmul.f32 %v346, 0.007874016
      %vm349 = vcmp.gt.f32.partialorder %v347, 0.0
      %vm350 = vcmp.gt.f32.partialorder %v348, 0.0
      %v351 = vsel %vm349, %v347, 1.0
      %v352 = vsel %vm350, %v348, 1.0
      %v353 = vrcp.pop %v351
      %v354 = vrcp.pop %v352
      %v355 = vmul.f32 %v339, %v353
      %v356 = vmul.f32 %v340, %v354
      %v357 = vround.ne.pseudo %v355
      %v358 = vround.ne.pseudo %v356
      %v359 = vmax.f32 %v357, -127.0
      %v360 = vmax.f32 %v358, -127.0
      %v361 = vmin.f32 %v359, 127.0
      %v362 = vmin.f32 %v360, 127.0
      %v363 = vmax.f32 %v361, -128.0
      %v364 = vmax.f32 %v362, -128.0
      %v365 = vmin.f32 %v363, 127.0
      %v366 = vmin.f32 %v364, 127.0
      %v367 = vcvt.f32.s32.to.zero.pseudo %v365
      %v368 = vcvt.f32.s32.to.zero.pseudo %v366
      %v369 = vpack.c.b16 %v367, %v367
      %v370 = vpack.c.b8 %v369, %v369
      %v371 = vpack.c.b16 %v368, %v368
      %v372 = vpack.c.b8 %v371, %v371
      %373 = vst [vmem:[%s277] sm:$0x3] %v370
      %374 = vst [vmem:[%s277 + $0x2] sm:$0x3] %v372
      %vm375 = vcmask 7168
      %376 = vst.msk [vmem:[%s287] sm:$0xff] %vm375, %v347
      %377 = vst.msk [vmem:[%s287 + $0x8] sm:$0xff] %vm375, %v348
      %s378 = smul.u32 2, %s21
      %p379 = scmp.lt.s32.totalorder %s20, 1
      %s380 = scalar_select %p379, %s20, 1
      %p381 = scmp.lt.s32.totalorder %s378, 1
      %s382 = scalar_select %p381, %s378, 1
      %s383 = smul.addr %s380, 2
      %s384 = sadd.s32 %s382, %s383
      %s385 = smul.addr %s384, 2
      %s386 = scalar_lea.vmem %s3, %s385
      %s387 = smul.u32 2, %s21
      %p388 = scmp.lt.s32.totalorder %s20, 1
      %s389 = scalar_select %p388, %s20, 1
      %p390 = scmp.lt.s32.totalorder %s387, 1
      %s391 = scalar_select %p390, %s387, 1
      %s392 = smul.addr %s389, 2
      %s393 = sadd.s32 %s391, %s392
      %s394 = smul.addr %s393, 8
      %s395 = scalar_lea.vmem %s4, %s394
      // Predicated region
      $region33: #{quant_dit_forward.21} parent=31 // pred_check
        %p396 = pneg %p128
      $region34: #{quant_dit_forward.21} parent=31 // pred_check_branch
        %398 = sbr.rel (%p396) target = $region36
      $region35: #{quant_dit_forward.21} parent=31 // pred_region
        %s399 = smul.u32 2, %s21
      $region36: #{quant_dit_forward.21} parent=31 // pred_fallthru
        _
      // Predicated region
      $region37: #{quant_dit_forward.21} parent=31 // pred_check
        %p400 = pneg %p156
      $region38: #{quant_dit_forward.21} parent=31 // pred_check_branch
        %402 = sbr.rel (%p400) target = $region40
      $region39: #{quant_dit_forward.21} parent=31 // pred_region
        %s403 = smul.u32 2, %s21
      $region40: #{quant_dit_forward.21} parent=31 // pred_fallthru
        _
    $region32: #{quant_dit_forward.21} parent=5 // pred_fallthru
      _
    %p404 = scmp.le.s32.totalorder 2, %s11
    // Predicated region
    $region41: #{quant_dit_forward.21} parent=5 // pred_check
      %p405 = pneg %p404
    $region42: #{quant_dit_forward.21} parent=5 // pred_check_branch
      %407 = sbr.rel (%p405) target = $region44
    $region43: #{quant_dit_forward.21} parent=5 // pred_region
      %s408 = ssub.s32 %s11, 2
      // Predicated region
      $region45: #{quant_dit_forward.21} parent=43 // pred_check
        %p409 = pneg %p134
      $region46: #{quant_dit_forward.21} parent=43 // pred_check_branch
        %411 = sbr.rel (%p409) target = $region48
      $region47: #{quant_dit_forward.21} parent=43 // pred_region
        %s412 = smul.u32 2, %s23
        %p413 = scmp.lt.s32.totalorder %s22, 1
        %s414 = scalar_select %p413, %s22, 1
        %p415 = scmp.lt.s32.totalorder %s412, 1
        %s416 = scalar_select %p415, %s412, 1
        %s417 = smul.addr %s414, 2
        %s418 = sadd.s32 %s416, %s417
        %s419 = smul.addr %s418, 2
        %s420 = scalar_lea.vmem %s3, %s419
      $region48: #{quant_dit_forward.21} parent=43 // pred_fallthru
        _
      // Predicated region
      $region49: #{quant_dit_forward.21} parent=43 // pred_check
        %p421 = pneg %p162
      $region50: #{quant_dit_forward.21} parent=43 // pred_check_branch
        %423 = sbr.rel (%p421) target = $region52
      $region51: #{quant_dit_forward.21} parent=43 // pred_region
        %s424 = smul.u32 2, %s23
        %p425 = scmp.lt.s32.totalorder %s22, 1
        %s426 = scalar_select %p425, %s22, 1
        %p427 = scmp.lt.s32.totalorder %s424, 1
        %s428 = scalar_select %p427, %s424, 1
        %s429 = smul.addr %s426, 2
        %s430 = sadd.s32 %s428, %s429
        %s431 = smul.addr %s430, 8
        %s432 = scalar_lea.vmem %s4, %s431
      $region52: #{quant_dit_forward.21} parent=43 // pred_fallthru
        _
    $region44: #{quant_dit_forward.21} parent=5 // pred_fallthru
      _
  $region6: #{quant_dit_forward.21} parent=0 // loop_footer
    %s15 = sadd.s32 1, %s11
  $region7: #{quant_dit_forward.21} parent=0 // loop_footer_branch
    %10 = sbr.rel target = $region3
  $region8: #{quant_dit_forward.21} parent=0 // loop_exit
    _

// kernel: quant_dit_forward.24
$region0: #{quant_dit_forward.24}
  #allocation0 [shape = 'u32[]', space=smem, size = 0x4, offset = 0x4, fixed_abs, tag = 'smem constant byte address 0x4 - core index']
  #allocation1 [shape = 'u32[144,128]{1,0:T(1,128)}', space=vmem, size = 0x12000, scoped, tag = 'internal scratch']
  #allocation2 [shape = 'f32[48,128]{1,0:T(8,128)}', space=vmem, size = 0x6000, scoped, tag = 'scratch operand']
  %s0 = inlined_call_operand.vmem [shape: s8[48,128], index: 0, kind: input, shape index: {}]
  %s1 = inlined_call_operand.vmem [shape: f32[48,1], index: 1, kind: input, shape index: {}]
  %s2 = inlined_call_operand.vmem [shape: s8[128,128], index: 2, kind: input, shape index: {}]
  %s3 = inlined_call_operand.vmem [shape: f32[1,128], index: 3, kind: input, shape index: {}]
  %s4 = inlined_call_operand.vmem [shape: f32[1,128], index: 4, kind: input, shape index: {}]
  %s5 = inlined_call_operand.vmem [shape: bf16[48,128], index: 5, kind: output, shape index: {}]
  %s6 = sld [smem:[#allocation0]]
  $region38: #{quant_dit_forward.24} parent=0
    _
  %s8 = ssub.s32 1, %s6
  %s9 = scalar_select 0, %s8, %s6
  // Predicated region
  $region2: #{quant_dit_forward.24} parent=0 // pred_check
    _
  $region3: #{quant_dit_forward.24} parent=0 // pred_check_branch
    %11 = sbr.rel (0) target = $region5
  $region4: #{quant_dit_forward.24} parent=0 // pred_region
    _
  $region5: #{quant_dit_forward.24} parent=0 // pred_fallthru
    _
  // Predicated region
  $region6: #{quant_dit_forward.24} parent=0 // pred_check
    _
  $region7: #{quant_dit_forward.24} parent=0 // pred_check_branch
    %13 = sbr.rel (0) target = $region9
  $region8: #{quant_dit_forward.24} parent=0 // pred_region
    _
  $region9: #{quant_dit_forward.24} parent=0 // pred_fallthru
    _
  // Predicated region
  $region10: #{quant_dit_forward.24} parent=0 // pred_check
    _
  $region11: #{quant_dit_forward.24} parent=0 // pred_check_branch
    %15 = sbr.rel (0) target = $region13
  $region12: #{quant_dit_forward.24} parent=0 // pred_region
    _
  $region13: #{quant_dit_forward.24} parent=0 // pred_fallthru
    _
  // Predicated region
  $region14: #{quant_dit_forward.24} parent=0 // pred_check
    _
  $region15: #{quant_dit_forward.24} parent=0 // pred_check_branch
    %17 = sbr.rel (0) target = $region17
  $region16: #{quant_dit_forward.24} parent=0 // pred_region
    _
  $region17: #{quant_dit_forward.24} parent=0 // pred_fallthru
    _
  // Predicated region
  $region18: #{quant_dit_forward.24} parent=0 // pred_check
    _
  $region19: #{quant_dit_forward.24} parent=0 // pred_check_branch
    %19 = sbr.rel (0) target = $region21
  $region20: #{quant_dit_forward.24} parent=0 // pred_region
    _
  $region21: #{quant_dit_forward.24} parent=0 // pred_fallthru
    _
  %p21 = scmp.eq.s32.totalorder 0, 0
  // Predicated region
  $region22: #{quant_dit_forward.24} parent=0 // pred_check
    %p22 = pneg %p21
  $region23: #{quant_dit_forward.24} parent=0 // pred_check_branch
    %24 = sbr.rel (%p22) target = $region25
  $region24: #{quant_dit_forward.24} parent=0 // pred_region
    %25 = vst [vmem:[#allocation2] sm:$0xff] 0.0
    %26 = vst [vmem:[#allocation2 + $0x8] sm:$0xff] 0.0
    %27 = vst [vmem:[#allocation2 + $0x10] sm:$0xff] 0.0
    %28 = vst [vmem:[#allocation2 + $0x18] sm:$0xff] 0.0
    %29 = vst [vmem:[#allocation2 + $0x20] sm:$0xff] 0.0
    %30 = vst [vmem:[#allocation2 + $0x28] sm:$0xff] 0.0
  $region25: #{quant_dit_forward.24} parent=0 // pred_fallthru
    _
  %v31 = vld [vmem:[#allocation2] sm:$0xff]
  %v32 = vld [vmem:[#allocation2 + $0x8] sm:$0xff]
  %v33 = vld [vmem:[#allocation2 + $0x10] sm:$0xff]
  %v34 = vld [vmem:[#allocation2 + $0x18] sm:$0xff]
  %v35 = vld [vmem:[#allocation2 + $0x20] sm:$0xff]
  %v36 = vld [vmem:[#allocation2 + $0x28] sm:$0xff]
  %v37 = vld [vmem:[%s0] sm:$0x3]
  %v38 = vld [vmem:[%s0 + $0x2] sm:$0x3]
  %v39 = vld [vmem:[%s0 + $0x4] sm:$0x3]
  %v40 = vld [vmem:[%s0 + $0x6] sm:$0x3]
  %v41 = vld [vmem:[%s0 + $0x8] sm:$0x3]
  %v42 = vld [vmem:[%s0 + $0xa] sm:$0x3]
  %v43 = vunpack.c.l.s8.bf16 %v37
  %v44 = vunpack.c.l.s8.bf16 %v38
  %v45 = vunpack.c.l.s8.bf16 %v39
  %v46 = vunpack.c.l.s8.bf16 %v40
  %v47 = vunpack.c.l.s8.bf16 %v41
  %v48 = vunpack.c.l.s8.bf16 %v42
  %v49 = vld [vmem:[%s2] sm:$0xff]
  %v50 = vld [vmem:[%s2 + $0x8] sm:$0xff]
  %v51 = vld [vmem:[%s2 + $0x10] sm:$0xff]
  %v52 = vld [vmem:[%s2 + $0x18] sm:$0xff]
  %v53 = vunpack.c.l.s8.bf16 %v49
  %v54 = vunpack.c.h.s8.bf16 %v49
  %v55 = vunpack.c.l.s8.bf16 %v50
  %v56 = vunpack.c.h.s8.bf16 %v50
  %v57 = vunpack.c.l.s8.bf16 %v51
  %v58 = vunpack.c.h.s8.bf16 %v51
  %v59 = vunpack.c.l.s8.bf16 %v52
  %v60 = vunpack.c.h.s8.bf16 %v52
  %v67 = vunpack.c.l.b16 %v43
  %v68 = vunpack.c.l.b16 %v44
  %v69 = vunpack.c.l.b16 %v45
  %v70 = vunpack.c.l.b16 %v46
  %v71 = vunpack.c.l.b16 %v47
  %v72 = vunpack.c.l.b16 %v48
  %v73 = vpack.c.b16 %v68, %v67
  %v74 = vpack.c.b16 %v70, %v69
  %v75 = vpack.c.b16 %v72, %v71
  %79 = vmatprep.subr.bf16.mxu0 0
  %80 = vmatpush1.bf16.msra.mxu0 %v60
  %81 = vmatprep.subr.bf16.mxu0 0
  %82 = vmatpush1.bf16.msra.mxu0 %v59
  %83 = vmatprep.subr.bf16.mxu0 0
  %84 = vmatpush1.bf16.msra.mxu0 %v58
  %85 = vmatprep.subr.bf16.mxu0 0
  %86 = vmatpush1.bf16.msra.mxu0 %v57
  %87 = vmatprep.subr.bf16.mxu0 0
  %88 = vmatpush1.bf16.msra.mxu0 %v56
  %89 = vmatprep.subr.bf16.mxu0 0
  %90 = vmatpush1.bf16.msra.mxu0 %v55
  %91 = vmatprep.subr.bf16.mxu0 0
  %92 = vmatpush1.bf16.msra.mxu0 %v54
  %93 = vmatprep.subr.bf16.mxu0 0
  %94 = vmatpush1.bf16.msra.mxu0 %v53
  %95 = vmatprep.subr.bf16.mxu0 0
  %96 = vmatpush2.bf16.msra.mxu0 0
  %97 = vmatprep.subr.bf16.mxu0 0
  %98 = vmatpush2.bf16.msra.mxu0 0
  %99 = vmatprep.subr.bf16.mxu0 0
  %100 = vmatpush2.bf16.msra.mxu0 0
  %101 = vmatprep.subr.bf16.mxu0 0
  %102 = vmatpush2.bf16.msra.mxu0 0
  %103 = vmatprep.subr.bf16.mxu0 0
  %104 = vmatpush2.bf16.msra.mxu0 0
  %105 = vmatprep.subr.bf16.mxu0 0
  %106 = vmatpush2.bf16.msra.mxu0 0
  %107 = vmatprep.subr.bf16.mxu0 0
  %108 = vmatpush2.bf16.msra.mxu0 0
  %109 = vmatprep.subr.bf16.mxu0 0
  %110 = vmatpush2.bf16.msra.mxu0 0
  %111 = vmatprep.mubr.bf16.mxu0 0
  %112 = vmatmul.mubr.bf16.gmra.mxu0 %v73
  %v113 = vpop.f32.mrf.mxu0
  %v114 = vadd.f32 0.0, %v113
  %v115 = vpop.f32.mrf.mxu0
  %v116 = vpop.f32.mrf.mxu0
  %v117 = vadd.f32 0.0, %v116
  %v118 = vpop.f32.mrf.mxu0
  %119 = vmatprep.mubr.bf16.mxu0 0
  %120 = vmatmul.mubr.bf16.gmra.mxu0 %v74
  %v121 = vpop.f32.mrf.mxu0
  %v122 = vadd.f32 0.0, %v121
  %v123 = vpop.f32.mrf.mxu0
  %v124 = vpop.f32.mrf.mxu0
  %v125 = vadd.f32 0.0, %v124
  %v126 = vpop.f32.mrf.mxu0
  %127 = vmatprep.mubr.bf16.mxu0 0
  %128 = vmatmul.mubr.bf16.gmra.mxu0 %v75
  %v129 = vpop.f32.mrf.mxu0
  %v130 = vadd.f32 0.0, %v129
  %v131 = vpop.f32.mrf.mxu0
  %v132 = vpop.f32.mrf.mxu0
  %v133 = vadd.f32 0.0, %v132
  %v134 = vpop.f32.mrf.mxu0
  %135 = vdwg.mxu0
  %v136 = vadd.f32 %v31, %v114
  %v137 = vadd.f32 %v32, %v117
  %v138 = vadd.f32 %v33, %v122
  %v139 = vadd.f32 %v34, %v125
  %v140 = vadd.f32 %v35, %v130
  %v141 = vadd.f32 %v36, %v133
  %142 = vst [vmem:[#allocation2] sm:$0xff] %v136
  %143 = vst [vmem:[#allocation2 + $0x8] sm:$0xff] %v137
  %144 = vst [vmem:[#allocation2 + $0x10] sm:$0xff] %v138
  %145 = vst [vmem:[#allocation2 + $0x18] sm:$0xff] %v139
  %146 = vst [vmem:[#allocation2 + $0x20] sm:$0xff] %v140
  %147 = vst [vmem:[#allocation2 + $0x28] sm:$0xff] %v141
  // Predicated region
  $region26: #{quant_dit_forward.24} parent=0 // pred_check
    %p148 = pneg %p21
  $region27: #{quant_dit_forward.24} parent=0 // pred_check_branch
    %150 = sbr.rel (%p148) target = $region29
  $region28: #{quant_dit_forward.24} parent=0 // pred_region
    %v151 = vld [vmem:[#allocation2] sm:$0xff]
    %v152 = vld [vmem:[#allocation2 + $0x8] sm:$0xff]
    %v153 = vld [vmem:[#allocation2 + $0x10] sm:$0xff]
    %v154 = vld [vmem:[#allocation2 + $0x18] sm:$0xff]
    %v155 = vld [vmem:[#allocation2 + $0x20] sm:$0xff]
    %v156 = vld [vmem:[#allocation2 + $0x28] sm:$0xff]
    %v157 = vld [vmem:[%s1] sm:$0xff]
    %v158 = vld [vmem:[%s1 + $0x8] sm:$0xff]
    %v159 = vld [vmem:[%s1 + $0x10] sm:$0xff]
    %v160 = vld [vmem:[%s1 + $0x18] sm:$0xff]
    %v161 = vld [vmem:[%s1 + $0x20] sm:$0xff]
    %v162 = vld [vmem:[%s1 + $0x28] sm:$0xff]
    %164 = vset.pattern.permute.xlu0 0
    %165 = vperm.xlu0 %164, %v157
    %v166 = vpop.permute.xlu0 %165
    %169 = vset.pattern.permute.xlu0 0
    %170 = vperm.xlu0 %169, %v158
    %v171 = vpop.permute.xlu0 %170
    %174 = vset.pattern.permute.xlu0 0
    %175 = vperm.xlu0 %174, %v159
    %v176 = vpop.permute.xlu0 %175
    %179 = vset.pattern.permute.xlu0 0
    %180 = vperm.xlu0 %179, %v160
    %v181 = vpop.permute.xlu0 %180
    %184 = vset.pattern.permute.xlu0 0
    %185 = vperm.xlu0 %184, %v161
    %v186 = vpop.permute.xlu0 %185
    %189 = vset.pattern.permute.xlu0 0
    %190 = vperm.xlu0 %189, %v162
    %v191 = vpop.permute.xlu0 %190
    %v193 = vmul.f32 %v151, %v166
    %v194 = vmul.f32 %v152, %v171
    %v195 = vmul.f32 %v153, %v176
    %v196 = vmul.f32 %v154, %v181
    %v197 = vmul.f32 %v155, %v186
    %v198 = vmul.f32 %v156, %v191
    %v199 = vld [vmem:[%s3] sm:$0x1]
    %v201 = vlaneseq
    %v202 = vshrl.u32 %v201, 7
    %v203 = vsub.s32 0, %v202
    %v204 = vrot.slane %v199, %v203
    %v206 = vmul.f32 %v193, %v204
    %v207 = vmul.f32 %v194, %v204
    %v208 = vmul.f32 %v195, %v204
    %v209 = vmul.f32 %v196, %v204
    %v210 = vmul.f32 %v197, %v204
    %v211 = vmul.f32 %v198, %v204
    %v212 = vld [vmem:[%s4] sm:$0x1]
    %v214 = vlaneseq
    %v215 = vshrl.u32 %v214, 7
    %v216 = vsub.s32 0, %v215
    %v217 = vrot.slane %v212, %v216
    %v219 = vadd.f32 %v206, %v217
    %v220 = vadd.f32 %v207, %v217
    %v221 = vadd.f32 %v208, %v217
    %v222 = vadd.f32 %v209, %v217
    %v223 = vadd.f32 %v210, %v217
    %v224 = vadd.f32 %v211, %v217
    %v225 = vpack.c.bf16 %v220, %v219
    %v226 = vpack.c.bf16 %v222, %v221
    %v227 = vpack.c.bf16 %v224, %v223
    %v231 = vunpack.c.l.b16 %v225
    %v232 = vunpack.c.h.b16 %v225
    %v233 = vunpack.c.l.b16 %v226
    %v234 = vunpack.c.h.b16 %v226
    %v235 = vunpack.c.l.b16 %v227
    %v236 = vunpack.c.h.b16 %v227
    %v237 = vpack.c.b16 %v231, %v231
    %v238 = vpack.c.b16 %v232, %v232
    %v239 = vpack.c.b16 %v233, %v233
    %v240 = vpack.c.b16 %v234, %v234
    %v241 = vpack.c.b16 %v235, %v235
    %v242 = vpack.c.b16 %v236, %v236
    %249 = vst [vmem:[%s5] sm:$0xf] %v237
    %250 = vst [vmem:[%s5 + $0x4] sm:$0xf] %v238
    %251 = vst [vmem:[%s5 + $0x8] sm:$0xf] %v239
    %252 = vst [vmem:[%s5 + $0xc] sm:$0xf] %v240
    %253 = vst [vmem:[%s5 + $0x10] sm:$0xf] %v241
    %254 = vst [vmem:[%s5 + $0x14] sm:$0xf] %v242
  $region29: #{quant_dit_forward.24} parent=0 // pred_fallthru
    _
  // Predicated region
  $region30: #{quant_dit_forward.24} parent=0 // pred_check
    _
  $region31: #{quant_dit_forward.24} parent=0 // pred_check_branch
    %256 = sbr.rel (0) target = $region33
  $region32: #{quant_dit_forward.24} parent=0 // pred_region
    _
  $region33: #{quant_dit_forward.24} parent=0 // pred_fallthru
    _
  // Predicated region
  $region34: #{quant_dit_forward.24} parent=0 // pred_check
    _
  $region35: #{quant_dit_forward.24} parent=0 // pred_check_branch
    %258 = sbr.rel (0) target = $region37
  $region36: #{quant_dit_forward.24} parent=0 // pred_region
    _
  $region37: #{quant_dit_forward.24} parent=0 // pred_fallthru
    _

// kernel: quant_dit_forward.22
$region0: #{quant_dit_forward.22}
  #allocation0 [shape = 'u32[]', space=smem, size = 0x4, offset = 0x4, fixed_abs, tag = 'smem constant byte address 0x4 - core index']
  #allocation1 [shape = 'u32[144,128]{1,0:T(1,128)}', space=vmem, size = 0x12000, scoped, tag = 'internal scratch']
  #allocation2 [shape = 'f32[32,128]{1,0:T(8,128)}', space=vmem, size = 0x4000, scoped, tag = 'scratch operand']
  %s0 = inlined_call_operand.vmem [shape: s8[32,128], index: 0, kind: input, shape index: {}]
  %s1 = inlined_call_operand.vmem [shape: f32[32,1], index: 1, kind: input, shape index: {}]
  %s2 = inlined_call_operand.vmem [shape: s8[128,128], index: 2, kind: input, shape index: {}]
  %s3 = inlined_call_operand.vmem [shape: f32[1,128], index: 3, kind: input, shape index: {}]
  %s4 = inlined_call_operand.vmem [shape: f32[1,128], index: 4, kind: input, shape index: {}]
  %s5 = inlined_call_operand.vmem [shape: bf16[32,128], index: 5, kind: output, shape index: {}]
  %s6 = sld [smem:[#allocation0]]
  $region38: #{quant_dit_forward.22} parent=0
    _
  %s8 = ssub.s32 1, %s6
  %s9 = scalar_select 0, %s8, %s6
  // Predicated region
  $region2: #{quant_dit_forward.22} parent=0 // pred_check
    _
  $region3: #{quant_dit_forward.22} parent=0 // pred_check_branch
    %11 = sbr.rel (0) target = $region5
  $region4: #{quant_dit_forward.22} parent=0 // pred_region
    _
  $region5: #{quant_dit_forward.22} parent=0 // pred_fallthru
    _
  // Predicated region
  $region6: #{quant_dit_forward.22} parent=0 // pred_check
    _
  $region7: #{quant_dit_forward.22} parent=0 // pred_check_branch
    %13 = sbr.rel (0) target = $region9
  $region8: #{quant_dit_forward.22} parent=0 // pred_region
    _
  $region9: #{quant_dit_forward.22} parent=0 // pred_fallthru
    _
  // Predicated region
  $region10: #{quant_dit_forward.22} parent=0 // pred_check
    _
  $region11: #{quant_dit_forward.22} parent=0 // pred_check_branch
    %15 = sbr.rel (0) target = $region13
  $region12: #{quant_dit_forward.22} parent=0 // pred_region
    _
  $region13: #{quant_dit_forward.22} parent=0 // pred_fallthru
    _
  // Predicated region
  $region14: #{quant_dit_forward.22} parent=0 // pred_check
    _
  $region15: #{quant_dit_forward.22} parent=0 // pred_check_branch
    %17 = sbr.rel (0) target = $region17
  $region16: #{quant_dit_forward.22} parent=0 // pred_region
    _
  $region17: #{quant_dit_forward.22} parent=0 // pred_fallthru
    _
  // Predicated region
  $region18: #{quant_dit_forward.22} parent=0 // pred_check
    _
  $region19: #{quant_dit_forward.22} parent=0 // pred_check_branch
    %19 = sbr.rel (0) target = $region21
  $region20: #{quant_dit_forward.22} parent=0 // pred_region
    _
  $region21: #{quant_dit_forward.22} parent=0 // pred_fallthru
    _
  %p21 = scmp.eq.s32.totalorder 0, 0
  // Predicated region
  $region22: #{quant_dit_forward.22} parent=0 // pred_check
    %p22 = pneg %p21
  $region23: #{quant_dit_forward.22} parent=0 // pred_check_branch
    %24 = sbr.rel (%p22) target = $region25
  $region24: #{quant_dit_forward.22} parent=0 // pred_region
    %25 = vst [vmem:[#allocation2] sm:$0xff] 0.0
    %26 = vst [vmem:[#allocation2 + $0x8] sm:$0xff] 0.0
    %27 = vst [vmem:[#allocation2 + $0x10] sm:$0xff] 0.0
    %28 = vst [vmem:[#allocation2 + $0x18] sm:$0xff] 0.0
  $region25: #{quant_dit_forward.22} parent=0 // pred_fallthru
    _
  %v29 = vld [vmem:[#allocation2] sm:$0xff]
  %v30 = vld [vmem:[#allocation2 + $0x8] sm:$0xff]
  %v31 = vld [vmem:[#allocation2 + $0x10] sm:$0xff]
  %v32 = vld [vmem:[#allocation2 + $0x18] sm:$0xff]
  %v33 = vld [vmem:[%s0] sm:$0x3]
  %v34 = vld [vmem:[%s0 + $0x2] sm:$0x3]
  %v35 = vld [vmem:[%s0 + $0x4] sm:$0x3]
  %v36 = vld [vmem:[%s0 + $0x6] sm:$0x3]
  %v37 = vunpack.c.l.s8.bf16 %v33
  %v38 = vunpack.c.l.s8.bf16 %v34
  %v39 = vunpack.c.l.s8.bf16 %v35
  %v40 = vunpack.c.l.s8.bf16 %v36
  %v41 = vld [vmem:[%s2] sm:$0xff]
  %v42 = vld [vmem:[%s2 + $0x8] sm:$0xff]
  %v43 = vld [vmem:[%s2 + $0x10] sm:$0xff]
  %v44 = vld [vmem:[%s2 + $0x18] sm:$0xff]
  %v45 = vunpack.c.l.s8.bf16 %v41
  %v46 = vunpack.c.h.s8.bf16 %v41
  %v47 = vunpack.c.l.s8.bf16 %v42
  %v48 = vunpack.c.h.s8.bf16 %v42
  %v49 = vunpack.c.l.s8.bf16 %v43
  %v50 = vunpack.c.h.s8.bf16 %v43
  %v51 = vunpack.c.l.s8.bf16 %v44
  %v52 = vunpack.c.h.s8.bf16 %v44
  %v57 = vunpack.c.l.b16 %v37
  %v58 = vunpack.c.l.b16 %v38
  %v59 = vunpack.c.l.b16 %v39
  %v60 = vunpack.c.l.b16 %v40
  %v61 = vpack.c.b16 %v58, %v57
  %v62 = vpack.c.b16 %v60, %v59
  %65 = vmatprep.subr.bf16.mxu0 0
  %66 = vmatpush1.bf16.msra.mxu0 %v52
  %67 = vmatprep.subr.bf16.mxu0 0
  %68 = vmatpush1.bf16.msra.mxu0 %v51
  %69 = vmatprep.subr.bf16.mxu0 0
  %70 = vmatpush1.bf16.msra.mxu0 %v50
  %71 = vmatprep.subr.bf16.mxu0 0
  %72 = vmatpush1.bf16.msra.mxu0 %v49
  %73 = vmatprep.subr.bf16.mxu0 0
  %74 = vmatpush1.bf16.msra.mxu0 %v48
  %75 = vmatprep.subr.bf16.mxu0 0
  %76 = vmatpush1.bf16.msra.mxu0 %v47
  %77 = vmatprep.subr.bf16.mxu0 0
  %78 = vmatpush1.bf16.msra.mxu0 %v46
  %79 = vmatprep.subr.bf16.mxu0 0
  %80 = vmatpush1.bf16.msra.mxu0 %v45
  %81 = vmatprep.subr.bf16.mxu0 0
  %82 = vmatpush2.bf16.msra.mxu0 0
  %83 = vmatprep.subr.bf16.mxu0 0
  %84 = vmatpush2.bf16.msra.mxu0 0
  %85 = vmatprep.subr.bf16.mxu0 0
  %86 = vmatpush2.bf16.msra.mxu0 0
  %87 = vmatprep.subr.bf16.mxu0 0
  %88 = vmatpush2.bf16.msra.mxu0 0
  %89 = vmatprep.subr.bf16.mxu0 0
  %90 = vmatpush2.bf16.msra.mxu0 0
  %91 = vmatprep.subr.bf16.mxu0 0
  %92 = vmatpush2.bf16.msra.mxu0 0
  %93 = vmatprep.subr.bf16.mxu0 0
  %94 = vmatpush2.bf16.msra.mxu0 0
  %95 = vmatprep.subr.bf16.mxu0 0
  %96 = vmatpush2.bf16.msra.mxu0 0
  %97 = vmatprep.mubr.bf16.mxu0 0
  %98 = vmatmul.mubr.bf16.gmra.mxu0 %v61
  %v99 = vpop.f32.mrf.mxu0
  %v100 = vadd.f32 0.0, %v99
  %v101 = vpop.f32.mrf.mxu0
  %v102 = vpop.f32.mrf.mxu0
  %v103 = vadd.f32 0.0, %v102
  %v104 = vpop.f32.mrf.mxu0
  %105 = vmatprep.mubr.bf16.mxu0 0
  %106 = vmatmul.mubr.bf16.gmra.mxu0 %v62
  %v107 = vpop.f32.mrf.mxu0
  %v108 = vadd.f32 0.0, %v107
  %v109 = vpop.f32.mrf.mxu0
  %v110 = vpop.f32.mrf.mxu0
  %v111 = vadd.f32 0.0, %v110
  %v112 = vpop.f32.mrf.mxu0
  %113 = vdwg.mxu0
  %v114 = vadd.f32 %v29, %v100
  %v115 = vadd.f32 %v30, %v103
  %v116 = vadd.f32 %v31, %v108
  %v117 = vadd.f32 %v32, %v111
  %118 = vst [vmem:[#allocation2] sm:$0xff] %v114
  %119 = vst [vmem:[#allocation2 + $0x8] sm:$0xff] %v115
  %120 = vst [vmem:[#allocation2 + $0x10] sm:$0xff] %v116
  %121 = vst [vmem:[#allocation2 + $0x18] sm:$0xff] %v117
  // Predicated region
  $region26: #{quant_dit_forward.22} parent=0 // pred_check
    %p122 = pneg %p21
  $region27: #{quant_dit_forward.22} parent=0 // pred_check_branch
    %124 = sbr.rel (%p122) target = $region29
  $region28: #{quant_dit_forward.22} parent=0 // pred_region
    %v125 = vld [vmem:[#allocation2] sm:$0xff]
    %v126 = vld [vmem:[#allocation2 + $0x8] sm:$0xff]
    %v127 = vld [vmem:[#allocation2 + $0x10] sm:$0xff]
    %v128 = vld [vmem:[#allocation2 + $0x18] sm:$0xff]
    %v129 = vld [vmem:[%s1] sm:$0xff]
    %v130 = vld [vmem:[%s1 + $0x8] sm:$0xff]
    %v131 = vld [vmem:[%s1 + $0x10] sm:$0xff]
    %v132 = vld [vmem:[%s1 + $0x18] sm:$0xff]
    %134 = vset.pattern.permute.xlu0 0
    %135 = vperm.xlu0 %134, %v129
    %v136 = vpop.permute.xlu0 %135
    %139 = vset.pattern.permute.xlu0 0
    %140 = vperm.xlu0 %139, %v130
    %v141 = vpop.permute.xlu0 %140
    %144 = vset.pattern.permute.xlu0 0
    %145 = vperm.xlu0 %144, %v131
    %v146 = vpop.permute.xlu0 %145
    %149 = vset.pattern.permute.xlu0 0
    %150 = vperm.xlu0 %149, %v132
    %v151 = vpop.permute.xlu0 %150
    %v153 = vmul.f32 %v125, %v136
    %v154 = vmul.f32 %v126, %v141
    %v155 = vmul.f32 %v127, %v146
    %v156 = vmul.f32 %v128, %v151
    %v157 = vld [vmem:[%s3] sm:$0x1]
    %v159 = vlaneseq
    %v160 = vshrl.u32 %v159, 7
    %v161 = vsub.s32 0, %v160
    %v162 = vrot.slane %v157, %v161
    %v164 = vmul.f32 %v153, %v162
    %v165 = vmul.f32 %v154, %v162
    %v166 = vmul.f32 %v155, %v162
    %v167 = vmul.f32 %v156, %v162
    %v168 = vld [vmem:[%s4] sm:$0x1]
    %v170 = vlaneseq
    %v171 = vshrl.u32 %v170, 7
    %v172 = vsub.s32 0, %v171
    %v173 = vrot.slane %v168, %v172
    %v175 = vadd.f32 %v164, %v173
    %v176 = vadd.f32 %v165, %v173
    %v177 = vadd.f32 %v166, %v173
    %v178 = vadd.f32 %v167, %v173
    %v179 = vpack.c.bf16 %v176, %v175
    %v180 = vpack.c.bf16 %v178, %v177
    %v183 = vunpack.c.l.b16 %v179
    %v184 = vunpack.c.h.b16 %v179
    %v185 = vunpack.c.l.b16 %v180
    %v186 = vunpack.c.h.b16 %v180
    %v187 = vpack.c.b16 %v183, %v183
    %v188 = vpack.c.b16 %v184, %v184
    %v189 = vpack.c.b16 %v185, %v185
    %v190 = vpack.c.b16 %v186, %v186
    %195 = vst [vmem:[%s5] sm:$0xf] %v187
    %196 = vst [vmem:[%s5 + $0x4] sm:$0xf] %v188
    %197 = vst [vmem:[%s5 + $0x8] sm:$0xf] %v189
    %198 = vst [vmem:[%s5 + $0xc] sm:$0xf] %v190
  $region29: #{quant_dit_forward.22} parent=0 // pred_fallthru
    _
  // Predicated region
  $region30: #{quant_dit_forward.22} parent=0 // pred_check
    _
  $region31: #{quant_dit_forward.22} parent=0 // pred_check_branch
    %200 = sbr.rel (0) target = $region33
  $region32: #{quant_dit_forward.22} parent=0 // pred_region
    _
  $region33: #{quant_dit_forward.22} parent=0 // pred_fallthru
    _
  // Predicated region
  $region34: #{quant_dit_forward.22} parent=0 // pred_check
    _
  $region35: #{quant_dit_forward.22} parent=0 // pred_check_branch
    %202 = sbr.rel (0) target = $region37
  $region36: #{quant_dit_forward.22} parent=0 // pred_region
    _
  $region37: #{quant_dit_forward.22} parent=0 // pred_fallthru
    _

// kernel: quant_dit_forward.27
$region0: #{quant_dit_forward.27}
  #allocation0 [shape = 'u32[]', space=smem, size = 0x4, offset = 0x4, fixed_abs, tag = 'smem constant byte address 0x4 - core index']
  #allocation1 [shape = 'u32[144,128]{1,0:T(1,128)}', space=vmem, size = 0x12000, scoped, tag = 'internal scratch']
  %s0 = inlined_call_operand.vmem [shape: bf16[2,16,128], index: 0, kind: input, shape index: {}]
  %s1 = inlined_call_operand.vmem [shape: s8[2,16,128], index: 1, kind: output, shape index: {0}]
  %s2 = inlined_call_operand.vmem [shape: f32[2,16,1], index: 2, kind: output, shape index: {1}]
  %3 = xla_tuple %s1, %s2
  %s4 = sld [smem:[#allocation0]]
  $region45: #{quant_dit_forward.27} parent=0
    _
  %s6 = ssub.s32 1, %s4
  %s7 = scalar_select 0, %s6, %s4
  loop: start=0, step=1, limit=4
  $region2: #{quant_dit_forward.27} parent=0 // loop_pre_header
    _
  $region3: #{quant_dit_forward.27} parent=0 // loop_header
    %s9 = sphi 0, %s13
    %p10 = scmp.ge.s32.totalorder %s9, 4
    %s16 = sphi 0, %s28
    %s17 = sphi 0, %s24
    %s18 = sphi 0, %s16
    %s19 = sphi 0, %s17
    %s20 = sphi 0, %s18
    %s21 = sphi 0, %s19
    %s33 = sphi 0, %s35
    %s36 = sphi 0, %s33
    %s37 = sphi 0, %s36
    %s53 = sphi 0, %s37
    %s61 = sphi 0, %s63
    %s64 = sphi 0, %s61
    %s65 = sphi 0, %s64
    %s81 = sphi 0, %s65
    %s89 = sphi 0, %s91
    %s92 = sphi 0, %s89
    %s93 = sphi 0, %s92
    %s109 = sphi 0, %s93
  $region4: #{quant_dit_forward.27} parent=0 // loop_header_branch
    %12 = sbr.rel (%p10) target = $region8
  $region5: #{quant_dit_forward.27} parent=0 // loop_body
    %s14 = ssub.s32 %s9, 1
    %s15 = ssub.s32 %s9, 2
    %s22 = sadd.s32 1, %s17
    %p23 = scmp.ge.s32.totalorder %s22, 1
    %s24 = scalar_select %p23, 0, %s22
    %s25 = sadd.s32 1, %s16
    %s26 = scalar_select %p23, %s25, %s16
    %p27 = scmp.ge.s32.totalorder %s26, 2
    %s28 = scalar_select %p27, 0, %s26
    %s29 = ssub.s32 %s16, %s28
    %s30 = ssub.s32 %s17, %s24
    %s31 = sor.u32 %s29, %s30
    %p32 = scmp.eq.s32.totalorder %s31, 0
    %s34 = sadd.s32 %s33, 1
    %s35 = scalar_select %p32, %s33, %s34
    %p38 = pneg %p32
    %p39 = scmp.eq.s32.totalorder %s9, 1
    %p40 = por %p38, %p39
    %p41 = scmp.ne.s32.totalorder %s33, %s36
    %p42 = scmp.eq.s32.totalorder %s9, 0
    %p43 = por %p41, %p42
    %p44 = scmp.ne.s32.totalorder %s33, %s36
    %p45 = scmp.eq.s32.totalorder %s14, 1
    %p46 = por %p44, %p45
    %p47 = scmp.ne.s32.totalorder %s36, %s37
    %p48 = scmp.eq.s32.totalorder %s14, 0
    %p49 = por %p47, %p48
    %p50 = scmp.ne.s32.totalorder %s36, %s37
    %p51 = scmp.eq.s32.totalorder %s15, 1
    %p52 = por %p50, %p51
    %p54 = scmp.ne.s32.totalorder %s37, %s53
    %p55 = scmp.eq.s32.totalorder %s15, 0
    %p56 = por %p54, %p55
    %s57 = ssub.s32 %s16, %s28
    %s58 = ssub.s32 %s17, %s24
    %s59 = sor.u32 %s57, %s58
    %p60 = scmp.eq.s32.totalorder %s59, 0
    %s62 = sadd.s32 %s61, 1
    %s63 = scalar_select %p60, %s61, %s62
    %p66 = pneg %p60
    %p67 = scmp.eq.s32.totalorder %s9, 1
    %p68 = por %p66, %p67
    %p69 = scmp.ne.s32.totalorder %s61, %s64
    %p70 = scmp.eq.s32.totalorder %s9, 0
    %p71 = por %p69, %p70
    %p72 = scmp.ne.s32.totalorder %s61, %s64
    %p73 = scmp.eq.s32.totalorder %s14, 1
    %p74 = por %p72, %p73
    %p75 = scmp.ne.s32.totalorder %s64, %s65
    %p76 = scmp.eq.s32.totalorder %s14, 0
    %p77 = por %p75, %p76
    %p78 = scmp.ne.s32.totalorder %s64, %s65
    %p79 = scmp.eq.s32.totalorder %s15, 1
    %p80 = por %p78, %p79
    %p82 = scmp.ne.s32.totalorder %s65, %s81
    %p83 = scmp.eq.s32.totalorder %s15, 0
    %p84 = por %p82, %p83
    %s85 = ssub.s32 %s16, %s28
    %s86 = ssub.s32 %s17, %s24
    %s87 = sor.u32 %s85, %s86
    %p88 = scmp.eq.s32.totalorder %s87, 0
    %s90 = sadd.s32 %s89, 1
    %s91 = scalar_select %p88, %s89, %s90
    %p94 = pneg %p88
    %p95 = scmp.eq.s32.totalorder %s9, 1
    %p96 = por %p94, %p95
    %p97 = scmp.ne.s32.totalorder %s89, %s92
    %p98 = scmp.eq.s32.totalorder %s9, 0
    %p99 = por %p97, %p98
    %p100 = scmp.ne.s32.totalorder %s89, %s92
    %p101 = scmp.eq.s32.totalorder %s14, 1
    %p102 = por %p100, %p101
    %p103 = scmp.ne.s32.totalorder %s92, %s93
    %p104 = scmp.eq.s32.totalorder %s14, 0
    %p105 = por %p103, %p104
    %p106 = scmp.ne.s32.totalorder %s92, %s93
    %p107 = scmp.eq.s32.totalorder %s15, 1
    %p108 = por %p106, %p107
    %p110 = scmp.ne.s32.totalorder %s93, %s109
    %p111 = scmp.eq.s32.totalorder %s15, 0
    %p112 = por %p110, %p111
    %p113 = scmp.le.s32.totalorder 1, %s9
    %p114 = scmp.lt.s32.totalorder %s9, 3
    %p115 = pnand %p113, %p114
    %p116 = pneg %p115
    // Predicated region
    $region9: #{quant_dit_forward.27} parent=5 // pred_check
      _
    $region10: #{quant_dit_forward.27} parent=5 // pred_check_branch
      %118 = sbr.rel (%p115) target = $region12
    $region11: #{quant_dit_forward.27} parent=5 // pred_region
      %s119 = ssub.s32 %s9, 1
    $region12: #{quant_dit_forward.27} parent=5 // pred_fallthru
      _
    %p120 = scmp.lt.s32.totalorder %s9, 2
    // Predicated region
    $region13: #{quant_dit_forward.27} parent=5 // pred_check
      %p121 = pneg %p120
    $region14: #{quant_dit_forward.27} parent=5 // pred_check_branch
      %123 = sbr.rel (%p121) target = $region16
    $region15: #{quant_dit_forward.27} parent=5 // pred_region
      // Predicated region
      $region17: #{quant_dit_forward.27} parent=15 // pred_check
        %p124 = pneg %p43
      $region18: #{quant_dit_forward.27} parent=15 // pred_check_branch
        %126 = sbr.rel (%p124) target = $region20
      $region19: #{quant_dit_forward.27} parent=15 // pred_region
        %s127 = smul.u32 2, %s17
        %p128 = scmp.lt.s32.totalorder %s16, 1
        %s129 = scalar_select %p128, %s16, 1
        %p130 = scmp.lt.s32.totalorder %s127, 1
        %s131 = scalar_select %p130, %s127, 1
        %s132 = smul.addr %s129, 2
        %s133 = sadd.s32 %s131, %s132
        %s134 = smul.addr %s133, 4
        %s135 = scalar_lea.vmem %s0, %s134
        %s136 = smul.u32 2, %s17
      $region20: #{quant_dit_forward.27} parent=15 // pred_fallthru
        _
    $region16: #{quant_dit_forward.27} parent=5 // pred_fallthru
      _
    %p137 = scmp.le.s32.totalorder 1, %s9
    %p138 = scmp.lt.s32.totalorder %s9, 3
    %p139 = pnand %p137, %p138
    %p140 = pneg %p139
    // Predicated region
    $region21: #{quant_dit_forward.27} parent=5 // pred_check
      _
    $region22: #{quant_dit_forward.27} parent=5 // pred_check_branch
      %142 = sbr.rel (%p139) target = $region24
    $region23: #{quant_dit_forward.27} parent=5 // pred_region
      %s143 = ssub.s32 %s9, 1
      %s144 = smul.u32 2, %s19
      %p145 = scmp.lt.s32.totalorder %s18, 1
      %s146 = scalar_select %p145, %s18, 1
      %p147 = scmp.lt.s32.totalorder %s144, 1
      %s148 = scalar_select %p147, %s144, 1
      %s149 = smul.addr %s146, 2
      %s150 = sadd.s32 %s148, %s149
      %s151 = smul.addr %s150, 4
      %s152 = scalar_lea.vmem %s0, %s151
      %p153 = pneg %p49
      %p154 = pneg %p46
      %p155 = pneg %p77
      %p156 = pneg %p74
      %s157 = smul.u32 2, %s19
      %p158 = scmp.lt.s32.totalorder %s18, 1
      %s159 = scalar_select %p158, %s18, 1
      %p160 = scmp.lt.s32.totalorder %s157, 1
      %s161 = scalar_select %p160, %s157, 1
      %s162 = smul.addr %s159, 2
      %s163 = sadd.s32 %s161, %s162
      %s164 = smul.addr %s163, 2
      %s165 = scalar_lea.vmem %s1, %s164
      %p166 = pneg %p105
      %p167 = pneg %p102
      %s168 = smul.u32 2, %s19
      %p169 = scmp.lt.s32.totalorder %s18, 1
      %s170 = scalar_select %p169, %s18, 1
      %p171 = scmp.lt.s32.totalorder %s168, 1
      %s172 = scalar_select %p171, %s168, 1
      %s173 = smul.addr %s170, 2
      %s174 = sadd.s32 %s172, %s173
      %s175 = smul.addr %s174, 8
      %s176 = scalar_lea.vmem %s2, %s175
      %s177 = smul.u32 2, %s19
      %p178 = scmp.lt.s32.totalorder %s18, 1
      %s179 = scalar_select %p178, %s18, 1
      %p180 = scmp.lt.s32.totalorder %s177, 1
      %s181 = scalar_select %p180, %s177, 1
      %s182 = smul.addr %s179, 2
      %s183 = sadd.s32 %s181, %s182
      %s184 = smul.addr %s183, 4
      %s185 = scalar_lea.vmem %s0, %s184
      %s186 = smul.u32 2, %s19
      %s187 = smul.u32 2, %s19
      %p188 = scmp.lt.s32.totalorder %s18, 1
      %s189 = scalar_select %p188, %s18, 1
      %p190 = scmp.lt.s32.totalorder %s187, 1
      %s191 = scalar_select %p190, %s187, 1
      %s192 = smul.addr %s189, 2
      %s193 = sadd.s32 %s191, %s192
      %s194 = smul.addr %s193, 2
      %s195 = scalar_lea.vmem %s1, %s194
      %s196 = smul.u32 2, %s19
      %s197 = smul.u32 2, %s19
      %p198 = scmp.lt.s32.totalorder %s18, 1
      %s199 = scalar_select %p198, %s18, 1
      %p200 = scmp.lt.s32.totalorder %s197, 1
      %s201 = scalar_select %p200, %s197, 1
      %s202 = smul.addr %s199, 2
      %s203 = sadd.s32 %s201, %s202
      %s204 = smul.addr %s203, 8
      %s205 = scalar_lea.vmem %s2, %s204
      %s206 = smul.u32 2, %s19
      %v207 = vld [vmem:[%s185] sm:$0xf]
      %v208 = vld [vmem:[%s185 + $0x4] sm:$0xf]
      %v209 = vunpack.c.l.bf16 %v207
      %v210 = vunpack.c.l.bf16 %v208
      %211 = vadd.xlane.f32.xlu0 %v209
      %v212 = vpop.xlane.xlu0 %211
      %213 = vadd.xlane.f32.xlu0 %v210
      %v214 = vpop.xlane.xlu0 %213
      %v215 = vrcp.pop 128.0
      %v216 = vmul.f32 %v212, %v215
      %v217 = vmul.f32 %v214, %v215
      %v218 = vmul.f32 %v209, %v209
      %v219 = vmul.f32 %v210, %v210
      %220 = vadd.xlane.f32.xlu0 %v218
      %v221 = vpop.xlane.xlu0 %220
      %222 = vadd.xlane.f32.xlu0 %v219
      %v223 = vpop.xlane.xlu0 %222
      %v224 = vmul.f32 %v221, %v215
      %v225 = vmul.f32 %v223, %v215
      %v226 = vmul.f32 %v216, %v216
      %v227 = vmul.f32 %v217, %v217
      %v228 = vsub.f32 %v224, %v226
      %v229 = vsub.f32 %v225, %v227
      %v230 = vmax.f32 %v228, 0.0
      %v231 = vmax.f32 %v229, 0.0
      %v232 = vsub.f32 %v209, %v216
      %v233 = vsub.f32 %v210, %v217
      %v234 = vadd.f32 %v230, 1e-05
      %v235 = vadd.f32 %v231, 1e-05
      %v236 = vrsqrt.pop %v234
      %v237 = vrsqrt.pop %v235
      %v238 = vmul.f32 %v232, %v236
      %v239 = vmul.f32 %v233, %v237
      %v240 = vand.u32 2147483647, %v238
      %v241 = vand.u32 2147483647, %v239
      %242 = vmax.xlane.f32.xlu0 %v240
      %v243 = vpop.xlane.xlu0 %242
      %244 = vmax.xlane.f32.xlu0 %v241
      %v245 = vpop.xlane.xlu0 %244
      %v246 = vmul.f32 %v243, 0.007874016
      %v247 = vmul.f32 %v245, 0.007874016
      %vm248 = vcmp.gt.f32.partialorder %v246, 0.0
      %vm249 = vcmp.gt.f32.partialorder %v247, 0.0
      %v250 = vsel %vm248, %v246, 1.0
      %v251 = vsel %vm249, %v247, 1.0
      %v252 = vrcp.pop %v250
      %v253 = vrcp.pop %v251
      %v254 = vmul.f32 %v238, %v252
      %v255 = vmul.f32 %v239, %v253
      %v256 = vround.ne.pseudo %v254
      %v257 = vround.ne.pseudo %v255
      %v258 = vmax.f32 %v256, -127.0
      %v259 = vmax.f32 %v257, -127.0
      %v260 = vmin.f32 %v258, 127.0
      %v261 = vmin.f32 %v259, 127.0
      %v262 = vmax.f32 %v260, -128.0
      %v263 = vmax.f32 %v261, -128.0
      %v264 = vmin.f32 %v262, 127.0
      %v265 = vmin.f32 %v263, 127.0
      %v266 = vcvt.f32.s32.to.zero.pseudo %v264
      %v267 = vcvt.f32.s32.to.zero.pseudo %v265
      %v268 = vpack.c.b16 %v266, %v266
      %v269 = vpack.c.b8 %v268, %v268
      %v270 = vpack.c.b16 %v267, %v267
      %v271 = vpack.c.b8 %v270, %v270
      %272 = vst [vmem:[%s195] sm:$0x3] %v269
      %273 = vst [vmem:[%s195 + $0x2] sm:$0x3] %v271
      %vm274 = vcmask 7168
      %275 = vst.msk [vmem:[%s205] sm:$0xff] %vm274, %v246
      %276 = vst.msk [vmem:[%s205 + $0x8] sm:$0xff] %vm274, %v247
      %s277 = smul.u32 2, %s19
      %p278 = scmp.lt.s32.totalorder %s18, 1
      %s279 = scalar_select %p278, %s18, 1
      %p280 = scmp.lt.s32.totalorder %s277, 1
      %s281 = scalar_select %p280, %s277, 1
      %s282 = smul.addr %s279, 2
      %s283 = sadd.s32 %s281, %s282
      %s284 = smul.addr %s283, 2
      %s285 = scalar_lea.vmem %s1, %s284
      %s286 = smul.u32 2, %s19
      %p287 = scmp.lt.s32.totalorder %s18, 1
      %s288 = scalar_select %p287, %s18, 1
      %p289 = scmp.lt.s32.totalorder %s286, 1
      %s290 = scalar_select %p289, %s286, 1
      %s291 = smul.addr %s288, 2
      %s292 = sadd.s32 %s290, %s291
      %s293 = smul.addr %s292, 8
      %s294 = scalar_lea.vmem %s2, %s293
      // Predicated region
      $region25: #{quant_dit_forward.27} parent=23 // pred_check
        %p295 = pneg %p74
      $region26: #{quant_dit_forward.27} parent=23 // pred_check_branch
        %297 = sbr.rel (%p295) target = $region28
      $region27: #{quant_dit_forward.27} parent=23 // pred_region
        %s298 = smul.u32 2, %s19
      $region28: #{quant_dit_forward.27} parent=23 // pred_fallthru
        _
      // Predicated region
      $region29: #{quant_dit_forward.27} parent=23 // pred_check
        %p299 = pneg %p102
      $region30: #{quant_dit_forward.27} parent=23 // pred_check_branch
        %301 = sbr.rel (%p299) target = $region32
      $region31: #{quant_dit_forward.27} parent=23 // pred_region
        %s302 = smul.u32 2, %s19
      $region32: #{quant_dit_forward.27} parent=23 // pred_fallthru
        _
    $region24: #{quant_dit_forward.27} parent=5 // pred_fallthru
      _
    %p303 = scmp.le.s32.totalorder 2, %s9
    // Predicated region
    $region33: #{quant_dit_forward.27} parent=5 // pred_check
      %p304 = pneg %p303
    $region34: #{quant_dit_forward.27} parent=5 // pred_check_branch
      %306 = sbr.rel (%p304) target = $region36
    $region35: #{quant_dit_forward.27} parent=5 // pred_region
      %s307 = ssub.s32 %s9, 2
      // Predicated region
      $region37: #{quant_dit_forward.27} parent=35 // pred_check
        %p308 = pneg %p80
      $region38: #{quant_dit_forward.27} parent=35 // pred_check_branch
        %310 = sbr.rel (%p308) target = $region40
      $region39: #{quant_dit_forward.27} parent=35 // pred_region
        %s311 = smul.u32 2, %s21
        %p312 = scmp.lt.s32.totalorder %s20, 1
        %s313 = scalar_select %p312, %s20, 1
        %p314 = scmp.lt.s32.totalorder %s311, 1
        %s315 = scalar_select %p314, %s311, 1
        %s316 = smul.addr %s313, 2
        %s317 = sadd.s32 %s315, %s316
        %s318 = smul.addr %s317, 2
        %s319 = scalar_lea.vmem %s1, %s318
      $region40: #{quant_dit_forward.27} parent=35 // pred_fallthru
        _
      // Predicated region
      $region41: #{quant_dit_forward.27} parent=35 // pred_check
        %p320 = pneg %p108
      $region42: #{quant_dit_forward.27} parent=35 // pred_check_branch
        %322 = sbr.rel (%p320) target = $region44
      $region43: #{quant_dit_forward.27} parent=35 // pred_region
        %s323 = smul.u32 2, %s21
        %p324 = scmp.lt.s32.totalorder %s20, 1
        %s325 = scalar_select %p324, %s20, 1
        %p326 = scmp.lt.s32.totalorder %s323, 1
        %s327 = scalar_select %p326, %s323, 1
        %s328 = smul.addr %s325, 2
        %s329 = sadd.s32 %s327, %s328
        %s330 = smul.addr %s329, 8
        %s331 = scalar_lea.vmem %s2, %s330
      $region44: #{quant_dit_forward.27} parent=35 // pred_fallthru
        _
    $region36: #{quant_dit_forward.27} parent=5 // pred_fallthru
      _
  $region6: #{quant_dit_forward.27} parent=0 // loop_footer
    %s13 = sadd.s32 1, %s9
  $region7: #{quant_dit_forward.27} parent=0 // loop_footer_branch
    %8 = sbr.rel target = $region3
  $region8: #{quant_dit_forward.27} parent=0 // loop_exit
    _

// kernel: quant_dit_forward.25
$region0: #{quant_dit_forward.25}
  #allocation0 [shape = 'u32[]', space=smem, size = 0x4, offset = 0x4, fixed_abs, tag = 'smem constant byte address 0x4 - core index']
  #allocation1 [shape = 'u32[144,128]{1,0:T(1,128)}', space=vmem, size = 0x12000, scoped, tag = 'internal scratch']
  #allocation2 [shape = 'f32[16,128]{1,0:T(8,128)}', space=vmem, size = 0x2000, scoped, tag = 'scratch operand']
  %s0 = inlined_call_operand.vmem [shape: bf16[2,16,128], index: 0, kind: input, shape index: {}]
  %s1 = inlined_call_operand.vmem [shape: bf16[2,24,128], index: 1, kind: input, shape index: {}]
  %s2 = inlined_call_operand.vmem [shape: bf16[2,24,128], index: 2, kind: input, shape index: {}]
  %s3 = inlined_call_operand.vmem [shape: s8[2,16,128], index: 3, kind: output, shape index: {0}]
  %s4 = inlined_call_operand.vmem [shape: f32[2,16,1], index: 4, kind: output, shape index: {1}]
  %5 = xla_tuple %s3, %s4
  %s6 = sld [smem:[#allocation0]]
  $region53: #{quant_dit_forward.25} parent=0
    _
  %s8 = ssub.s32 1, %s6
  %s9 = scalar_select 0, %s8, %s6
  loop: start=0, step=1, limit=4
  $region2: #{quant_dit_forward.25} parent=0 // loop_pre_header
    _
  $region3: #{quant_dit_forward.25} parent=0 // loop_header
    %s11 = sphi 0, %s15
    %p12 = scmp.ge.s32.totalorder %s11, 4
    %s18 = sphi 0, %s37
    %s19 = sphi 0, %s33
    %s20 = sphi 0, %s29
    %s21 = sphi 0, %s18
    %s22 = sphi 0, %s19
    %s23 = sphi 0, %s20
    %s24 = sphi 0, %s21
    %s25 = sphi 0, %s22
    %s26 = sphi 0, %s23
    %s42 = sphi 0, %s44
    %s45 = sphi 0, %s42
    %s46 = sphi 0, %s45
    %s62 = sphi 0, %s46
    %s70 = sphi 0, %s72
    %s73 = sphi 0, %s70
    %s74 = sphi 0, %s73
    %s90 = sphi 0, %s74
    %s98 = sphi 0, %s100
    %s101 = sphi 0, %s98
    %s102 = sphi 0, %s101
    %s118 = sphi 0, %s102
    %s126 = sphi 0, %s128
    %s129 = sphi 0, %s126
    %s130 = sphi 0, %s129
    %s146 = sphi 0, %s130
    %s154 = sphi 0, %s156
    %s157 = sphi 0, %s154
    %s158 = sphi 0, %s157
    %s174 = sphi 0, %s158
  $region4: #{quant_dit_forward.25} parent=0 // loop_header_branch
    %14 = sbr.rel (%p12) target = $region8
  $region5: #{quant_dit_forward.25} parent=0 // loop_body
    %s16 = ssub.s32 %s11, 1
    %s17 = ssub.s32 %s11, 2
    %s27 = sadd.s32 1, %s20
    %p28 = scmp.ge.s32.totalorder %s27, 1
    %s29 = scalar_select %p28, 0, %s27
    %s30 = sadd.s32 1, %s19
    %s31 = scalar_select %p28, %s30, %s19
    %p32 = scmp.ge.s32.totalorder %s31, 1
    %s33 = scalar_select %p32, 0, %s31
    %s34 = sadd.s32 1, %s18
    %s35 = scalar_select %p32, %s34, %s18
    %p36 = scmp.ge.s32.totalorder %s35, 2
    %s37 = scalar_select %p36, 0, %s35
    %s38 = ssub.s32 %s18, %s37
    %s39 = ssub.s32 %s19, %s33
    %s40 = sor.u32 %s38, %s39
    %p41 = scmp.eq.s32.totalorder %s40, 0
    %s43 = sadd.s32 %s42, 1
    %s44 = scalar_select %p41, %s42, %s43
    %p47 = pneg %p41
    %p48 = scmp.eq.s32.totalorder %s11, 1
    %p49 = por %p47, %p48
    %p50 = scmp.ne.s32.totalorder %s42, %s45
    %p51 = scmp.eq.s32.totalorder %s11, 0
    %p52 = por %p50, %p51
    %p53 = scmp.ne.s32.totalorder %s42, %s45
    %p54 = scmp.eq.s32.totalorder %s16, 1
    %p55 = por %p53, %p54
    %p56 = scmp.ne.s32.totalorder %s45, %s46
    %p57 = scmp.eq.s32.totalorder %s16, 0
    %p58 = por %p56, %p57
    %p59 = scmp.ne.s32.totalorder %s45, %s46
    %p60 = scmp.eq.s32.totalorder %s17, 1
    %p61 = por %p59, %p60
    %p63 = scmp.ne.s32.totalorder %s46, %s62
    %p64 = scmp.eq.s32.totalorder %s17, 0
    %p65 = por %p63, %p64
    %s66 = ssub.s32 %s18, %s37
    %s67 = ssub.s32 %s20, %s29
    %s68 = sor.u32 %s66, %s67
    %p69 = scmp.eq.s32.totalorder %s68, 0
    %s71 = sadd.s32 %s70, 1
    %s72 = scalar_select %p69, %s70, %s71
    %p75 = pneg %p69
    %p76 = scmp.eq.s32.totalorder %s11, 1
    %p77 = por %p75, %p76
    %p78 = scmp.ne.s32.totalorder %s70, %s73
    %p79 = scmp.eq.s32.totalorder %s11, 0
    %p80 = por %p78, %p79
    %p81 = scmp.ne.s32.totalorder %s70, %s73
    %p82 = scmp.eq.s32.totalorder %s16, 1
    %p83 = por %p81, %p82
    %p84 = scmp.ne.s32.totalorder %s73, %s74
    %p85 = scmp.eq.s32.totalorder %s16, 0
    %p86 = por %p84, %p85
    %p87 = scmp.ne.s32.totalorder %s73, %s74
    %p88 = scmp.eq.s32.totalorder %s17, 1
    %p89 = por %p87, %p88
    %p91 = scmp.ne.s32.totalorder %s74, %s90
    %p92 = scmp.eq.s32.totalorder %s17, 0
    %p93 = por %p91, %p92
    %s94 = ssub.s32 %s18, %s37
    %s95 = ssub.s32 %s20, %s29
    %s96 = sor.u32 %s94, %s95
    %p97 = scmp.eq.s32.totalorder %s96, 0
    %s99 = sadd.s32 %s98, 1
    %s100 = scalar_select %p97, %s98, %s99
    %p103 = pneg %p97
    %p104 = scmp.eq.s32.totalorder %s11, 1
    %p105 = por %p103, %p104
    %p106 = scmp.ne.s32.totalorder %s98, %s101
    %p107 = scmp.eq.s32.totalorder %s11, 0
    %p108 = por %p106, %p107
    %p109 = scmp.ne.s32.totalorder %s98, %s101
    %p110 = scmp.eq.s32.totalorder %s16, 1
    %p111 = por %p109, %p110
    %p112 = scmp.ne.s32.totalorder %s101, %s102
    %p113 = scmp.eq.s32.totalorder %s16, 0
    %p114 = por %p112, %p113
    %p115 = scmp.ne.s32.totalorder %s101, %s102
    %p116 = scmp.eq.s32.totalorder %s17, 1
    %p117 = por %p115, %p116
    %p119 = scmp.ne.s32.totalorder %s102, %s118
    %p120 = scmp.eq.s32.totalorder %s17, 0
    %p121 = por %p119, %p120
    %s122 = ssub.s32 %s18, %s37
    %s123 = ssub.s32 %s19, %s33
    %s124 = sor.u32 %s122, %s123
    %p125 = scmp.eq.s32.totalorder %s124, 0
    %s127 = sadd.s32 %s126, 1
    %s128 = scalar_select %p125, %s126, %s127
    %p131 = pneg %p125
    %p132 = scmp.eq.s32.totalorder %s11, 1
    %p133 = por %p131, %p132
    %p134 = scmp.ne.s32.totalorder %s126, %s129
    %p135 = scmp.eq.s32.totalorder %s11, 0
    %p136 = por %p134, %p135
    %p137 = scmp.ne.s32.totalorder %s126, %s129
    %p138 = scmp.eq.s32.totalorder %s16, 1
    %p139 = por %p137, %p138
    %p140 = scmp.ne.s32.totalorder %s129, %s130
    %p141 = scmp.eq.s32.totalorder %s16, 0
    %p142 = por %p140, %p141
    %p143 = scmp.ne.s32.totalorder %s129, %s130
    %p144 = scmp.eq.s32.totalorder %s17, 1
    %p145 = por %p143, %p144
    %p147 = scmp.ne.s32.totalorder %s130, %s146
    %p148 = scmp.eq.s32.totalorder %s17, 0
    %p149 = por %p147, %p148
    %s150 = ssub.s32 %s18, %s37
    %s151 = ssub.s32 %s19, %s33
    %s152 = sor.u32 %s150, %s151
    %p153 = scmp.eq.s32.totalorder %s152, 0
    %s155 = sadd.s32 %s154, 1
    %s156 = scalar_select %p153, %s154, %s155
    %p159 = pneg %p153
    %p160 = scmp.eq.s32.totalorder %s11, 1
    %p161 = por %p159, %p160
    %p162 = scmp.ne.s32.totalorder %s154, %s157
    %p163 = scmp.eq.s32.totalorder %s11, 0
    %p164 = por %p162, %p163
    %p165 = scmp.ne.s32.totalorder %s154, %s157
    %p166 = scmp.eq.s32.totalorder %s16, 1
    %p167 = por %p165, %p166
    %p168 = scmp.ne.s32.totalorder %s157, %s158
    %p169 = scmp.eq.s32.totalorder %s16, 0
    %p170 = por %p168, %p169
    %p171 = scmp.ne.s32.totalorder %s157, %s158
    %p172 = scmp.eq.s32.totalorder %s17, 1
    %p173 = por %p171, %p172
    %p175 = scmp.ne.s32.totalorder %s158, %s174
    %p176 = scmp.eq.s32.totalorder %s17, 0
    %p177 = por %p175, %p176
    %p178 = scmp.le.s32.totalorder 1, %s11
    %p179 = scmp.lt.s32.totalorder %s11, 3
    %p180 = pnand %p178, %p179
    %p181 = pneg %p180
    // Predicated region
    $region9: #{quant_dit_forward.25} parent=5 // pred_check
      _
    $region10: #{quant_dit_forward.25} parent=5 // pred_check_branch
      %183 = sbr.rel (%p180) target = $region12
    $region11: #{quant_dit_forward.25} parent=5 // pred_region
      %s184 = ssub.s32 %s11, 1
    $region12: #{quant_dit_forward.25} parent=5 // pred_fallthru
      _
    %p185 = scmp.lt.s32.totalorder %s11, 2
    // Predicated region
    $region13: #{quant_dit_forward.25} parent=5 // pred_check
      %p186 = pneg %p185
    $region14: #{quant_dit_forward.25} parent=5 // pred_check_branch
      %188 = sbr.rel (%p186) target = $region16
    $region15: #{quant_dit_forward.25} parent=5 // pred_region
      // Predicated region
      $region17: #{quant_dit_forward.25} parent=15 // pred_check
        %p189 = pneg %p52
      $region18: #{quant_dit_forward.25} parent=15 // pred_check_branch
        %191 = sbr.rel (%p189) target = $region20
      $region19: #{quant_dit_forward.25} parent=15 // pred_region
        %s192 = smul.u32 2, %s19
        %p193 = scmp.lt.s32.totalorder %s18, 1
        %s194 = scalar_select %p193, %s18, 1
        %p195 = scmp.lt.s32.totalorder %s192, 1
        %s196 = scalar_select %p195, %s192, 1
        %s197 = smul.addr %s194, 2
        %s198 = sadd.s32 %s196, %s197
        %s199 = smul.addr %s198, 4
        %s200 = scalar_lea.vmem %s0, %s199
        %s201 = smul.u32 2, %s19
      $region20: #{quant_dit_forward.25} parent=15 // pred_fallthru
        _
      // Predicated region
      $region21: #{quant_dit_forward.25} parent=15 // pred_check
        %p202 = pneg %p80
      $region22: #{quant_dit_forward.25} parent=15 // pred_check_branch
        %204 = sbr.rel (%p202) target = $region24
      $region23: #{quant_dit_forward.25} parent=15 // pred_region
        %s205 = smul.u32 3, %s20
        %p206 = scmp.lt.s32.totalorder %s18, 1
        %s207 = scalar_select %p206, %s18, 1
        %p208 = scmp.lt.s32.totalorder %s205, 2
        %s209 = scalar_select %p208, %s205, 2
        %s210 = smul.addr %s207, 3
        %s211 = sadd.s32 %s209, %s210
        %s212 = smul.addr %s211, 4
        %s213 = scalar_lea.vmem %s1, %s212
        %s214 = smul.u32 3, %s20
      $region24: #{quant_dit_forward.25} parent=15 // pred_fallthru
        _
      // Predicated region
      $region25: #{quant_dit_forward.25} parent=15 // pred_check
        %p215 = pneg %p108
      $region26: #{quant_dit_forward.25} parent=15 // pred_check_branch
        %217 = sbr.rel (%p215) target = $region28
      $region27: #{quant_dit_forward.25} parent=15 // pred_region
        %s218 = smul.u32 3, %s20
        %p219 = scmp.lt.s32.totalorder %s18, 1
        %s220 = scalar_select %p219, %s18, 1
        %p221 = scmp.lt.s32.totalorder %s218, 2
        %s222 = scalar_select %p221, %s218, 2
        %s223 = smul.addr %s220, 3
        %s224 = sadd.s32 %s222, %s223
        %s225 = smul.addr %s224, 4
        %s226 = scalar_lea.vmem %s2, %s225
        %s227 = smul.u32 3, %s20
      $region28: #{quant_dit_forward.25} parent=15 // pred_fallthru
        _
    $region16: #{quant_dit_forward.25} parent=5 // pred_fallthru
      _
    %p228 = scmp.le.s32.totalorder 1, %s11
    %p229 = scmp.lt.s32.totalorder %s11, 3
    %p230 = pnand %p228, %p229
    %p231 = pneg %p230
    // Predicated region
    $region29: #{quant_dit_forward.25} parent=5 // pred_check
      _
    $region30: #{quant_dit_forward.25} parent=5 // pred_check_branch
      %233 = sbr.rel (%p230) target = $region32
    $region31: #{quant_dit_forward.25} parent=5 // pred_region
      %s234 = ssub.s32 %s11, 1
      %s235 = smul.u32 2, %s22
      %p236 = scmp.lt.s32.totalorder %s21, 1
      %s237 = scalar_select %p236, %s21, 1
      %p238 = scmp.lt.s32.totalorder %s235, 1
      %s239 = scalar_select %p238, %s235, 1
      %s240 = smul.addr %s237, 2
      %s241 = sadd.s32 %s239, %s240
      %s242 = smul.addr %s241, 4
      %s243 = scalar_lea.vmem %s0, %s242
      %p244 = pneg %p58
      %p245 = pneg %p55
      %s246 = smul.u32 3, %s23
      %p247 = scmp.lt.s32.totalorder %s21, 1
      %s248 = scalar_select %p247, %s21, 1
      %p249 = scmp.lt.s32.totalorder %s246, 2
      %s250 = scalar_select %p249, %s246, 2
      %s251 = smul.addr %s248, 3
      %s252 = sadd.s32 %s250, %s251
      %s253 = smul.addr %s252, 4
      %s254 = scalar_lea.vmem %s1, %s253
      %p255 = pneg %p86
      %p256 = pneg %p83
      %s257 = smul.u32 3, %s23
      %p258 = scmp.lt.s32.totalorder %s21, 1
      %s259 = scalar_select %p258, %s21, 1
      %p260 = scmp.lt.s32.totalorder %s257, 2
      %s261 = scalar_select %p260, %s257, 2
      %s262 = smul.addr %s259, 3
      %s263 = sadd.s32 %s261, %s262
      %s264 = smul.addr %s263, 4
      %s265 = scalar_lea.vmem %s2, %s264
      %p266 = pneg %p114
      %p267 = pneg %p111
      %p268 = pneg %p142
      %p269 = pneg %p139
      %s270 = smul.u32 2, %s22
      %p271 = scmp.lt.s32.totalorder %s21, 1
      %s272 = scalar_select %p271, %s21, 1
      %p273 = scmp.lt.s32.totalorder %s270, 1
      %s274 = scalar_select %p273, %s270, 1
      %s275 = smul.addr %s272, 2
      %s276 = sadd.s32 %s274, %s275
      %s277 = smul.addr %s276, 2
      %s278 = scalar_lea.vmem %s3, %s277
      %p279 = pneg %p170
      %p280 = pneg %p167
      %s281 = smul.u32 2, %s22
      %p282 = scmp.lt.s32.totalorder %s21, 1
      %s283 = scalar_select %p282, %s21, 1
      %p284 = scmp.lt.s32.totalorder %s281, 1
      %s285 = scalar_select %p284, %s281, 1
      %s286 = smul.addr %s283, 2
      %s287 = sadd.s32 %s285, %s286
      %s288 = smul.addr %s287, 8
      %s289 = scalar_lea.vmem %s4, %s288
      %s290 = smul.u32 2, %s22
      %p291 = scmp.lt.s32.totalorder %s21, 1
      %s292 = scalar_select %p291, %s21, 1
      %p293 = scmp.lt.s32.totalorder %s290, 1
      %s294 = scalar_select %p293, %s290, 1
      %s295 = smul.addr %s292, 2
      %s296 = sadd.s32 %s294, %s295
      %s297 = smul.addr %s296, 4
      %s298 = scalar_lea.vmem %s0, %s297
      %s299 = smul.u32 2, %s22
      %s300 = smul.u32 3, %s23
      %p301 = scmp.lt.s32.totalorder %s21, 1
      %s302 = scalar_select %p301, %s21, 1
      %p303 = scmp.lt.s32.totalorder %s300, 2
      %s304 = scalar_select %p303, %s300, 2
      %s305 = smul.addr %s302, 3
      %s306 = sadd.s32 %s304, %s305
      %s307 = smul.addr %s306, 4
      %s308 = scalar_lea.vmem %s1, %s307
      %s309 = smul.u32 3, %s23
      %s310 = smul.u32 3, %s23
      %p311 = scmp.lt.s32.totalorder %s21, 1
      %s312 = scalar_select %p311, %s21, 1
      %p313 = scmp.lt.s32.totalorder %s310, 2
      %s314 = scalar_select %p313, %s310, 2
      %s315 = smul.addr %s312, 3
      %s316 = sadd.s32 %s314, %s315
      %s317 = smul.addr %s316, 4
      %s318 = scalar_lea.vmem %s2, %s317
      %s319 = smul.u32 3, %s23
      %s320 = smul.u32 2, %s22
      %p321 = scmp.lt.s32.totalorder %s21, 1
      %s322 = scalar_select %p321, %s21, 1
      %p323 = scmp.lt.s32.totalorder %s320, 1
      %s324 = scalar_select %p323, %s320, 1
      %s325 = smul.addr %s322, 2
      %s326 = sadd.s32 %s324, %s325
      %s327 = smul.addr %s326, 2
      %s328 = scalar_lea.vmem %s3, %s327
      %s329 = smul.u32 2, %s22
      %s330 = smul.u32 2, %s22
      %p331 = scmp.lt.s32.totalorder %s21, 1
      %s332 = scalar_select %p331, %s21, 1
      %p333 = scmp.lt.s32.totalorder %s330, 1
      %s334 = scalar_select %p333, %s330, 1
      %s335 = smul.addr %s332, 2
      %s336 = sadd.s32 %s334, %s335
      %s337 = smul.addr %s336, 8
      %s338 = scalar_lea.vmem %s4, %s337
      %s339 = smul.u32 2, %s22
      %v341 = vld [vmem:[%s308] sm:$0xf]
      %v342 = vld [vmem:[%s308 + $0x4] sm:$0xf]
      %v343 = vld [vmem:[%s308 + $0x8] sm:$0xf]
      %v344 = vld [vmem:[%s318] sm:$0xf]
      %v345 = vld [vmem:[%s318 + $0x4] sm:$0xf]
      %v346 = vld [vmem:[%s318 + $0x8] sm:$0xf]
      %v347 = vld [vmem:[%s298] sm:$0xf]
      %v348 = vld [vmem:[%s298 + $0x4] sm:$0xf]
      %v351 = vunpack.c.l.b16 %v347
      %v352 = vunpack.c.l.b16 %v348
      %v353 = vpack.c.b16 %v352, %v351
      %v357 = vunpack.c.l.b16 %v341
      %v358 = vunpack.c.l.b16 %v342
      %v359 = vunpack.c.l.b16 %v343
      %v360 = vpack.c.b16 %v358, %v357
      %v361 = vpack.c.b16 %v359, %v359
      %vm362 = vcmask 523264
      %v364 = vsel %vm362, %v353, 0
      %v367 = vsel %vm362, %v360, 0
      %v370 = vsel %vm362, %v361, 0
      %372 = vmatprep.subr.bf16.mxu0 0
      %373 = vmatpush1.bf16.xpose.msra.mxu0 0
      %374 = vmatprep.subr.bf16.mxu0 0
      %375 = vmatpush1.bf16.xpose.msra.mxu0 0
      %376 = vmatprep.subr.bf16.mxu0 0
      %377 = vmatpush1.bf16.xpose.msra.mxu0 0
      %378 = vmatprep.subr.bf16.mxu0 0
      %379 = vmatpush1.bf16.xpose.msra.mxu0 0
      %380 = vmatprep.subr.bf16.mxu0 0
      %381 = vmatpush1.bf16.xpose.msra.mxu0 0
      %382 = vmatprep.subr.bf16.mxu0 0
      %383 = vmatpush1.bf16.xpose.msra.mxu0 0
      %384 = vmatprep.subr.bf16.mxu0 0
      %385 = vmatpush1.bf16.xpose.msra.mxu0 %v370
      %386 = vmatprep.subr.bf16.mxu0 0
      %387 = vmatpush1.bf16.xpose.msra.mxu0 %v367
      %388 = vmatprep.subr.bf16.mxu0 0
      %389 = vmatpush2.bf16.xpose.msra.mxu0 0
      %390 = vmatprep.subr.bf16.mxu0 0
      %391 = vmatpush2.bf16.xpose.msra.mxu0 0
      %392 = vmatprep.subr.bf16.mxu0 0
      %393 = vmatpush2.bf16.xpose.msra.mxu0 0
      %394 = vmatprep.subr.bf16.mxu0 0
      %395 = vmatpush2.bf16.xpose.msra.mxu0 0
      %396 = vmatprep.subr.bf16.mxu0 0
      %397 = vmatpush2.bf16.xpose.msra.mxu0 0
      %398 = vmatprep.subr.bf16.mxu0 0
      %399 = vmatpush2.bf16.xpose.msra.mxu0 0
      %400 = vmatprep.subr.bf16.mxu0 0
      %401 = vmatpush2.bf16.xpose.msra.mxu0 0
      %402 = vmatprep.subr.bf16.mxu0 0
      %403 = vmatpush2.bf16.xpose.msra.mxu0 0
      %404 = vmatprep.mubr.bf16.mxu0 0
      %405 = vmatmul.mubr.bf16.gmra.mxu0 %v364
      %v406 = vpop.f32.mrf.mxu0
      %v407 = vadd.f32 0.0, %v406
      %v408 = vpop.f32.mrf.mxu0
      %v409 = vpop.f32.mrf.mxu0
      %v410 = vadd.f32 0.0, %v409
      %v411 = vpop.f32.mrf.mxu0
      %412 = vdwg.mxu0
      %vm413 = vcmask 195584
      %v414 = vsel %vm413, %v407, -inf
      %415 = vmax.xlane.f32.xlu0 %v414
      %v416 = vpop.xlane.xlu0 %415
      %v417 = vsel %vm413, %v410, -inf
      %418 = vmax.xlane.f32.xlu0 %v417
      %v419 = vpop.xlane.xlu0 %418
      %v420 = vsub.f32 %v407, %v416
      %v421 = vsub.f32 %v410, %v419
      %v422 = vmul.f32 %v420, 1.442695
      %v423 = vpow.pop %v422
      %v424 = vmul.f32 %v421, 1.442695
      %v425 = vpow.pop %v424
      %v426 = vsel %vm413, %v423, 0.0
      %427 = vadd.xlane.f32.xlu0 %v426
      %v428 = vpop.xlane.xlu0 %427
      %v429 = vsel %vm413, %v425, 0.0
      %430 = vadd.xlane.f32.xlu0 %v429
      %v431 = vpop.xlane.xlu0 %430
      %v432 = vpack.c.bf16 %v425, %v423
      %v436 = vunpack.c.l.b16 %v344
      %v437 = vunpack.c.l.b16 %v345
      %v438 = vunpack.c.l.b16 %v346
      %v439 = vpack.c.b16 %v437, %v436
      %v440 = vpack.c.b16 %v438, %v438
      %v443 = vsel %vm413, %v432, 0
      %vm445 = vcmask 1043456
      %v447 = vsel %vm445, %v440, 0
      %449 = vmatprep.subr.bf16.mxu0 0
      %450 = vmatpush1.bf16.msra.mxu0 0
      %451 = vmatprep.subr.bf16.mxu0 0
      %452 = vmatpush1.bf16.msra.mxu0 0
      %453 = vmatprep.subr.bf16.mxu0 0
      %454 = vmatpush1.bf16.msra.mxu0 0
      %455 = vmatprep.subr.bf16.mxu0 0
      %456 = vmatpush1.bf16.msra.mxu0 0
      %457 = vmatprep.subr.bf16.mxu0 0
      %458 = vmatpush1.bf16.msra.mxu0 0
      %459 = vmatprep.subr.bf16.mxu0 0
      %460 = vmatpush1.bf16.msra.mxu0 0
      %461 = vmatprep.subr.bf16.mxu0 0
      %462 = vmatpush1.bf16.msra.mxu0 %v447
      %463 = vmatprep.subr.bf16.mxu0 0
      %464 = vmatpush1.bf16.msra.mxu0 %v439
      %465 = vmatprep.subr.bf16.mxu0 0
      %466 = vmatpush2.bf16.msra.mxu0 0
      %467 = vmatprep.subr.bf16.mxu0 0
      %468 = vmatpush2.bf16.msra.mxu0 0
      %469 = vmatprep.subr.bf16.mxu0 0
      %470 = vmatpush2.bf16.msra.mxu0 0
      %471 = vmatprep.subr.bf16.mxu0 0
      %472 = vmatpush2.bf16.msra.mxu0 0
      %473 = vmatprep.subr.bf16.mxu0 0
      %474 = vmatpush2.bf16.msra.mxu0 0
      %475 = vmatprep.subr.bf16.mxu0 0
      %476 = vmatpush2.bf16.msra.mxu0 0
      %477 = vmatprep.subr.bf16.mxu0 0
      %478 = vmatpush2.bf16.msra.mxu0 0
      %479 = vmatprep.subr.bf16.mxu0 0
      %480 = vmatpush2.bf16.msra.mxu0 0
      %481 = vmatprep.mubr.bf16.mxu0 0
      %482 = vmatmul.mubr.bf16.gmra.mxu0 %v443
      %v483 = vpop.f32.mrf.mxu0
      %v484 = vadd.f32 0.0, %v483
      %v485 = vpop.f32.mrf.mxu0
      %v486 = vpop.f32.mrf.mxu0
      %v487 = vadd.f32 0.0, %v486
      %v488 = vpop.f32.mrf.mxu0
      %489 = vdwg.mxu0
      %v490 = vrcp.pop %v428
      %v491 = vrcp.pop %v431
      %v492 = vmul.f32 %v484, %v490
      %v493 = vmul.f32 %v487, %v491
      %494 = vst.msk [vmem:[#allocation2] sm:$0xff] %vm362, %v492
      %495 = vst.msk [vmem:[#allocation2 + $0x8] sm:$0xff] %vm362, %v493
      %v496 = vld [vmem:[%s298] sm:$0xf]
      %v497 = vld [vmem:[%s298 + $0x4] sm:$0xf]
      %v500 = vunpack.c.l.b16 %v496
      %v501 = vunpack.c.l.b16 %v497
      %v502 = vpack.c.b16 %v501, %v500
      %503 = vrot.lane.b32.xlu0 %v502, 64
      %v504 = vpop.permute.xlu0 %503
      %505 = vrot.lane.b32.xlu0 %v360, 64
      %v506 = vpop.permute.xlu0 %505
      %507 = vrot.lane.b32.xlu0 %v361, 64
      %v508 = vpop.permute.xlu0 %507
      %v510 = vsel %vm362, %v504, 0
      %v513 = vsel %vm362, %v506, 0
      %v516 = vsel %vm362, %v508, 0
      %518 = vmatprep.subr.bf16.mxu0 0
      %519 = vmatpush1.bf16.xpose.msra.mxu0 0
      %520 = vmatprep.subr.bf16.mxu0 0
      %521 = vmatpush1.bf16.xpose.msra.mxu0 0
      %522 = vmatprep.subr.bf16.mxu0 0
      %523 = vmatpush1.bf16.xpose.msra.mxu0 0
      %524 = vmatprep.subr.bf16.mxu0 0
      %525 = vmatpush1.bf16.xpose.msra.mxu0 0
      %526 = vmatprep.subr.bf16.mxu0 0
      %527 = vmatpush1.bf16.xpose.msra.mxu0 0
      %528 = vmatprep.subr.bf16.mxu0 0
      %529 = vmatpush1.bf16.xpose.msra.mxu0 0
      %530 = vmatprep.subr.bf16.mxu0 0
      %531 = vmatpush1.bf16.xpose.msra.mxu0 %v516
      %532 = vmatprep.subr.bf16.mxu0 0
      %533 = vmatpush1.bf16.xpose.msra.mxu0 %v513
      %534 = vmatprep.subr.bf16.mxu0 0
      %535 = vmatpush2.bf16.xpose.msra.mxu0 0
      %536 = vmatprep.subr.bf16.mxu0 0
      %537 = vmatpush2.bf16.xpose.msra.mxu0 0
      %538 = vmatprep.subr.bf16.mxu0 0
      %539 = vmatpush2.bf16.xpose.msra.mxu0 0
      %540 = vmatprep.subr.bf16.mxu0 0
      %541 = vmatpush2.bf16.xpose.msra.mxu0 0
      %542 = vmatprep.subr.bf16.mxu0 0
      %543 = vmatpush2.bf16.xpose.msra.mxu0 0
      %544 = vmatprep.subr.bf16.mxu0 0
      %545 = vmatpush2.bf16.xpose.msra.mxu0 0
      %546 = vmatprep.subr.bf16.mxu0 0
      %547 = vmatpush2.bf16.xpose.msra.mxu0 0
      %548 = vmatprep.subr.bf16.mxu0 0
      %549 = vmatpush2.bf16.xpose.msra.mxu0 0
      %550 = vmatprep.mubr.bf16.mxu0 0
      %551 = vmatmul.mubr.bf16.gmra.mxu0 %v510
      %v552 = vpop.f32.mrf.mxu0
      %v553 = vadd.f32 0.0, %v552
      %v554 = vpop.f32.mrf.mxu0
      %v555 = vpop.f32.mrf.mxu0
      %v556 = vadd.f32 0.0, %v555
      %v557 = vpop.f32.mrf.mxu0
      %558 = vdwg.mxu0
      %v559 = vsel %vm413, %v553, -inf
      %560 = vmax.xlane.f32.xlu0 %v559
      %v561 = vpop.xlane.xlu0 %560
      %v562 = vsel %vm413, %v556, -inf
      %563 = vmax.xlane.f32.xlu0 %v562
      %v564 = vpop.xlane.xlu0 %563
      %v565 = vsub.f32 %v553, %v561
      %v566 = vsub.f32 %v556, %v564
      %v567 = vmul.f32 %v565, 1.442695
      %v568 = vpow.pop %v567
      %v569 = vmul.f32 %v566, 1.442695
      %v570 = vpow.pop %v569
      %v571 = vsel %vm413, %v568, 0.0
      %572 = vadd.xlane.f32.xlu0 %v571
      %v573 = vpop.xlane.xlu0 %572
      %v574 = vsel %vm413, %v570, 0.0
      %575 = vadd.xlane.f32.xlu0 %v574
      %v576 = vpop.xlane.xlu0 %575
      %v577 = vpack.c.bf16 %v570, %v568
      %578 = vrot.lane.b32.xlu0 %v439, 64
      %v579 = vpop.permute.xlu0 %578
      %580 = vrot.lane.b32.xlu0 %v440, 64
      %v581 = vpop.permute.xlu0 %580
      %v584 = vsel %vm413, %v577, 0
      %v587 = vsel %vm445, %v581, 0
      %589 = vmatprep.subr.bf16.mxu0 0
      %590 = vmatpush1.bf16.msra.mxu0 0
      %591 = vmatprep.subr.bf16.mxu0 0
      %592 = vmatpush1.bf16.msra.mxu0 0
      %593 = vmatprep.subr.bf16.mxu0 0
      %594 = vmatpush1.bf16.msra.mxu0 0
      %595 = vmatprep.subr.bf16.mxu0 0
      %596 = vmatpush1.bf16.msra.mxu0 0
      %597 = vmatprep.subr.bf16.mxu0 0
      %598 = vmatpush1.bf16.msra.mxu0 0
      %599 = vmatprep.subr.bf16.mxu0 0
      %600 = vmatpush1.bf16.msra.mxu0 0
      %601 = vmatprep.subr.bf16.mxu0 0
      %602 = vmatpush1.bf16.msra.mxu0 %v587
      %603 = vmatprep.subr.bf16.mxu0 0
      %604 = vmatpush1.bf16.msra.mxu0 %v579
      %605 = vmatprep.subr.bf16.mxu0 0
      %606 = vmatpush2.bf16.msra.mxu0 0
      %607 = vmatprep.subr.bf16.mxu0 0
      %608 = vmatpush2.bf16.msra.mxu0 0
      %609 = vmatprep.subr.bf16.mxu0 0
      %610 = vmatpush2.bf16.msra.mxu0 0
      %611 = vmatprep.subr.bf16.mxu0 0
      %612 = vmatpush2.bf16.msra.mxu0 0
      %613 = vmatprep.subr.bf16.mxu0 0
      %614 = vmatpush2.bf16.msra.mxu0 0
      %615 = vmatprep.subr.bf16.mxu0 0
      %616 = vmatpush2.bf16.msra.mxu0 0
      %617 = vmatprep.subr.bf16.mxu0 0
      %618 = vmatpush2.bf16.msra.mxu0 0
      %619 = vmatprep.subr.bf16.mxu0 0
      %620 = vmatpush2.bf16.msra.mxu0 0
      %621 = vmatprep.mubr.bf16.mxu0 0
      %622 = vmatmul.mubr.bf16.gmra.mxu0 %v584
      %v623 = vpop.f32.mrf.mxu0
      %v624 = vadd.f32 0.0, %v623
      %v625 = vpop.f32.mrf.mxu0
      %v626 = vpop.f32.mrf.mxu0
      %v627 = vadd.f32 0.0, %v626
      %v628 = vpop.f32.mrf.mxu0
      %629 = vdwg.mxu0
      %v630 = vrcp.pop %v573
      %v631 = vrcp.pop %v576
      %v632 = vmul.f32 %v624, %v630
      %v633 = vmul.f32 %v627, %v631
      %636 = vrot.lane.b32.xlu0 %v632, 64
      %v637 = vpop.permute.xlu0 %636
      %638 = vrot.lane.b32.xlu0 %v633, 64
      %v639 = vpop.permute.xlu0 %638
      %vm642 = vcmask 1048064
      %643 = vst.msk [vmem:[#allocation2] sm:$0xff] %vm642, %v637
      %644 = vst.msk [vmem:[#allocation2 + $0x8] sm:$0xff] %vm642, %v639
      %v645 = vld [vmem:[#allocation2] sm:$0xff]
      %v646 = vld [vmem:[#allocation2 + $0x8] sm:$0xff]
      %v647 = vand.u32 2147483647, %v645
      %v648 = vand.u32 2147483647, %v646
      %649 = vmax.xlane.f32.xlu0 %v647
      %v650 = vpop.xlane.xlu0 %649
      %651 = vmax.xlane.f32.xlu0 %v648
      %v652 = vpop.xlane.xlu0 %651
      %v653 = vmul.f32 %v650, 0.007874016
      %v654 = vmul.f32 %v652, 0.007874016
      %vm655 = vcmp.gt.f32.partialorder %v653, 0.0
      %vm656 = vcmp.gt.f32.partialorder %v654, 0.0
      %v657 = vsel %vm655, %v653, 1.0
      %v658 = vsel %vm656, %v654, 1.0
      %v659 = vrcp.pop %v657
      %v660 = vrcp.pop %v658
      %v661 = vmul.f32 %v645, %v659
      %v662 = vmul.f32 %v646, %v660
      %v663 = vround.ne.pseudo %v661
      %v664 = vround.ne.pseudo %v662
      %v665 = vmax.f32 %v663, -127.0
      %v666 = vmax.f32 %v664, -127.0
      %v667 = vmin.f32 %v665, 127.0
      %v668 = vmin.f32 %v666, 127.0
      %v669 = vmax.f32 %v667, -128.0
      %v670 = vmax.f32 %v668, -128.0
      %v671 = vmin.f32 %v669, 127.0
      %v672 = vmin.f32 %v670, 127.0
      %v673 = vcvt.f32.s32.to.zero.pseudo %v671
      %v674 = vcvt.f32.s32.to.zero.pseudo %v672
      %v675 = vpack.c.b16 %v673, %v673
      %v676 = vpack.c.b8 %v675, %v675
      %v677 = vpack.c.b16 %v674, %v674
      %v678 = vpack.c.b8 %v677, %v677
      %679 = vst [vmem:[%s328] sm:$0x3] %v676
      %680 = vst [vmem:[%s328 + $0x2] sm:$0x3] %v678
      %vm681 = vcmask 7168
      %682 = vst.msk [vmem:[%s338] sm:$0xff] %vm681, %v653
      %683 = vst.msk [vmem:[%s338 + $0x8] sm:$0xff] %vm681, %v654
      %s684 = smul.u32 2, %s22
      %p685 = scmp.lt.s32.totalorder %s21, 1
      %s686 = scalar_select %p685, %s21, 1
      %p687 = scmp.lt.s32.totalorder %s684, 1
      %s688 = scalar_select %p687, %s684, 1
      %s689 = smul.addr %s686, 2
      %s690 = sadd.s32 %s688, %s689
      %s691 = smul.addr %s690, 2
      %s692 = scalar_lea.vmem %s3, %s691
      %s693 = smul.u32 2, %s22
      %p694 = scmp.lt.s32.totalorder %s21, 1
      %s695 = scalar_select %p694, %s21, 1
      %p696 = scmp.lt.s32.totalorder %s693, 1
      %s697 = scalar_select %p696, %s693, 1
      %s698 = smul.addr %s695, 2
      %s699 = sadd.s32 %s697, %s698
      %s700 = smul.addr %s699, 8
      %s701 = scalar_lea.vmem %s4, %s700
      // Predicated region
      $region33: #{quant_dit_forward.25} parent=31 // pred_check
        %p702 = pneg %p139
      $region34: #{quant_dit_forward.25} parent=31 // pred_check_branch
        %704 = sbr.rel (%p702) target = $region36
      $region35: #{quant_dit_forward.25} parent=31 // pred_region
        %s705 = smul.u32 2, %s22
      $region36: #{quant_dit_forward.25} parent=31 // pred_fallthru
        _
      // Predicated region
      $region37: #{quant_dit_forward.25} parent=31 // pred_check
        %p706 = pneg %p167
      $region38: #{quant_dit_forward.25} parent=31 // pred_check_branch
        %708 = sbr.rel (%p706) target = $region40
      $region39: #{quant_dit_forward.25} parent=31 // pred_region
        %s709 = smul.u32 2, %s22
      $region40: #{quant_dit_forward.25} parent=31 // pred_fallthru
        _
    $region32: #{quant_dit_forward.25} parent=5 // pred_fallthru
      _
    %p710 = scmp.le.s32.totalorder 2, %s11
    // Predicated region
    $region41: #{quant_dit_forward.25} parent=5 // pred_check
      %p711 = pneg %p710
    $region42: #{quant_dit_forward.25} parent=5 // pred_check_branch
      %713 = sbr.rel (%p711) target = $region44
    $region43: #{quant_dit_forward.25} parent=5 // pred_region
      %s714 = ssub.s32 %s11, 2
      // Predicated region
      $region45: #{quant_dit_forward.25} parent=43 // pred_check
        %p715 = pneg %p145
      $region46: #{quant_dit_forward.25} parent=43 // pred_check_branch
        %717 = sbr.rel (%p715) target = $region48
      $region47: #{quant_dit_forward.25} parent=43 // pred_region
        %s718 = smul.u32 2, %s25
        %p719 = scmp.lt.s32.totalorder %s24, 1
        %s720 = scalar_select %p719, %s24, 1
        %p721 = scmp.lt.s32.totalorder %s718, 1
        %s722 = scalar_select %p721, %s718, 1
        %s723 = smul.addr %s720, 2
        %s724 = sadd.s32 %s722, %s723
        %s725 = smul.addr %s724, 2
        %s726 = scalar_lea.vmem %s3, %s725
      $region48: #{quant_dit_forward.25} parent=43 // pred_fallthru
        _
      // Predicated region
      $region49: #{quant_dit_forward.25} parent=43 // pred_check
        %p727 = pneg %p173
      $region50: #{quant_dit_forward.25} parent=43 // pred_check_branch
        %729 = sbr.rel (%p727) target = $region52
      $region51: #{quant_dit_forward.25} parent=43 // pred_region
        %s730 = smul.u32 2, %s25
        %p731 = scmp.lt.s32.totalorder %s24, 1
        %s732 = scalar_select %p731, %s24, 1
        %p733 = scmp.lt.s32.totalorder %s730, 1
        %s734 = scalar_select %p733, %s730, 1
        %s735 = smul.addr %s732, 2
        %s736 = sadd.s32 %s734, %s735
        %s737 = smul.addr %s736, 8
        %s738 = scalar_lea.vmem %s4, %s737
      $region52: #{quant_dit_forward.25} parent=43 // pred_fallthru
        _
    $region44: #{quant_dit_forward.25} parent=5 // pred_fallthru
      _
  $region6: #{quant_dit_forward.25} parent=0 // loop_footer
    %s15 = sadd.s32 1, %s11
  $region7: #{quant_dit_forward.25} parent=0 // loop_footer_branch
    %10 = sbr.rel target = $region3
  $region8: #{quant_dit_forward.25} parent=0 // loop_exit
    _

// kernel: quant_dit_forward.26
$region0: #{quant_dit_forward.26}
  #allocation0 [shape = 'u32[]', space=smem, size = 0x4, offset = 0x4, fixed_abs, tag = 'smem constant byte address 0x4 - core index']
  #allocation1 [shape = 'u32[144,128]{1,0:T(1,128)}', space=vmem, size = 0x12000, scoped, tag = 'internal scratch']
  #allocation2 [shape = 'f32[32,128]{1,0:T(8,128)}', space=vmem, size = 0x4000, scoped, tag = 'scratch operand']
  %s0 = inlined_call_operand.vmem [shape: s8[32,128], index: 0, kind: input, shape index: {}]
  %s1 = inlined_call_operand.vmem [shape: f32[32,1], index: 1, kind: input, shape index: {}]
  %s2 = inlined_call_operand.vmem [shape: s8[128,128], index: 2, kind: input, shape index: {}]
  %s3 = inlined_call_operand.vmem [shape: f32[1,128], index: 3, kind: input, shape index: {}]
  %s4 = inlined_call_operand.vmem [shape: f32[1,128], index: 4, kind: input, shape index: {}]
  %s5 = inlined_call_operand.vmem [shape: bf16[32,128], index: 5, kind: input, shape index: {}]
  %s6 = inlined_call_operand.vmem [shape: bf16[32,128], index: 6, kind: output, shape index: {}]
  %s7 = sld [smem:[#allocation0]]
  $region42: #{quant_dit_forward.26} parent=0
    _
  %s9 = ssub.s32 1, %s7
  %s10 = scalar_select 0, %s9, %s7
  // Predicated region
  $region2: #{quant_dit_forward.26} parent=0 // pred_check
    _
  $region3: #{quant_dit_forward.26} parent=0 // pred_check_branch
    %12 = sbr.rel (0) target = $region5
  $region4: #{quant_dit_forward.26} parent=0 // pred_region
    _
  $region5: #{quant_dit_forward.26} parent=0 // pred_fallthru
    _
  // Predicated region
  $region6: #{quant_dit_forward.26} parent=0 // pred_check
    _
  $region7: #{quant_dit_forward.26} parent=0 // pred_check_branch
    %14 = sbr.rel (0) target = $region9
  $region8: #{quant_dit_forward.26} parent=0 // pred_region
    _
  $region9: #{quant_dit_forward.26} parent=0 // pred_fallthru
    _
  // Predicated region
  $region10: #{quant_dit_forward.26} parent=0 // pred_check
    _
  $region11: #{quant_dit_forward.26} parent=0 // pred_check_branch
    %16 = sbr.rel (0) target = $region13
  $region12: #{quant_dit_forward.26} parent=0 // pred_region
    _
  $region13: #{quant_dit_forward.26} parent=0 // pred_fallthru
    _
  // Predicated region
  $region14: #{quant_dit_forward.26} parent=0 // pred_check
    _
  $region15: #{quant_dit_forward.26} parent=0 // pred_check_branch
    %18 = sbr.rel (0) target = $region17
  $region16: #{quant_dit_forward.26} parent=0 // pred_region
    _
  $region17: #{quant_dit_forward.26} parent=0 // pred_fallthru
    _
  // Predicated region
  $region18: #{quant_dit_forward.26} parent=0 // pred_check
    _
  $region19: #{quant_dit_forward.26} parent=0 // pred_check_branch
    %20 = sbr.rel (0) target = $region21
  $region20: #{quant_dit_forward.26} parent=0 // pred_region
    _
  $region21: #{quant_dit_forward.26} parent=0 // pred_fallthru
    _
  // Predicated region
  $region22: #{quant_dit_forward.26} parent=0 // pred_check
    _
  $region23: #{quant_dit_forward.26} parent=0 // pred_check_branch
    %22 = sbr.rel (0) target = $region25
  $region24: #{quant_dit_forward.26} parent=0 // pred_region
    _
  $region25: #{quant_dit_forward.26} parent=0 // pred_fallthru
    _
  %p24 = scmp.eq.s32.totalorder 0, 0
  // Predicated region
  $region26: #{quant_dit_forward.26} parent=0 // pred_check
    %p25 = pneg %p24
  $region27: #{quant_dit_forward.26} parent=0 // pred_check_branch
    %27 = sbr.rel (%p25) target = $region29
  $region28: #{quant_dit_forward.26} parent=0 // pred_region
    %28 = vst [vmem:[#allocation2] sm:$0xff] 0.0
    %29 = vst [vmem:[#allocation2 + $0x8] sm:$0xff] 0.0
    %30 = vst [vmem:[#allocation2 + $0x10] sm:$0xff] 0.0
    %31 = vst [vmem:[#allocation2 + $0x18] sm:$0xff] 0.0
  $region29: #{quant_dit_forward.26} parent=0 // pred_fallthru
    _
  %v32 = vld [vmem:[#allocation2] sm:$0xff]
  %v33 = vld [vmem:[#allocation2 + $0x8] sm:$0xff]
  %v34 = vld [vmem:[#allocation2 + $0x10] sm:$0xff]
  %v35 = vld [vmem:[#allocation2 + $0x18] sm:$0xff]
  %v36 = vld [vmem:[%s0] sm:$0x3]
  %v37 = vld [vmem:[%s0 + $0x2] sm:$0x3]
  %v38 = vld [vmem:[%s0 + $0x4] sm:$0x3]
  %v39 = vld [vmem:[%s0 + $0x6] sm:$0x3]
  %v40 = vunpack.c.l.s8.bf16 %v36
  %v41 = vunpack.c.l.s8.bf16 %v37
  %v42 = vunpack.c.l.s8.bf16 %v38
  %v43 = vunpack.c.l.s8.bf16 %v39
  %v44 = vld [vmem:[%s2] sm:$0xff]
  %v45 = vld [vmem:[%s2 + $0x8] sm:$0xff]
  %v46 = vld [vmem:[%s2 + $0x10] sm:$0xff]
  %v47 = vld [vmem:[%s2 + $0x18] sm:$0xff]
  %v48 = vunpack.c.l.s8.bf16 %v44
  %v49 = vunpack.c.h.s8.bf16 %v44
  %v50 = vunpack.c.l.s8.bf16 %v45
  %v51 = vunpack.c.h.s8.bf16 %v45
  %v52 = vunpack.c.l.s8.bf16 %v46
  %v53 = vunpack.c.h.s8.bf16 %v46
  %v54 = vunpack.c.l.s8.bf16 %v47
  %v55 = vunpack.c.h.s8.bf16 %v47
  %v60 = vunpack.c.l.b16 %v40
  %v61 = vunpack.c.l.b16 %v41
  %v62 = vunpack.c.l.b16 %v42
  %v63 = vunpack.c.l.b16 %v43
  %v64 = vpack.c.b16 %v61, %v60
  %v65 = vpack.c.b16 %v63, %v62
  %68 = vmatprep.subr.bf16.mxu0 0
  %69 = vmatpush1.bf16.msra.mxu0 %v55
  %70 = vmatprep.subr.bf16.mxu0 0
  %71 = vmatpush1.bf16.msra.mxu0 %v54
  %72 = vmatprep.subr.bf16.mxu0 0
  %73 = vmatpush1.bf16.msra.mxu0 %v53
  %74 = vmatprep.subr.bf16.mxu0 0
  %75 = vmatpush1.bf16.msra.mxu0 %v52
  %76 = vmatprep.subr.bf16.mxu0 0
  %77 = vmatpush1.bf16.msra.mxu0 %v51
  %78 = vmatprep.subr.bf16.mxu0 0
  %79 = vmatpush1.bf16.msra.mxu0 %v50
  %80 = vmatprep.subr.bf16.mxu0 0
  %81 = vmatpush1.bf16.msra.mxu0 %v49
  %82 = vmatprep.subr.bf16.mxu0 0
  %83 = vmatpush1.bf16.msra.mxu0 %v48
  %84 = vmatprep.subr.bf16.mxu0 0
  %85 = vmatpush2.bf16.msra.mxu0 0
  %86 = vmatprep.subr.bf16.mxu0 0
  %87 = vmatpush2.bf16.msra.mxu0 0
  %88 = vmatprep.subr.bf16.mxu0 0
  %89 = vmatpush2.bf16.msra.mxu0 0
  %90 = vmatprep.subr.bf16.mxu0 0
  %91 = vmatpush2.bf16.msra.mxu0 0
  %92 = vmatprep.subr.bf16.mxu0 0
  %93 = vmatpush2.bf16.msra.mxu0 0
  %94 = vmatprep.subr.bf16.mxu0 0
  %95 = vmatpush2.bf16.msra.mxu0 0
  %96 = vmatprep.subr.bf16.mxu0 0
  %97 = vmatpush2.bf16.msra.mxu0 0
  %98 = vmatprep.subr.bf16.mxu0 0
  %99 = vmatpush2.bf16.msra.mxu0 0
  %100 = vmatprep.mubr.bf16.mxu0 0
  %101 = vmatmul.mubr.bf16.gmra.mxu0 %v64
  %v102 = vpop.f32.mrf.mxu0
  %v103 = vadd.f32 0.0, %v102
  %v104 = vpop.f32.mrf.mxu0
  %v105 = vpop.f32.mrf.mxu0
  %v106 = vadd.f32 0.0, %v105
  %v107 = vpop.f32.mrf.mxu0
  %108 = vmatprep.mubr.bf16.mxu0 0
  %109 = vmatmul.mubr.bf16.gmra.mxu0 %v65
  %v110 = vpop.f32.mrf.mxu0
  %v111 = vadd.f32 0.0, %v110
  %v112 = vpop.f32.mrf.mxu0
  %v113 = vpop.f32.mrf.mxu0
  %v114 = vadd.f32 0.0, %v113
  %v115 = vpop.f32.mrf.mxu0
  %116 = vdwg.mxu0
  %v117 = vadd.f32 %v32, %v103
  %v118 = vadd.f32 %v33, %v106
  %v119 = vadd.f32 %v34, %v111
  %v120 = vadd.f32 %v35, %v114
  %121 = vst [vmem:[#allocation2] sm:$0xff] %v117
  %122 = vst [vmem:[#allocation2 + $0x8] sm:$0xff] %v118
  %123 = vst [vmem:[#allocation2 + $0x10] sm:$0xff] %v119
  %124 = vst [vmem:[#allocation2 + $0x18] sm:$0xff] %v120
  // Predicated region
  $region30: #{quant_dit_forward.26} parent=0 // pred_check
    %p125 = pneg %p24
  $region31: #{quant_dit_forward.26} parent=0 // pred_check_branch
    %127 = sbr.rel (%p125) target = $region33
  $region32: #{quant_dit_forward.26} parent=0 // pred_region
    %v128 = vld [vmem:[#allocation2] sm:$0xff]
    %v129 = vld [vmem:[#allocation2 + $0x8] sm:$0xff]
    %v130 = vld [vmem:[#allocation2 + $0x10] sm:$0xff]
    %v131 = vld [vmem:[#allocation2 + $0x18] sm:$0xff]
    %v132 = vld [vmem:[%s1] sm:$0xff]
    %v133 = vld [vmem:[%s1 + $0x8] sm:$0xff]
    %v134 = vld [vmem:[%s1 + $0x10] sm:$0xff]
    %v135 = vld [vmem:[%s1 + $0x18] sm:$0xff]
    %137 = vset.pattern.permute.xlu0 0
    %138 = vperm.xlu0 %137, %v132
    %v139 = vpop.permute.xlu0 %138
    %142 = vset.pattern.permute.xlu0 0
    %143 = vperm.xlu0 %142, %v133
    %v144 = vpop.permute.xlu0 %143
    %147 = vset.pattern.permute.xlu0 0
    %148 = vperm.xlu0 %147, %v134
    %v149 = vpop.permute.xlu0 %148
    %152 = vset.pattern.permute.xlu0 0
    %153 = vperm.xlu0 %152, %v135
    %v154 = vpop.permute.xlu0 %153
    %v156 = vmul.f32 %v128, %v139
    %v157 = vmul.f32 %v129, %v144
    %v158 = vmul.f32 %v130, %v149
    %v159 = vmul.f32 %v131, %v154
    %v160 = vld [vmem:[%s3] sm:$0x1]
    %v162 = vlaneseq
    %v163 = vshrl.u32 %v162, 7
    %v164 = vsub.s32 0, %v163
    %v165 = vrot.slane %v160, %v164
    %v167 = vmul.f32 %v156, %v165
    %v168 = vmul.f32 %v157, %v165
    %v169 = vmul.f32 %v158, %v165
    %v170 = vmul.f32 %v159, %v165
    %v171 = vld [vmem:[%s4] sm:$0x1]
    %v173 = vlaneseq
    %v174 = vshrl.u32 %v173, 7
    %v175 = vsub.s32 0, %v174
    %v176 = vrot.slane %v171, %v175
    %v178 = vadd.f32 %v167, %v176
    %v179 = vadd.f32 %v168, %v176
    %v180 = vadd.f32 %v169, %v176
    %v181 = vadd.f32 %v170, %v176
    %v182 = vld [vmem:[%s5] sm:$0xf]
    %v183 = vld [vmem:[%s5 + $0x4] sm:$0xf]
    %v184 = vld [vmem:[%s5 + $0x8] sm:$0xf]
    %v185 = vld [vmem:[%s5 + $0xc] sm:$0xf]
    %v186 = vunpack.c.l.bf16 %v182
    %v187 = vunpack.c.l.bf16 %v183
    %v188 = vunpack.c.l.bf16 %v184
    %v189 = vunpack.c.l.bf16 %v185
    %v190 = vadd.f32 %v178, %v186
    %v191 = vadd.f32 %v179, %v187
    %v192 = vadd.f32 %v180, %v188
    %v193 = vadd.f32 %v181, %v189
    %v194 = vpack.c.bf16 %v191, %v190
    %v195 = vpack.c.bf16 %v193, %v192
    %v198 = vunpack.c.l.b16 %v194
    %v199 = vunpack.c.h.b16 %v194
    %v200 = vunpack.c.l.b16 %v195
    %v201 = vunpack.c.h.b16 %v195
    %v202 = vpack.c.b16 %v198, %v198
    %v203 = vpack.c.b16 %v199, %v199
    %v204 = vpack.c.b16 %v200, %v200
    %v205 = vpack.c.b16 %v201, %v201
    %210 = vst [vmem:[%s6] sm:$0xf] %v202
    %211 = vst [vmem:[%s6 + $0x4] sm:$0xf] %v203
    %212 = vst [vmem:[%s6 + $0x8] sm:$0xf] %v204
    %213 = vst [vmem:[%s6 + $0xc] sm:$0xf] %v205
  $region33: #{quant_dit_forward.26} parent=0 // pred_fallthru
    _
  // Predicated region
  $region34: #{quant_dit_forward.26} parent=0 // pred_check
    _
  $region35: #{quant_dit_forward.26} parent=0 // pred_check_branch
    %215 = sbr.rel (0) target = $region37
  $region36: #{quant_dit_forward.26} parent=0 // pred_region
    _
  $region37: #{quant_dit_forward.26} parent=0 // pred_fallthru
    _
  // Predicated region
  $region38: #{quant_dit_forward.26} parent=0 // pred_check
    _
  $region39: #{quant_dit_forward.26} parent=0 // pred_check_branch
    %217 = sbr.rel (0) target = $region41
  $region40: #{quant_dit_forward.26} parent=0 // pred_region
    _
  $region41: #{quant_dit_forward.26} parent=0 // pred_fallthru
    _

// kernel: quant_dit_forward.28
$region0: #{quant_dit_forward.28}
  #allocation0 [shape = 'u32[]', space=smem, size = 0x4, offset = 0x4, fixed_abs, tag = 'smem constant byte address 0x4 - core index']
  #allocation1 [shape = 'u32[144,128]{1,0:T(1,128)}', space=vmem, size = 0x12000, scoped, tag = 'internal scratch']
  #allocation2 [shape = 'f32[32,256]{1,0:T(8,128)}', space=vmem, size = 0x8000, scoped, tag = 'scratch operand']
  %s0 = inlined_call_operand.vmem [shape: s8[32,128], index: 0, kind: input, shape index: {}]
  %s1 = inlined_call_operand.vmem [shape: f32[32,1], index: 1, kind: input, shape index: {}]
  %s2 = inlined_call_operand.vmem [shape: s8[128,256], index: 2, kind: input, shape index: {}]
  %s3 = inlined_call_operand.vmem [shape: f32[1,256], index: 3, kind: input, shape index: {}]
  %s4 = inlined_call_operand.vmem [shape: f32[1,256], index: 4, kind: input, shape index: {}]
  %s5 = inlined_call_operand.vmem [shape: s8[32,256], index: 5, kind: output, shape index: {0}]
  %s6 = inlined_call_operand.vmem [shape: f32[32,1], index: 6, kind: output, shape index: {1}]
  %7 = xla_tuple %s5, %s6
  %s8 = sld [smem:[#allocation0]]
  $region46: #{quant_dit_forward.28} parent=0
    _
  %s10 = ssub.s32 1, %s8
  %s11 = scalar_select 0, %s10, %s8
  // Predicated region
  $region2: #{quant_dit_forward.28} parent=0 // pred_check
    _
  $region3: #{quant_dit_forward.28} parent=0 // pred_check_branch
    %13 = sbr.rel (0) target = $region5
  $region4: #{quant_dit_forward.28} parent=0 // pred_region
    _
  $region5: #{quant_dit_forward.28} parent=0 // pred_fallthru
    _
  // Predicated region
  $region6: #{quant_dit_forward.28} parent=0 // pred_check
    _
  $region7: #{quant_dit_forward.28} parent=0 // pred_check_branch
    %15 = sbr.rel (0) target = $region9
  $region8: #{quant_dit_forward.28} parent=0 // pred_region
    _
  $region9: #{quant_dit_forward.28} parent=0 // pred_fallthru
    _
  // Predicated region
  $region10: #{quant_dit_forward.28} parent=0 // pred_check
    _
  $region11: #{quant_dit_forward.28} parent=0 // pred_check_branch
    %17 = sbr.rel (0) target = $region13
  $region12: #{quant_dit_forward.28} parent=0 // pred_region
    _
  $region13: #{quant_dit_forward.28} parent=0 // pred_fallthru
    _
  // Predicated region
  $region14: #{quant_dit_forward.28} parent=0 // pred_check
    _
  $region15: #{quant_dit_forward.28} parent=0 // pred_check_branch
    %19 = sbr.rel (0) target = $region17
  $region16: #{quant_dit_forward.28} parent=0 // pred_region
    _
  $region17: #{quant_dit_forward.28} parent=0 // pred_fallthru
    _
  // Predicated region
  $region18: #{quant_dit_forward.28} parent=0 // pred_check
    _
  $region19: #{quant_dit_forward.28} parent=0 // pred_check_branch
    %21 = sbr.rel (0) target = $region21
  $region20: #{quant_dit_forward.28} parent=0 // pred_region
    _
  $region21: #{quant_dit_forward.28} parent=0 // pred_fallthru
    _
  %p23 = scmp.eq.s32.totalorder 0, 0
  // Predicated region
  $region22: #{quant_dit_forward.28} parent=0 // pred_check
    %p24 = pneg %p23
  $region23: #{quant_dit_forward.28} parent=0 // pred_check_branch
    %26 = sbr.rel (%p24) target = $region25
  $region24: #{quant_dit_forward.28} parent=0 // pred_region
    %27 = vst [vmem:[#allocation2] sm:$0xff] 0.0
    %28 = vst [vmem:[#allocation2 + $0x8] sm:$0xff] 0.0
    %29 = vst [vmem:[#allocation2 + $0x10] sm:$0xff] 0.0
    %30 = vst [vmem:[#allocation2 + $0x18] sm:$0xff] 0.0
    %31 = vst [vmem:[#allocation2 + $0x20] sm:$0xff] 0.0
    %32 = vst [vmem:[#allocation2 + $0x28] sm:$0xff] 0.0
    %33 = vst [vmem:[#allocation2 + $0x30] sm:$0xff] 0.0
    %34 = vst [vmem:[#allocation2 + $0x38] sm:$0xff] 0.0
  $region25: #{quant_dit_forward.28} parent=0 // pred_fallthru
    _
  %v35 = vld [vmem:[#allocation2] sm:$0xff]
  %v36 = vld [vmem:[#allocation2 + $0x8] sm:$0xff]
  %v37 = vld [vmem:[#allocation2 + $0x10] sm:$0xff]
  %v38 = vld [vmem:[#allocation2 + $0x18] sm:$0xff]
  %v39 = vld [vmem:[#allocation2 + $0x20] sm:$0xff]
  %v40 = vld [vmem:[#allocation2 + $0x28] sm:$0xff]
  %v41 = vld [vmem:[#allocation2 + $0x30] sm:$0xff]
  %v42 = vld [vmem:[#allocation2 + $0x38] sm:$0xff]
  %v43 = vld [vmem:[%s0] sm:$0x3]
  %v44 = vld [vmem:[%s0 + $0x2] sm:$0x3]
  %v45 = vld [vmem:[%s0 + $0x4] sm:$0x3]
  %v46 = vld [vmem:[%s0 + $0x6] sm:$0x3]
  %v47 = vunpack.c.l.s8.bf16 %v43
  %v48 = vunpack.c.l.s8.bf16 %v44
  %v49 = vunpack.c.l.s8.bf16 %v45
  %v50 = vunpack.c.l.s8.bf16 %v46
  %v51 = vld [vmem:[%s2] sm:$0xff]
  %v52 = vld [vmem:[%s2 + $0x8] sm:$0xff]
  %v53 = vld [vmem:[%s2 + $0x10] sm:$0xff]
  %v54 = vld [vmem:[%s2 + $0x18] sm:$0xff]
  %v55 = vld [vmem:[%s2 + $0x20] sm:$0xff]
  %v56 = vld [vmem:[%s2 + $0x28] sm:$0xff]
  %v57 = vld [vmem:[%s2 + $0x30] sm:$0xff]
  %v58 = vld [vmem:[%s2 + $0x38] sm:$0xff]
  %v59 = vunpack.c.l.s8.bf16 %v51
  %v60 = vunpack.c.l.s8.bf16 %v52
  %v61 = vunpack.c.h.s8.bf16 %v51
  %v62 = vunpack.c.h.s8.bf16 %v52
  %v63 = vunpack.c.l.s8.bf16 %v53
  %v64 = vunpack.c.l.s8.bf16 %v54
  %v65 = vunpack.c.h.s8.bf16 %v53
  %v66 = vunpack.c.h.s8.bf16 %v54
  %v67 = vunpack.c.l.s8.bf16 %v55
  %v68 = vunpack.c.l.s8.bf16 %v56
  %v69 = vunpack.c.h.s8.bf16 %v55
  %v70 = vunpack.c.h.s8.bf16 %v56
  %v71 = vunpack.c.l.s8.bf16 %v57
  %v72 = vunpack.c.l.s8.bf16 %v58
  %v73 = vunpack.c.h.s8.bf16 %v57
  %v74 = vunpack.c.h.s8.bf16 %v58
  %v79 = vunpack.c.l.b16 %v47
  %v80 = vunpack.c.l.b16 %v48
  %v81 = vunpack.c.l.b16 %v49
  %v82 = vunpack.c.l.b16 %v50
  %v83 = vpack.c.b16 %v80, %v79
  %v84 = vpack.c.b16 %v82, %v81
  %87 = vmatprep.subr.bf16.mxu0 %v74
  %88 = vmatpush1.bf16.msra.mxu0 %v73
  %89 = vmatprep.subr.bf16.mxu0 %v72
  %90 = vmatpush1.bf16.msra.mxu0 %v71
  %91 = vmatprep.subr.bf16.mxu0 %v70
  %92 = vmatpush1.bf16.msra.mxu0 %v69
  %93 = vmatprep.subr.bf16.mxu0 %v68
  %94 = vmatpush1.bf16.msra.mxu0 %v67
  %95 = vmatprep.subr.bf16.mxu0 %v66
  %96 = vmatpush1.bf16.msra.mxu0 %v65
  %97 = vmatprep.subr.bf16.mxu0 %v64
  %98 = vmatpush1.bf16.msra.mxu0 %v63
  %99 = vmatprep.subr.bf16.mxu0 %v62
  %100 = vmatpush1.bf16.msra.mxu0 %v61
  %101 = vmatprep.subr.bf16.mxu0 %v60
  %102 = vmatpush1.bf16.msra.mxu0 %v59
  %103 = vmatprep.subr.bf16.mxu0 0
  %104 = vmatpush2.bf16.msra.mxu0 0
  %105 = vmatprep.subr.bf16.mxu0 0
  %106 = vmatpush2.bf16.msra.mxu0 0
  %107 = vmatprep.subr.bf16.mxu0 0
  %108 = vmatpush2.bf16.msra.mxu0 0
  %109 = vmatprep.subr.bf16.mxu0 0
  %110 = vmatpush2.bf16.msra.mxu0 0
  %111 = vmatprep.subr.bf16.mxu0 0
  %112 = vmatpush2.bf16.msra.mxu0 0
  %113 = vmatprep.subr.bf16.mxu0 0
  %114 = vmatpush2.bf16.msra.mxu0 0
  %115 = vmatprep.subr.bf16.mxu0 0
  %116 = vmatpush2.bf16.msra.mxu0 0
  %117 = vmatprep.subr.bf16.mxu0 0
  %118 = vmatpush2.bf16.msra.mxu0 0
  %119 = vmatprep.mubr.bf16.mxu0 0
  %120 = vmatmul.mubr.bf16.gmra.mxu0 %v83
  %v121 = vpop.f32.mrf.mxu0
  %v122 = vadd.f32 0.0, %v121
  %v123 = vpop.f32.mrf.mxu0
  %v124 = vadd.f32 0.0, %v123
  %v125 = vpop.f32.mrf.mxu0
  %v126 = vadd.f32 0.0, %v125
  %v127 = vpop.f32.mrf.mxu0
  %v128 = vadd.f32 0.0, %v127
  %129 = vmatprep.mubr.bf16.mxu0 0
  %130 = vmatmul.mubr.bf16.gmra.mxu0 %v84
  %v131 = vpop.f32.mrf.mxu0
  %v132 = vadd.f32 0.0, %v131
  %v133 = vpop.f32.mrf.mxu0
  %v134 = vadd.f32 0.0, %v133
  %v135 = vpop.f32.mrf.mxu0
  %v136 = vadd.f32 0.0, %v135
  %v137 = vpop.f32.mrf.mxu0
  %v138 = vadd.f32 0.0, %v137
  %139 = vdwg.mxu0
  %v140 = vadd.f32 %v35, %v122
  %v141 = vadd.f32 %v36, %v124
  %v142 = vadd.f32 %v37, %v126
  %v143 = vadd.f32 %v38, %v128
  %v144 = vadd.f32 %v39, %v132
  %v145 = vadd.f32 %v40, %v134
  %v146 = vadd.f32 %v41, %v136
  %v147 = vadd.f32 %v42, %v138
  %148 = vst [vmem:[#allocation2] sm:$0xff] %v140
  %149 = vst [vmem:[#allocation2 + $0x8] sm:$0xff] %v141
  %150 = vst [vmem:[#allocation2 + $0x10] sm:$0xff] %v142
  %151 = vst [vmem:[#allocation2 + $0x18] sm:$0xff] %v143
  %152 = vst [vmem:[#allocation2 + $0x20] sm:$0xff] %v144
  %153 = vst [vmem:[#allocation2 + $0x28] sm:$0xff] %v145
  %154 = vst [vmem:[#allocation2 + $0x30] sm:$0xff] %v146
  %155 = vst [vmem:[#allocation2 + $0x38] sm:$0xff] %v147
  // Predicated region
  $region26: #{quant_dit_forward.28} parent=0 // pred_check
    %p156 = pneg %p23
  $region27: #{quant_dit_forward.28} parent=0 // pred_check_branch
    %158 = sbr.rel (%p156) target = $region29
  $region28: #{quant_dit_forward.28} parent=0 // pred_region
    %v159 = vld [vmem:[#allocation2] sm:$0xff]
    %v160 = vld [vmem:[#allocation2 + $0x8] sm:$0xff]
    %v161 = vld [vmem:[#allocation2 + $0x10] sm:$0xff]
    %v162 = vld [vmem:[#allocation2 + $0x18] sm:$0xff]
    %v163 = vld [vmem:[#allocation2 + $0x20] sm:$0xff]
    %v164 = vld [vmem:[#allocation2 + $0x28] sm:$0xff]
    %v165 = vld [vmem:[#allocation2 + $0x30] sm:$0xff]
    %v166 = vld [vmem:[#allocation2 + $0x38] sm:$0xff]
    %v167 = vld [vmem:[%s1] sm:$0xff]
    %v168 = vld [vmem:[%s1 + $0x8] sm:$0xff]
    %v169 = vld [vmem:[%s1 + $0x10] sm:$0xff]
    %v170 = vld [vmem:[%s1 + $0x18] sm:$0xff]
    %172 = vset.pattern.permute.xlu0 0
    %173 = vperm.xlu0 %172, %v167
    %v174 = vpop.permute.xlu0 %173
    %177 = vset.pattern.permute.xlu0 0
    %178 = vperm.xlu0 %177, %v168
    %v179 = vpop.permute.xlu0 %178
    %182 = vset.pattern.permute.xlu0 0
    %183 = vperm.xlu0 %182, %v169
    %v184 = vpop.permute.xlu0 %183
    %187 = vset.pattern.permute.xlu0 0
    %188 = vperm.xlu0 %187, %v170
    %v189 = vpop.permute.xlu0 %188
    %v191 = vmul.f32 %v159, %v174
    %v192 = vmul.f32 %v160, %v174
    %v193 = vmul.f32 %v161, %v179
    %v194 = vmul.f32 %v162, %v179
    %v195 = vmul.f32 %v163, %v184
    %v196 = vmul.f32 %v164, %v184
    %v197 = vmul.f32 %v165, %v189
    %v198 = vmul.f32 %v166, %v189
    %v199 = vld [vmem:[%s3] sm:$0x3]
    %v201 = vlaneseq
    %v202 = vshrl.u32 %v201, 7
    %v203 = vsub.s32 0, %v202
    %v204 = vrot.slane %v199, %v203
    %v205 = vlaneseq
    %v206 = vshrl.u32 %v205, 7
    %v207 = vsub.s32 1, %v206
    %v208 = vrot.slane %v199, %v207
    %v211 = vmul.f32 %v191, %v204
    %v212 = vmul.f32 %v192, %v208
    %v213 = vmul.f32 %v193, %v204
    %v214 = vmul.f32 %v194, %v208
    %v215 = vmul.f32 %v195, %v204
    %v216 = vmul.f32 %v196, %v208
    %v217 = vmul.f32 %v197, %v204
    %v218 = vmul.f32 %v198, %v208
    %v219 = vld [vmem:[%s4] sm:$0x3]
    %v221 = vlaneseq
    %v222 = vshrl.u32 %v221, 7
    %v223 = vsub.s32 0, %v222
    %v224 = vrot.slane %v219, %v223
    %v225 = vlaneseq
    %v226 = vshrl.u32 %v225, 7
    %v227 = vsub.s32 1, %v226
    %v228 = vrot.slane %v219, %v227
    %v231 = vadd.f32 %v211, %v224
    %v232 = vadd.f32 %v212, %v228
    %v233 = vadd.f32 %v213, %v224
    %v234 = vadd.f32 %v214, %v228
    %v235 = vadd.f32 %v215, %v224
    %v236 = vadd.f32 %v216, %v228
    %v237 = vadd.f32 %v217, %v224
    %v238 = vadd.f32 %v218, %v228
    %v239 = vmul.f32 %v231, %v231
    %v240 = vmul.f32 %v232, %v232
    %v241 = vmul.f32 %v233, %v233
    %v242 = vmul.f32 %v234, %v234
    %v243 = vmul.f32 %v235, %v235
    %v244 = vmul.f32 %v236, %v236
    %v245 = vmul.f32 %v237, %v237
    %v246 = vmul.f32 %v238, %v238
    %v247 = vmul.f32 %v231, %v239
    %v248 = vmul.f32 %v232, %v240
    %v249 = vmul.f32 %v233, %v241
    %v250 = vmul.f32 %v234, %v242
    %v251 = vmul.f32 %v235, %v243
    %v252 = vmul.f32 %v236, %v244
    %v253 = vmul.f32 %v237, %v245
    %v254 = vmul.f32 %v238, %v246
    %v255 = vmul.f32 %v247, 0.044715
    %v256 = vmul.f32 %v248, 0.044715
    %v257 = vmul.f32 %v249, 0.044715
    %v258 = vmul.f32 %v250, 0.044715
    %v259 = vmul.f32 %v251, 0.044715
    %v260 = vmul.f32 %v252, 0.044715
    %v261 = vmul.f32 %v253, 0.044715
    %v262 = vmul.f32 %v254, 0.044715
    %v263 = vadd.f32 %v231, %v255
    %v264 = vadd.f32 %v232, %v256
    %v265 = vadd.f32 %v233, %v257
    %v266 = vadd.f32 %v234, %v258
    %v267 = vadd.f32 %v235, %v259
    %v268 = vadd.f32 %v236, %v260
    %v269 = vadd.f32 %v237, %v261
    %v270 = vadd.f32 %v238, %v262
    %v271 = vmul.f32 %v263, 0.7978846
    %v272 = vmul.f32 %v264, 0.7978846
    %v273 = vmul.f32 %v265, 0.7978846
    %v274 = vmul.f32 %v266, 0.7978846
    %v275 = vmul.f32 %v267, 0.7978846
    %v276 = vmul.f32 %v268, 0.7978846
    %v277 = vmul.f32 %v269, 0.7978846
    %v278 = vmul.f32 %v270, 0.7978846
    %v279 = vtanh.pop %v271
    %v280 = vtanh.pop %v272
    %v281 = vtanh.pop %v273
    %v282 = vtanh.pop %v274
    %v283 = vtanh.pop %v275
    %v284 = vtanh.pop %v276
    %v285 = vtanh.pop %v277
    %v286 = vtanh.pop %v278
    %v287 = vadd.f32 %v279, 1.0
    %v288 = vadd.f32 %v280, 1.0
    %v289 = vadd.f32 %v281, 1.0
    %v290 = vadd.f32 %v282, 1.0
    %v291 = vadd.f32 %v283, 1.0
    %v292 = vadd.f32 %v284, 1.0
    %v293 = vadd.f32 %v285, 1.0
    %v294 = vadd.f32 %v286, 1.0
    %v295 = vmul.f32 %v287, 0.5
    %v296 = vmul.f32 %v288, 0.5
    %v297 = vmul.f32 %v289, 0.5
    %v298 = vmul.f32 %v290, 0.5
    %v299 = vmul.f32 %v291, 0.5
    %v300 = vmul.f32 %v292, 0.5
    %v301 = vmul.f32 %v293, 0.5
    %v302 = vmul.f32 %v294, 0.5
    %v303 = vmul.f32 %v231, %v295
    %v304 = vmul.f32 %v232, %v296
    %v305 = vmul.f32 %v233, %v297
    %v306 = vmul.f32 %v234, %v298
    %v307 = vmul.f32 %v235, %v299
    %v308 = vmul.f32 %v236, %v300
    %v309 = vmul.f32 %v237, %v301
    %v310 = vmul.f32 %v238, %v302
    %v311 = vand.u32 2147483647, %v303
    %v312 = vand.u32 2147483647, %v304
    %v313 = vand.u32 2147483647, %v305
    %v314 = vand.u32 2147483647, %v306
    %v315 = vand.u32 2147483647, %v307
    %v316 = vand.u32 2147483647, %v308
    %v317 = vand.u32 2147483647, %v309
    %v318 = vand.u32 2147483647, %v310
    %v319 = vmax.f32 %v311, %v312
    %320 = vmax.xlane.f32.xlu0 %v319
    %v321 = vpop.xlane.xlu0 %320
    %v322 = vmax.f32 %v313, %v314
    %323 = vmax.xlane.f32.xlu0 %v322
    %v324 = vpop.xlane.xlu0 %323
    %v325 = vmax.f32 %v315, %v316
    %326 = vmax.xlane.f32.xlu0 %v325
    %v327 = vpop.xlane.xlu0 %326
    %v328 = vmax.f32 %v317, %v318
    %329 = vmax.xlane.f32.xlu0 %v328
    %v330 = vpop.xlane.xlu0 %329
    %v331 = vmul.f32 %v321, 0.007874016
    %v332 = vmul.f32 %v324, 0.007874016
    %v333 = vmul.f32 %v327, 0.007874016
    %v334 = vmul.f32 %v330, 0.007874016
    %vm335 = vcmp.gt.f32.partialorder %v331, 0.0
    %vm336 = vcmp.gt.f32.partialorder %v332, 0.0
    %vm337 = vcmp.gt.f32.partialorder %v333, 0.0
    %vm338 = vcmp.gt.f32.partialorder %v334, 0.0
    %v339 = vsel %vm335, %v331, 1.0
    %v340 = vsel %vm336, %v332, 1.0
    %v341 = vsel %vm337, %v333, 1.0
    %v342 = vsel %vm338, %v334, 1.0
    %v343 = vrcp.pop %v339
    %v344 = vrcp.pop %v340
    %v345 = vrcp.pop %v341
    %v346 = vrcp.pop %v342
    %v347 = vmul.f32 %v303, %v343
    %v348 = vmul.f32 %v304, %v343
    %v349 = vmul.f32 %v305, %v344
    %v350 = vmul.f32 %v306, %v344
    %v351 = vmul.f32 %v307, %v345
    %v352 = vmul.f32 %v308, %v345
    %v353 = vmul.f32 %v309, %v346
    %v354 = vmul.f32 %v310, %v346
    %v355 = vround.ne.pseudo %v347
    %v356 = vround.ne.pseudo %v348
    %v357 = vround.ne.pseudo %v349
    %v358 = vround.ne.pseudo %v350
    %v359 = vround.ne.pseudo %v351
    %v360 = vround.ne.pseudo %v352
    %v361 = vround.ne.pseudo %v353
    %v362 = vround.ne.pseudo %v354
    %v363 = vmax.f32 %v355, -127.0
    %v364 = vmax.f32 %v356, -127.0
    %v365 = vmax.f32 %v357, -127.0
    %v366 = vmax.f32 %v358, -127.0
    %v367 = vmax.f32 %v359, -127.0
    %v368 = vmax.f32 %v360, -127.0
    %v369 = vmax.f32 %v361, -127.0
    %v370 = vmax.f32 %v362, -127.0
    %v371 = vmin.f32 %v363, 127.0
    %v372 = vmin.f32 %v364, 127.0
    %v373 = vmin.f32 %v365, 127.0
    %v374 = vmin.f32 %v366, 127.0
    %v375 = vmin.f32 %v367, 127.0
    %v376 = vmin.f32 %v368, 127.0
    %v377 = vmin.f32 %v369, 127.0
    %v378 = vmin.f32 %v370, 127.0
    %v379 = vmax.f32 %v371, -128.0
    %v380 = vmax.f32 %v372, -128.0
    %v381 = vmax.f32 %v373, -128.0
    %v382 = vmax.f32 %v374, -128.0
    %v383 = vmax.f32 %v375, -128.0
    %v384 = vmax.f32 %v376, -128.0
    %v385 = vmax.f32 %v377, -128.0
    %v386 = vmax.f32 %v378, -128.0
    %v387 = vmin.f32 %v379, 127.0
    %v388 = vmin.f32 %v380, 127.0
    %v389 = vmin.f32 %v381, 127.0
    %v390 = vmin.f32 %v382, 127.0
    %v391 = vmin.f32 %v383, 127.0
    %v392 = vmin.f32 %v384, 127.0
    %v393 = vmin.f32 %v385, 127.0
    %v394 = vmin.f32 %v386, 127.0
    %v395 = vcvt.f32.s32.to.zero.pseudo %v387
    %v396 = vcvt.f32.s32.to.zero.pseudo %v388
    %v397 = vcvt.f32.s32.to.zero.pseudo %v389
    %v398 = vcvt.f32.s32.to.zero.pseudo %v390
    %v399 = vcvt.f32.s32.to.zero.pseudo %v391
    %v400 = vcvt.f32.s32.to.zero.pseudo %v392
    %v401 = vcvt.f32.s32.to.zero.pseudo %v393
    %v402 = vcvt.f32.s32.to.zero.pseudo %v394
    %v403 = vpack.c.b16 %v397, %v395
    %v404 = vpack.c.b16 %v401, %v399
    %v405 = vpack.c.b8 %v404, %v403
    %v406 = vpack.c.b16 %v398, %v396
    %v407 = vpack.c.b16 %v402, %v400
    %v408 = vpack.c.b8 %v407, %v406
    %409 = vst [vmem:[%s5] sm:$0xff] %v405
    %410 = vst [vmem:[%s5 + $0x8] sm:$0xff] %v408
    %vm411 = vcmask 7168
    %412 = vst.msk [vmem:[%s6] sm:$0xff] %vm411, %v331
    %413 = vst.msk [vmem:[%s6 + $0x8] sm:$0xff] %vm411, %v332
    %414 = vst.msk [vmem:[%s6 + $0x10] sm:$0xff] %vm411, %v333
    %415 = vst.msk [vmem:[%s6 + $0x18] sm:$0xff] %vm411, %v334
  $region29: #{quant_dit_forward.28} parent=0 // pred_fallthru
    _
  // Predicated region
  $region30: #{quant_dit_forward.28} parent=0 // pred_check
    _
  $region31: #{quant_dit_forward.28} parent=0 // pred_check_branch
    %417 = sbr.rel (0) target = $region33
  $region32: #{quant_dit_forward.28} parent=0 // pred_region
    _
  $region33: #{quant_dit_forward.28} parent=0 // pred_fallthru
    _
  // Predicated region
  $region34: #{quant_dit_forward.28} parent=0 // pred_check
    _
  $region35: #{quant_dit_forward.28} parent=0 // pred_check_branch
    %419 = sbr.rel (0) target = $region37
  $region36: #{quant_dit_forward.28} parent=0 // pred_region
    _
  $region37: #{quant_dit_forward.28} parent=0 // pred_fallthru
    _
  // Predicated region
  $region38: #{quant_dit_forward.28} parent=0 // pred_check
    _
  $region39: #{quant_dit_forward.28} parent=0 // pred_check_branch
    %421 = sbr.rel (0) target = $region41
  $region40: #{quant_dit_forward.28} parent=0 // pred_region
    _
  $region41: #{quant_dit_forward.28} parent=0 // pred_fallthru
    _
  // Predicated region
  $region42: #{quant_dit_forward.28} parent=0 // pred_check
    _
  $region43: #{quant_dit_forward.28} parent=0 // pred_check_branch
    %423 = sbr.rel (0) target = $region45
  $region44: #{quant_dit_forward.28} parent=0 // pred_region
    _
  $region45: #{quant_dit_forward.28} parent=0 // pred_fallthru
    _

// kernel: quant_dit_forward.39
$region0: #{quant_dit_forward.39}
  #allocation0 [shape = 'u32[]', space=smem, size = 0x4, offset = 0x4, fixed_abs, tag = 'smem constant byte address 0x4 - core index']
  #allocation1 [shape = 'u32[144,128]{1,0:T(1,128)}', space=vmem, size = 0x12000, scoped, tag = 'internal scratch']
  %s0 = inlined_call_operand.vmem [shape: bf16[2,16,128], index: 0, kind: input, shape index: {}]
  %s1 = inlined_call_operand.vmem [shape: f32[2,1,128], index: 1, kind: input, shape index: {}]
  %s2 = inlined_call_operand.vmem [shape: f32[2,1,128], index: 2, kind: input, shape index: {}]
  %s3 = inlined_call_operand.vmem [shape: f32[2,16,128], index: 3, kind: output, shape index: {}]
  %s4 = sld [smem:[#allocation0]]
  $region45: #{quant_dit_forward.39} parent=0
    _
  %s6 = ssub.s32 1, %s4
  %s7 = scalar_select 0, %s6, %s4
  loop: start=0, step=1, limit=4
  $region2: #{quant_dit_forward.39} parent=0 // loop_pre_header
    _
  $region3: #{quant_dit_forward.39} parent=0 // loop_header
    %s9 = sphi 0, %s13
    %p10 = scmp.ge.s32.totalorder %s9, 4
    %s16 = sphi 0, %s28
    %s17 = sphi 0, %s24
    %s18 = sphi 0, %s16
    %s19 = sphi 0, %s17
    %s20 = sphi 0, %s18
    %s21 = sphi 0, %s19
    %s33 = sphi 0, %s35
    %s36 = sphi 0, %s33
    %s37 = sphi 0, %s36
    %s53 = sphi 0, %s37
    %s59 = sphi 0, %s61
    %s62 = sphi 0, %s59
    %s63 = sphi 0, %s62
    %s79 = sphi 0, %s63
    %s85 = sphi 0, %s87
    %s88 = sphi 0, %s85
    %s89 = sphi 0, %s88
    %s105 = sphi 0, %s89
    %s113 = sphi 0, %s115
    %s116 = sphi 0, %s113
    %s117 = sphi 0, %s116
    %s133 = sphi 0, %s117
  $region4: #{quant_dit_forward.39} parent=0 // loop_header_branch
    %12 = sbr.rel (%p10) target = $region8
  $region5: #{quant_dit_forward.39} parent=0 // loop_body
    %s14 = ssub.s32 %s9, 1
    %s15 = ssub.s32 %s9, 2
    %s22 = sadd.s32 1, %s17
    %p23 = scmp.ge.s32.totalorder %s22, 1
    %s24 = scalar_select %p23, 0, %s22
    %s25 = sadd.s32 1, %s16
    %s26 = scalar_select %p23, %s25, %s16
    %p27 = scmp.ge.s32.totalorder %s26, 2
    %s28 = scalar_select %p27, 0, %s26
    %s29 = ssub.s32 %s16, %s28
    %s30 = ssub.s32 %s17, %s24
    %s31 = sor.u32 %s29, %s30
    %p32 = scmp.eq.s32.totalorder %s31, 0
    %s34 = sadd.s32 %s33, 1
    %s35 = scalar_select %p32, %s33, %s34
    %p38 = pneg %p32
    %p39 = scmp.eq.s32.totalorder %s9, 1
    %p40 = por %p38, %p39
    %p41 = scmp.ne.s32.totalorder %s33, %s36
    %p42 = scmp.eq.s32.totalorder %s9, 0
    %p43 = por %p41, %p42
    %p44 = scmp.ne.s32.totalorder %s33, %s36
    %p45 = scmp.eq.s32.totalorder %s14, 1
    %p46 = por %p44, %p45
    %p47 = scmp.ne.s32.totalorder %s36, %s37
    %p48 = scmp.eq.s32.totalorder %s14, 0
    %p49 = por %p47, %p48
    %p50 = scmp.ne.s32.totalorder %s36, %s37
    %p51 = scmp.eq.s32.totalorder %s15, 1
    %p52 = por %p50, %p51
    %p54 = scmp.ne.s32.totalorder %s37, %s53
    %p55 = scmp.eq.s32.totalorder %s15, 0
    %p56 = por %p54, %p55
    %s57 = ssub.s32 %s16, %s28
    %p58 = scmp.eq.s32.totalorder %s57, 0
    %s60 = sadd.s32 %s59, 1
    %s61 = scalar_select %p58, %s59, %s60
    %p64 = pneg %p58
    %p65 = scmp.eq.s32.totalorder %s9, 1
    %p66 = por %p64, %p65
    %p67 = scmp.ne.s32.totalorder %s59, %s62
    %p68 = scmp.eq.s32.totalorder %s9, 0
    %p69 = por %p67, %p68
    %p70 = scmp.ne.s32.totalorder %s59, %s62
    %p71 = scmp.eq.s32.totalorder %s14, 1
    %p72 = por %p70, %p71
    %p73 = scmp.ne.s32.totalorder %s62, %s63
    %p74 = scmp.eq.s32.totalorder %s14, 0
    %p75 = por %p73, %p74
    %p76 = scmp.ne.s32.totalorder %s62, %s63
    %p77 = scmp.eq.s32.totalorder %s15, 1
    %p78 = por %p76, %p77
    %p80 = scmp.ne.s32.totalorder %s63, %s79
    %p81 = scmp.eq.s32.totalorder %s15, 0
    %p82 = por %p80, %p81
    %s83 = ssub.s32 %s16, %s28
    %p84 = scmp.eq.s32.totalorder %s83, 0
    %s86 = sadd.s32 %s85, 1
    %s87 = scalar_select %p84, %s85, %s86
    %p90 = pneg %p84
    %p91 = scmp.eq.s32.totalorder %s9, 1
    %p92 = por %p90, %p91
    %p93 = scmp.ne.s32.totalorder %s85, %s88
    %p94 = scmp.eq.s32.totalorder %s9, 0
    %p95 = por %p93, %p94
    %p96 = scmp.ne.s32.totalorder %s85, %s88
    %p97 = scmp.eq.s32.totalorder %s14, 1
    %p98 = por %p96, %p97
    %p99 = scmp.ne.s32.totalorder %s88, %s89
    %p100 = scmp.eq.s32.totalorder %s14, 0
    %p101 = por %p99, %p100
    %p102 = scmp.ne.s32.totalorder %s88, %s89
    %p103 = scmp.eq.s32.totalorder %s15, 1
    %p104 = por %p102, %p103
    %p106 = scmp.ne.s32.totalorder %s89, %s105
    %p107 = scmp.eq.s32.totalorder %s15, 0
    %p108 = por %p106, %p107
    %s109 = ssub.s32 %s16, %s28
    %s110 = ssub.s32 %s17, %s24
    %s111 = sor.u32 %s109, %s110
    %p112 = scmp.eq.s32.totalorder %s111, 0
    %s114 = sadd.s32 %s113, 1
    %s115 = scalar_select %p112, %s113, %s114
    %p118 = pneg %p112
    %p119 = scmp.eq.s32.totalorder %s9, 1
    %p120 = por %p118, %p119
    %p121 = scmp.ne.s32.totalorder %s113, %s116
    %p122 = scmp.eq.s32.totalorder %s9, 0
    %p123 = por %p121, %p122
    %p124 = scmp.ne.s32.totalorder %s113, %s116
    %p125 = scmp.eq.s32.totalorder %s14, 1
    %p126 = por %p124, %p125
    %p127 = scmp.ne.s32.totalorder %s116, %s117
    %p128 = scmp.eq.s32.totalorder %s14, 0
    %p129 = por %p127, %p128
    %p130 = scmp.ne.s32.totalorder %s116, %s117
    %p131 = scmp.eq.s32.totalorder %s15, 1
    %p132 = por %p130, %p131
    %p134 = scmp.ne.s32.totalorder %s117, %s133
    %p135 = scmp.eq.s32.totalorder %s15, 0
    %p136 = por %p134, %p135
    %p137 = scmp.le.s32.totalorder 1, %s9
    %p138 = scmp.lt.s32.totalorder %s9, 3
    %p139 = pnand %p137, %p138
    %p140 = pneg %p139
    // Predicated region
    $region9: #{quant_dit_forward.39} parent=5 // pred_check
      _
    $region10: #{quant_dit_forward.39} parent=5 // pred_check_branch
      %142 = sbr.rel (%p139) target = $region12
    $region11: #{quant_dit_forward.39} parent=5 // pred_region
      %s143 = ssub.s32 %s9, 1
    $region12: #{quant_dit_forward.39} parent=5 // pred_fallthru
      _
    %p144 = scmp.lt.s32.totalorder %s9, 2
    // Predicated region
    $region13: #{quant_dit_forward.39} parent=5 // pred_check
      %p145 = pneg %p144
    $region14: #{quant_dit_forward.39} parent=5 // pred_check_branch
      %147 = sbr.rel (%p145) target = $region16
    $region15: #{quant_dit_forward.39} parent=5 // pred_region
      // Predicated region
      $region17: #{quant_dit_forward.39} parent=15 // pred_check
        %p148 = pneg %p43
      $region18: #{quant_dit_forward.39} parent=15 // pred_check_branch
        %150 = sbr.rel (%p148) target = $region20
      $region19: #{quant_dit_forward.39} parent=15 // pred_region
        %s151 = smul.u32 2, %s17
        %p152 = scmp.lt.s32.totalorder %s16, 1
        %s153 = scalar_select %p152, %s16, 1
        %p154 = scmp.lt.s32.totalorder %s151, 1
        %s155 = scalar_select %p154, %s151, 1
        %s156 = smul.addr %s153, 2
        %s157 = sadd.s32 %s155, %s156
        %s158 = smul.addr %s157, 4
        %s159 = scalar_lea.vmem %s0, %s158
        %s160 = smul.u32 2, %s17
      $region20: #{quant_dit_forward.39} parent=15 // pred_fallthru
        _
      // Predicated region
      $region21: #{quant_dit_forward.39} parent=15 // pred_check
        %p161 = pneg %p69
      $region22: #{quant_dit_forward.39} parent=15 // pred_check_branch
        %163 = sbr.rel (%p161) target = $region24
      $region23: #{quant_dit_forward.39} parent=15 // pred_region
        %p164 = scmp.lt.s32.totalorder %s16, 1
        %s165 = scalar_select %p164, %s16, 1
        %s166 = scalar_lea.vmem %s1, %s165
      $region24: #{quant_dit_forward.39} parent=15 // pred_fallthru
        _
      // Predicated region
      $region25: #{quant_dit_forward.39} parent=15 // pred_check
        %p167 = pneg %p95
      $region26: #{quant_dit_forward.39} parent=15 // pred_check_branch
        %169 = sbr.rel (%p167) target = $region28
      $region27: #{quant_dit_forward.39} parent=15 // pred_region
        %p170 = scmp.lt.s32.totalorder %s16, 1
        %s171 = scalar_select %p170, %s16, 1
        %s172 = scalar_lea.vmem %s2, %s171
      $region28: #{quant_dit_forward.39} parent=15 // pred_fallthru
        _
    $region16: #{quant_dit_forward.39} parent=5 // pred_fallthru
      _
    %p173 = scmp.le.s32.totalorder 1, %s9
    %p174 = scmp.lt.s32.totalorder %s9, 3
    %p175 = pnand %p173, %p174
    %p176 = pneg %p175
    // Predicated region
    $region29: #{quant_dit_forward.39} parent=5 // pred_check
      _
    $region30: #{quant_dit_forward.39} parent=5 // pred_check_branch
      %178 = sbr.rel (%p175) target = $region32
    $region31: #{quant_dit_forward.39} parent=5 // pred_region
      %s179 = ssub.s32 %s9, 1
      %s180 = smul.u32 2, %s19
      %p181 = scmp.lt.s32.totalorder %s18, 1
      %s182 = scalar_select %p181, %s18, 1
      %p183 = scmp.lt.s32.totalorder %s180, 1
      %s184 = scalar_select %p183, %s180, 1
      %s185 = smul.addr %s182, 2
      %s186 = sadd.s32 %s184, %s185
      %s187 = smul.addr %s186, 4
      %s188 = scalar_lea.vmem %s0, %s187
      %p189 = pneg %p49
      %p190 = pneg %p46
      %p191 = scmp.lt.s32.totalorder %s18, 1
      %s192 = scalar_select %p191, %s18, 1
      %s193 = scalar_lea.vmem %s1, %s192
      %p194 = pneg %p75
      %p195 = pneg %p72
      %p196 = scmp.lt.s32.totalorder %s18, 1
      %s197 = scalar_select %p196, %s18, 1
      %s198 = scalar_lea.vmem %s2, %s197
      %p199 = pneg %p101
      %p200 = pneg %p98
      %p201 = pneg %p129
      %p202 = pneg %p126
      %s203 = smul.u32 2, %s19
      %p204 = scmp.lt.s32.totalorder %s18, 1
      %s205 = scalar_select %p204, %s18, 1
      %p206 = scmp.lt.s32.totalorder %s203, 1
      %s207 = scalar_select %p206, %s203, 1
      %s208 = smul.addr %s205, 2
      %s209 = sadd.s32 %s207, %s208
      %s210 = smul.addr %s209, 8
      %s211 = scalar_lea.vmem %s3, %s210
      %s212 = smul.u32 2, %s19
      %p213 = scmp.lt.s32.totalorder %s18, 1
      %s214 = scalar_select %p213, %s18, 1
      %p215 = scmp.lt.s32.totalorder %s212, 1
      %s216 = scalar_select %p215, %s212, 1
      %s217 = smul.addr %s214, 2
      %s218 = sadd.s32 %s216, %s217
      %s219 = smul.addr %s218, 4
      %s220 = scalar_lea.vmem %s0, %s219
      %s221 = smul.u32 2, %s19
      %p222 = scmp.lt.s32.totalorder %s18, 1
      %s223 = scalar_select %p222, %s18, 1
      %s224 = scalar_lea.vmem %s1, %s223
      %p225 = scmp.lt.s32.totalorder %s18, 1
      %s226 = scalar_select %p225, %s18, 1
      %s227 = scalar_lea.vmem %s2, %s226
      %s228 = smul.u32 2, %s19
      %p229 = scmp.lt.s32.totalorder %s18, 1
      %s230 = scalar_select %p229, %s18, 1
      %p231 = scmp.lt.s32.totalorder %s228, 1
      %s232 = scalar_select %p231, %s228, 1
      %s233 = smul.addr %s230, 2
      %s234 = sadd.s32 %s232, %s233
      %s235 = smul.addr %s234, 8
      %s236 = scalar_lea.vmem %s3, %s235
      %s237 = smul.u32 2, %s19
      %v238 = vld [vmem:[%s220] sm:$0xf]
      %v239 = vld [vmem:[%s220 + $0x4] sm:$0xf]
      %v240 = vunpack.c.l.bf16 %v238
      %v241 = vunpack.c.l.bf16 %v239
      %242 = vadd.xlane.f32.xlu0 %v240
      %v243 = vpop.xlane.xlu0 %242
      %244 = vadd.xlane.f32.xlu0 %v241
      %v245 = vpop.xlane.xlu0 %244
      %v246 = vrcp.pop 128.0
      %v247 = vmul.f32 %v243, %v246
      %v248 = vmul.f32 %v245, %v246
      %v249 = vmul.f32 %v240, %v240
      %v250 = vmul.f32 %v241, %v241
      %251 = vadd.xlane.f32.xlu0 %v249
      %v252 = vpop.xlane.xlu0 %251
      %253 = vadd.xlane.f32.xlu0 %v250
      %v254 = vpop.xlane.xlu0 %253
      %v255 = vmul.f32 %v252, %v246
      %v256 = vmul.f32 %v254, %v246
      %v257 = vmul.f32 %v247, %v247
      %v258 = vmul.f32 %v248, %v248
      %v259 = vsub.f32 %v255, %v257
      %v260 = vsub.f32 %v256, %v258
      %v261 = vmax.f32 %v259, 0.0
      %v262 = vmax.f32 %v260, 0.0
      %v263 = vsub.f32 %v240, %v247
      %v264 = vsub.f32 %v241, %v248
      %v265 = vadd.f32 %v261, 1e-06
      %v266 = vadd.f32 %v262, 1e-06
      %v267 = vrsqrt.pop %v265
      %v268 = vrsqrt.pop %v266
      %v269 = vmul.f32 %v263, %v267
      %v270 = vmul.f32 %v264, %v268
      %v271 = vld [vmem:[%s224] sm:$0x1]
      %v272 = vadd.f32 %v271, 1.0
      %v274 = vlaneseq
      %v275 = vshrl.u32 %v274, 7
      %v276 = vsub.s32 0, %v275
      %v277 = vrot.slane %v272, %v276
      %v279 = vmul.f32 %v269, %v277
      %v280 = vmul.f32 %v270, %v277
      %v281 = vld [vmem:[%s227] sm:$0x1]
      %v283 = vlaneseq
      %v284 = vshrl.u32 %v283, 7
      %v285 = vsub.s32 0, %v284
      %v286 = vrot.slane %v281, %v285
      %v288 = vadd.f32 %v279, %v286
      %v289 = vadd.f32 %v280, %v286
      %290 = vst [vmem:[%s236] sm:$0xff] %v288
      %291 = vst [vmem:[%s236 + $0x8] sm:$0xff] %v289
      %s292 = smul.u32 2, %s19
      %p293 = scmp.lt.s32.totalorder %s18, 1
      %s294 = scalar_select %p293, %s18, 1
      %p295 = scmp.lt.s32.totalorder %s292, 1
      %s296 = scalar_select %p295, %s292, 1
      %s297 = smul.addr %s294, 2
      %s298 = sadd.s32 %s296, %s297
      %s299 = smul.addr %s298, 8
      %s300 = scalar_lea.vmem %s3, %s299
      // Predicated region
      $region33: #{quant_dit_forward.39} parent=31 // pred_check
        %p301 = pneg %p126
      $region34: #{quant_dit_forward.39} parent=31 // pred_check_branch
        %303 = sbr.rel (%p301) target = $region36
      $region35: #{quant_dit_forward.39} parent=31 // pred_region
        %s304 = smul.u32 2, %s19
      $region36: #{quant_dit_forward.39} parent=31 // pred_fallthru
        _
    $region32: #{quant_dit_forward.39} parent=5 // pred_fallthru
      _
    %p305 = scmp.le.s32.totalorder 2, %s9
    // Predicated region
    $region37: #{quant_dit_forward.39} parent=5 // pred_check
      %p306 = pneg %p305
    $region38: #{quant_dit_forward.39} parent=5 // pred_check_branch
      %308 = sbr.rel (%p306) target = $region40
    $region39: #{quant_dit_forward.39} parent=5 // pred_region
      %s309 = ssub.s32 %s9, 2
      // Predicated region
      $region41: #{quant_dit_forward.39} parent=39 // pred_check
        %p310 = pneg %p132
      $region42: #{quant_dit_forward.39} parent=39 // pred_check_branch
        %312 = sbr.rel (%p310) target = $region44
      $region43: #{quant_dit_forward.39} parent=39 // pred_region
        %s313 = smul.u32 2, %s21
        %p314 = scmp.lt.s32.totalorder %s20, 1
        %s315 = scalar_select %p314, %s20, 1
        %p316 = scmp.lt.s32.totalorder %s313, 1
        %s317 = scalar_select %p316, %s313, 1
        %s318 = smul.addr %s315, 2
        %s319 = sadd.s32 %s317, %s318
        %s320 = smul.addr %s319, 8
        %s321 = scalar_lea.vmem %s3, %s320
      $region44: #{quant_dit_forward.39} parent=39 // pred_fallthru
        _
    $region40: #{quant_dit_forward.39} parent=5 // pred_fallthru
      _
  $region6: #{quant_dit_forward.39} parent=0 // loop_footer
    %s13 = sadd.s32 1, %s9
  $region7: #{quant_dit_forward.39} parent=0 // loop_footer_branch
    %8 = sbr.rel target = $region3
  $region8: #{quant_dit_forward.39} parent=0 // loop_exit
    _

// kernel: quant_dit_forward.34
$region0: #{quant_dit_forward.34}
  #allocation0 [shape = 'u32[]', space=smem, size = 0x4, offset = 0x4, fixed_abs, tag = 'smem constant byte address 0x4 - core index']
  #allocation1 [shape = 'u32[144,128]{1,0:T(1,128)}', space=vmem, size = 0x12000, scoped, tag = 'internal scratch']
  #allocation2 [shape = 'f32[16,128]{1,0:T(8,128)}', space=vmem, size = 0x2000, scoped, tag = 'scratch operand']
  %s0 = inlined_call_operand.vmem [shape: bf16[2,16,128], index: 0, kind: input, shape index: {}]
  %s1 = inlined_call_operand.vmem [shape: bf16[2,16,128], index: 1, kind: input, shape index: {}]
  %s2 = inlined_call_operand.vmem [shape: bf16[2,16,128], index: 2, kind: input, shape index: {}]
  %s3 = inlined_call_operand.vmem [shape: s8[2,16,128], index: 3, kind: output, shape index: {0}]
  %s4 = inlined_call_operand.vmem [shape: f32[2,16,1], index: 4, kind: output, shape index: {1}]
  %5 = xla_tuple %s3, %s4
  %s6 = sld [smem:[#allocation0]]
  $region53: #{quant_dit_forward.34} parent=0
    _
  %s8 = ssub.s32 1, %s6
  %s9 = scalar_select 0, %s8, %s6
  loop: start=0, step=1, limit=4
  $region2: #{quant_dit_forward.34} parent=0 // loop_pre_header
    _
  $region3: #{quant_dit_forward.34} parent=0 // loop_header
    %s11 = sphi 0, %s15
    %p12 = scmp.ge.s32.totalorder %s11, 4
    %s18 = sphi 0, %s37
    %s19 = sphi 0, %s33
    %s20 = sphi 0, %s29
    %s21 = sphi 0, %s18
    %s22 = sphi 0, %s19
    %s23 = sphi 0, %s20
    %s24 = sphi 0, %s21
    %s25 = sphi 0, %s22
    %s26 = sphi 0, %s23
    %s42 = sphi 0, %s44
    %s45 = sphi 0, %s42
    %s46 = sphi 0, %s45
    %s62 = sphi 0, %s46
    %s70 = sphi 0, %s72
    %s73 = sphi 0, %s70
    %s74 = sphi 0, %s73
    %s90 = sphi 0, %s74
    %s98 = sphi 0, %s100
    %s101 = sphi 0, %s98
    %s102 = sphi 0, %s101
    %s118 = sphi 0, %s102
    %s126 = sphi 0, %s128
    %s129 = sphi 0, %s126
    %s130 = sphi 0, %s129
    %s146 = sphi 0, %s130
    %s154 = sphi 0, %s156
    %s157 = sphi 0, %s154
    %s158 = sphi 0, %s157
    %s174 = sphi 0, %s158
  $region4: #{quant_dit_forward.34} parent=0 // loop_header_branch
    %14 = sbr.rel (%p12) target = $region8
  $region5: #{quant_dit_forward.34} parent=0 // loop_body
    %s16 = ssub.s32 %s11, 1
    %s17 = ssub.s32 %s11, 2
    %s27 = sadd.s32 1, %s20
    %p28 = scmp.ge.s32.totalorder %s27, 1
    %s29 = scalar_select %p28, 0, %s27
    %s30 = sadd.s32 1, %s19
    %s31 = scalar_select %p28, %s30, %s19
    %p32 = scmp.ge.s32.totalorder %s31, 1
    %s33 = scalar_select %p32, 0, %s31
    %s34 = sadd.s32 1, %s18
    %s35 = scalar_select %p32, %s34, %s18
    %p36 = scmp.ge.s32.totalorder %s35, 2
    %s37 = scalar_select %p36, 0, %s35
    %s38 = ssub.s32 %s18, %s37
    %s39 = ssub.s32 %s19, %s33
    %s40 = sor.u32 %s38, %s39
    %p41 = scmp.eq.s32.totalorder %s40, 0
    %s43 = sadd.s32 %s42, 1
    %s44 = scalar_select %p41, %s42, %s43
    %p47 = pneg %p41
    %p48 = scmp.eq.s32.totalorder %s11, 1
    %p49 = por %p47, %p48
    %p50 = scmp.ne.s32.totalorder %s42, %s45
    %p51 = scmp.eq.s32.totalorder %s11, 0
    %p52 = por %p50, %p51
    %p53 = scmp.ne.s32.totalorder %s42, %s45
    %p54 = scmp.eq.s32.totalorder %s16, 1
    %p55 = por %p53, %p54
    %p56 = scmp.ne.s32.totalorder %s45, %s46
    %p57 = scmp.eq.s32.totalorder %s16, 0
    %p58 = por %p56, %p57
    %p59 = scmp.ne.s32.totalorder %s45, %s46
    %p60 = scmp.eq.s32.totalorder %s17, 1
    %p61 = por %p59, %p60
    %p63 = scmp.ne.s32.totalorder %s46, %s62
    %p64 = scmp.eq.s32.totalorder %s17, 0
    %p65 = por %p63, %p64
    %s66 = ssub.s32 %s18, %s37
    %s67 = ssub.s32 %s20, %s29
    %s68 = sor.u32 %s66, %s67
    %p69 = scmp.eq.s32.totalorder %s68, 0
    %s71 = sadd.s32 %s70, 1
    %s72 = scalar_select %p69, %s70, %s71
    %p75 = pneg %p69
    %p76 = scmp.eq.s32.totalorder %s11, 1
    %p77 = por %p75, %p76
    %p78 = scmp.ne.s32.totalorder %s70, %s73
    %p79 = scmp.eq.s32.totalorder %s11, 0
    %p80 = por %p78, %p79
    %p81 = scmp.ne.s32.totalorder %s70, %s73
    %p82 = scmp.eq.s32.totalorder %s16, 1
    %p83 = por %p81, %p82
    %p84 = scmp.ne.s32.totalorder %s73, %s74
    %p85 = scmp.eq.s32.totalorder %s16, 0
    %p86 = por %p84, %p85
    %p87 = scmp.ne.s32.totalorder %s73, %s74
    %p88 = scmp.eq.s32.totalorder %s17, 1
    %p89 = por %p87, %p88
    %p91 = scmp.ne.s32.totalorder %s74, %s90
    %p92 = scmp.eq.s32.totalorder %s17, 0
    %p93 = por %p91, %p92
    %s94 = ssub.s32 %s18, %s37
    %s95 = ssub.s32 %s20, %s29
    %s96 = sor.u32 %s94, %s95
    %p97 = scmp.eq.s32.totalorder %s96, 0
    %s99 = sadd.s32 %s98, 1
    %s100 = scalar_select %p97, %s98, %s99
    %p103 = pneg %p97
    %p104 = scmp.eq.s32.totalorder %s11, 1
    %p105 = por %p103, %p104
    %p106 = scmp.ne.s32.totalorder %s98, %s101
    %p107 = scmp.eq.s32.totalorder %s11, 0
    %p108 = por %p106, %p107
    %p109 = scmp.ne.s32.totalorder %s98, %s101
    %p110 = scmp.eq.s32.totalorder %s16, 1
    %p111 = por %p109, %p110
    %p112 = scmp.ne.s32.totalorder %s101, %s102
    %p113 = scmp.eq.s32.totalorder %s16, 0
    %p114 = por %p112, %p113
    %p115 = scmp.ne.s32.totalorder %s101, %s102
    %p116 = scmp.eq.s32.totalorder %s17, 1
    %p117 = por %p115, %p116
    %p119 = scmp.ne.s32.totalorder %s102, %s118
    %p120 = scmp.eq.s32.totalorder %s17, 0
    %p121 = por %p119, %p120
    %s122 = ssub.s32 %s18, %s37
    %s123 = ssub.s32 %s19, %s33
    %s124 = sor.u32 %s122, %s123
    %p125 = scmp.eq.s32.totalorder %s124, 0
    %s127 = sadd.s32 %s126, 1
    %s128 = scalar_select %p125, %s126, %s127
    %p131 = pneg %p125
    %p132 = scmp.eq.s32.totalorder %s11, 1
    %p133 = por %p131, %p132
    %p134 = scmp.ne.s32.totalorder %s126, %s129
    %p135 = scmp.eq.s32.totalorder %s11, 0
    %p136 = por %p134, %p135
    %p137 = scmp.ne.s32.totalorder %s126, %s129
    %p138 = scmp.eq.s32.totalorder %s16, 1
    %p139 = por %p137, %p138
    %p140 = scmp.ne.s32.totalorder %s129, %s130
    %p141 = scmp.eq.s32.totalorder %s16, 0
    %p142 = por %p140, %p141
    %p143 = scmp.ne.s32.totalorder %s129, %s130
    %p144 = scmp.eq.s32.totalorder %s17, 1
    %p145 = por %p143, %p144
    %p147 = scmp.ne.s32.totalorder %s130, %s146
    %p148 = scmp.eq.s32.totalorder %s17, 0
    %p149 = por %p147, %p148
    %s150 = ssub.s32 %s18, %s37
    %s151 = ssub.s32 %s19, %s33
    %s152 = sor.u32 %s150, %s151
    %p153 = scmp.eq.s32.totalorder %s152, 0
    %s155 = sadd.s32 %s154, 1
    %s156 = scalar_select %p153, %s154, %s155
    %p159 = pneg %p153
    %p160 = scmp.eq.s32.totalorder %s11, 1
    %p161 = por %p159, %p160
    %p162 = scmp.ne.s32.totalorder %s154, %s157
    %p163 = scmp.eq.s32.totalorder %s11, 0
    %p164 = por %p162, %p163
    %p165 = scmp.ne.s32.totalorder %s154, %s157
    %p166 = scmp.eq.s32.totalorder %s16, 1
    %p167 = por %p165, %p166
    %p168 = scmp.ne.s32.totalorder %s157, %s158
    %p169 = scmp.eq.s32.totalorder %s16, 0
    %p170 = por %p168, %p169
    %p171 = scmp.ne.s32.totalorder %s157, %s158
    %p172 = scmp.eq.s32.totalorder %s17, 1
    %p173 = por %p171, %p172
    %p175 = scmp.ne.s32.totalorder %s158, %s174
    %p176 = scmp.eq.s32.totalorder %s17, 0
    %p177 = por %p175, %p176
    %p178 = scmp.le.s32.totalorder 1, %s11
    %p179 = scmp.lt.s32.totalorder %s11, 3
    %p180 = pnand %p178, %p179
    %p181 = pneg %p180
    // Predicated region
    $region9: #{quant_dit_forward.34} parent=5 // pred_check
      _
    $region10: #{quant_dit_forward.34} parent=5 // pred_check_branch
      %183 = sbr.rel (%p180) target = $region12
    $region11: #{quant_dit_forward.34} parent=5 // pred_region
      %s184 = ssub.s32 %s11, 1
    $region12: #{quant_dit_forward.34} parent=5 // pred_fallthru
      _
    %p185 = scmp.lt.s32.totalorder %s11, 2
    // Predicated region
    $region13: #{quant_dit_forward.34} parent=5 // pred_check
      %p186 = pneg %p185
    $region14: #{quant_dit_forward.34} parent=5 // pred_check_branch
      %188 = sbr.rel (%p186) target = $region16
    $region15: #{quant_dit_forward.34} parent=5 // pred_region
      // Predicated region
      $region17: #{quant_dit_forward.34} parent=15 // pred_check
        %p189 = pneg %p52
      $region18: #{quant_dit_forward.34} parent=15 // pred_check_branch
        %191 = sbr.rel (%p189) target = $region20
      $region19: #{quant_dit_forward.34} parent=15 // pred_region
        %s192 = smul.u32 2, %s19
        %p193 = scmp.lt.s32.totalorder %s18, 1
        %s194 = scalar_select %p193, %s18, 1
        %p195 = scmp.lt.s32.totalorder %s192, 1
        %s196 = scalar_select %p195, %s192, 1
        %s197 = smul.addr %s194, 2
        %s198 = sadd.s32 %s196, %s197
        %s199 = smul.addr %s198, 4
        %s200 = scalar_lea.vmem %s0, %s199
        %s201 = smul.u32 2, %s19
      $region20: #{quant_dit_forward.34} parent=15 // pred_fallthru
        _
      // Predicated region
      $region21: #{quant_dit_forward.34} parent=15 // pred_check
        %p202 = pneg %p80
      $region22: #{quant_dit_forward.34} parent=15 // pred_check_branch
        %204 = sbr.rel (%p202) target = $region24
      $region23: #{quant_dit_forward.34} parent=15 // pred_region
        %s205 = smul.u32 2, %s20
        %p206 = scmp.lt.s32.totalorder %s18, 1
        %s207 = scalar_select %p206, %s18, 1
        %p208 = scmp.lt.s32.totalorder %s205, 1
        %s209 = scalar_select %p208, %s205, 1
        %s210 = smul.addr %s207, 2
        %s211 = sadd.s32 %s209, %s210
        %s212 = smul.addr %s211, 4
        %s213 = scalar_lea.vmem %s1, %s212
        %s214 = smul.u32 2, %s20
      $region24: #{quant_dit_forward.34} parent=15 // pred_fallthru
        _
      // Predicated region
      $region25: #{quant_dit_forward.34} parent=15 // pred_check
        %p215 = pneg %p108
      $region26: #{quant_dit_forward.34} parent=15 // pred_check_branch
        %217 = sbr.rel (%p215) target = $region28
      $region27: #{quant_dit_forward.34} parent=15 // pred_region
        %s218 = smul.u32 2, %s20
        %p219 = scmp.lt.s32.totalorder %s18, 1
        %s220 = scalar_select %p219, %s18, 1
        %p221 = scmp.lt.s32.totalorder %s218, 1
        %s222 = scalar_select %p221, %s218, 1
        %s223 = smul.addr %s220, 2
        %s224 = sadd.s32 %s222, %s223
        %s225 = smul.addr %s224, 4
        %s226 = scalar_lea.vmem %s2, %s225
        %s227 = smul.u32 2, %s20
      $region28: #{quant_dit_forward.34} parent=15 // pred_fallthru
        _
    $region16: #{quant_dit_forward.34} parent=5 // pred_fallthru
      _
    %p228 = scmp.le.s32.totalorder 1, %s11
    %p229 = scmp.lt.s32.totalorder %s11, 3
    %p230 = pnand %p228, %p229
    %p231 = pneg %p230
    // Predicated region
    $region29: #{quant_dit_forward.34} parent=5 // pred_check
      _
    $region30: #{quant_dit_forward.34} parent=5 // pred_check_branch
      %233 = sbr.rel (%p230) target = $region32
    $region31: #{quant_dit_forward.34} parent=5 // pred_region
      %s234 = ssub.s32 %s11, 1
      %s235 = smul.u32 2, %s22
      %p236 = scmp.lt.s32.totalorder %s21, 1
      %s237 = scalar_select %p236, %s21, 1
      %p238 = scmp.lt.s32.totalorder %s235, 1
      %s239 = scalar_select %p238, %s235, 1
      %s240 = smul.addr %s237, 2
      %s241 = sadd.s32 %s239, %s240
      %s242 = smul.addr %s241, 4
      %s243 = scalar_lea.vmem %s0, %s242
      %p244 = pneg %p58
      %p245 = pneg %p55
      %s246 = smul.u32 2, %s23
      %p247 = scmp.lt.s32.totalorder %s21, 1
      %s248 = scalar_select %p247, %s21, 1
      %p249 = scmp.lt.s32.totalorder %s246, 1
      %s250 = scalar_select %p249, %s246, 1
      %s251 = smul.addr %s248, 2
      %s252 = sadd.s32 %s250, %s251
      %s253 = smul.addr %s252, 4
      %s254 = scalar_lea.vmem %s1, %s253
      %p255 = pneg %p86
      %p256 = pneg %p83
      %s257 = smul.u32 2, %s23
      %p258 = scmp.lt.s32.totalorder %s21, 1
      %s259 = scalar_select %p258, %s21, 1
      %p260 = scmp.lt.s32.totalorder %s257, 1
      %s261 = scalar_select %p260, %s257, 1
      %s262 = smul.addr %s259, 2
      %s263 = sadd.s32 %s261, %s262
      %s264 = smul.addr %s263, 4
      %s265 = scalar_lea.vmem %s2, %s264
      %p266 = pneg %p114
      %p267 = pneg %p111
      %p268 = pneg %p142
      %p269 = pneg %p139
      %s270 = smul.u32 2, %s22
      %p271 = scmp.lt.s32.totalorder %s21, 1
      %s272 = scalar_select %p271, %s21, 1
      %p273 = scmp.lt.s32.totalorder %s270, 1
      %s274 = scalar_select %p273, %s270, 1
      %s275 = smul.addr %s272, 2
      %s276 = sadd.s32 %s274, %s275
      %s277 = smul.addr %s276, 2
      %s278 = scalar_lea.vmem %s3, %s277
      %p279 = pneg %p170
      %p280 = pneg %p167
      %s281 = smul.u32 2, %s22
      %p282 = scmp.lt.s32.totalorder %s21, 1
      %s283 = scalar_select %p282, %s21, 1
      %p284 = scmp.lt.s32.totalorder %s281, 1
      %s285 = scalar_select %p284, %s281, 1
      %s286 = smul.addr %s283, 2
      %s287 = sadd.s32 %s285, %s286
      %s288 = smul.addr %s287, 8
      %s289 = scalar_lea.vmem %s4, %s288
      %s290 = smul.u32 2, %s22
      %p291 = scmp.lt.s32.totalorder %s21, 1
      %s292 = scalar_select %p291, %s21, 1
      %p293 = scmp.lt.s32.totalorder %s290, 1
      %s294 = scalar_select %p293, %s290, 1
      %s295 = smul.addr %s292, 2
      %s296 = sadd.s32 %s294, %s295
      %s297 = smul.addr %s296, 4
      %s298 = scalar_lea.vmem %s0, %s297
      %s299 = smul.u32 2, %s22
      %s300 = smul.u32 2, %s23
      %p301 = scmp.lt.s32.totalorder %s21, 1
      %s302 = scalar_select %p301, %s21, 1
      %p303 = scmp.lt.s32.totalorder %s300, 1
      %s304 = scalar_select %p303, %s300, 1
      %s305 = smul.addr %s302, 2
      %s306 = sadd.s32 %s304, %s305
      %s307 = smul.addr %s306, 4
      %s308 = scalar_lea.vmem %s1, %s307
      %s309 = smul.u32 2, %s23
      %s310 = smul.u32 2, %s23
      %p311 = scmp.lt.s32.totalorder %s21, 1
      %s312 = scalar_select %p311, %s21, 1
      %p313 = scmp.lt.s32.totalorder %s310, 1
      %s314 = scalar_select %p313, %s310, 1
      %s315 = smul.addr %s312, 2
      %s316 = sadd.s32 %s314, %s315
      %s317 = smul.addr %s316, 4
      %s318 = scalar_lea.vmem %s2, %s317
      %s319 = smul.u32 2, %s23
      %s320 = smul.u32 2, %s22
      %p321 = scmp.lt.s32.totalorder %s21, 1
      %s322 = scalar_select %p321, %s21, 1
      %p323 = scmp.lt.s32.totalorder %s320, 1
      %s324 = scalar_select %p323, %s320, 1
      %s325 = smul.addr %s322, 2
      %s326 = sadd.s32 %s324, %s325
      %s327 = smul.addr %s326, 2
      %s328 = scalar_lea.vmem %s3, %s327
      %s329 = smul.u32 2, %s22
      %s330 = smul.u32 2, %s22
      %p331 = scmp.lt.s32.totalorder %s21, 1
      %s332 = scalar_select %p331, %s21, 1
      %p333 = scmp.lt.s32.totalorder %s330, 1
      %s334 = scalar_select %p333, %s330, 1
      %s335 = smul.addr %s332, 2
      %s336 = sadd.s32 %s334, %s335
      %s337 = smul.addr %s336, 8
      %s338 = scalar_lea.vmem %s4, %s337
      %s339 = smul.u32 2, %s22
      %v341 = vld [vmem:[%s308] sm:$0xf]
      %v342 = vld [vmem:[%s308 + $0x4] sm:$0xf]
      %v343 = vld [vmem:[%s318] sm:$0xf]
      %v344 = vld [vmem:[%s318 + $0x4] sm:$0xf]
      %v345 = vld [vmem:[%s298] sm:$0xf]
      %v346 = vld [vmem:[%s298 + $0x4] sm:$0xf]
      %v349 = vunpack.c.l.b16 %v345
      %v350 = vunpack.c.l.b16 %v346
      %v351 = vpack.c.b16 %v350, %v349
      %v354 = vunpack.c.l.b16 %v341
      %v355 = vunpack.c.l.b16 %v342
      %v356 = vpack.c.b16 %v355, %v354
      %vm357 = vcmask 523264
      %v359 = vsel %vm357, %v351, 0
      %v362 = vsel %vm357, %v356, 0
      %364 = vmatprep.subr.bf16.mxu0 0
      %365 = vmatpush1.bf16.xpose.msra.mxu0 0
      %366 = vmatprep.subr.bf16.mxu0 0
      %367 = vmatpush1.bf16.xpose.msra.mxu0 0
      %368 = vmatprep.subr.bf16.mxu0 0
      %369 = vmatpush1.bf16.xpose.msra.mxu0 0
      %370 = vmatprep.subr.bf16.mxu0 0
      %371 = vmatpush1.bf16.xpose.msra.mxu0 0
      %372 = vmatprep.subr.bf16.mxu0 0
      %373 = vmatpush1.bf16.xpose.msra.mxu0 0
      %374 = vmatprep.subr.bf16.mxu0 0
      %375 = vmatpush1.bf16.xpose.msra.mxu0 0
      %376 = vmatprep.subr.bf16.mxu0 0
      %377 = vmatpush1.bf16.xpose.msra.mxu0 0
      %378 = vmatprep.subr.bf16.mxu0 0
      %379 = vmatpush1.bf16.xpose.msra.mxu0 %v362
      %380 = vmatprep.subr.bf16.mxu0 0
      %381 = vmatpush2.bf16.xpose.msra.mxu0 0
      %382 = vmatprep.subr.bf16.mxu0 0
      %383 = vmatpush2.bf16.xpose.msra.mxu0 0
      %384 = vmatprep.subr.bf16.mxu0 0
      %385 = vmatpush2.bf16.xpose.msra.mxu0 0
      %386 = vmatprep.subr.bf16.mxu0 0
      %387 = vmatpush2.bf16.xpose.msra.mxu0 0
      %388 = vmatprep.subr.bf16.mxu0 0
      %389 = vmatpush2.bf16.xpose.msra.mxu0 0
      %390 = vmatprep.subr.bf16.mxu0 0
      %391 = vmatpush2.bf16.xpose.msra.mxu0 0
      %392 = vmatprep.subr.bf16.mxu0 0
      %393 = vmatpush2.bf16.xpose.msra.mxu0 0
      %394 = vmatprep.subr.bf16.mxu0 0
      %395 = vmatpush2.bf16.xpose.msra.mxu0 0
      %396 = vmatprep.mubr.bf16.mxu0 0
      %397 = vmatmul.mubr.bf16.gmra.mxu0 %v359
      %v398 = vpop.f32.mrf.mxu0
      %v399 = vadd.f32 0.0, %v398
      %v400 = vpop.f32.mrf.mxu0
      %v401 = vpop.f32.mrf.mxu0
      %v402 = vadd.f32 0.0, %v401
      %v403 = vpop.f32.mrf.mxu0
      %404 = vdwg.mxu0
      %vm405 = vcmask 130048
      %v406 = vsel %vm405, %v399, -inf
      %407 = vmax.xlane.f32.xlu0 %v406
      %v408 = vpop.xlane.xlu0 %407
      %v409 = vsel %vm405, %v402, -inf
      %410 = vmax.xlane.f32.xlu0 %v409
      %v411 = vpop.xlane.xlu0 %410
      %v412 = vsub.f32 %v399, %v408
      %v413 = vsub.f32 %v402, %v411
      %v414 = vmul.f32 %v412, 1.442695
      %v415 = vpow.pop %v414
      %v416 = vmul.f32 %v413, 1.442695
      %v417 = vpow.pop %v416
      %v418 = vsel %vm405, %v415, 0.0
      %419 = vadd.xlane.f32.xlu0 %v418
      %v420 = vpop.xlane.xlu0 %419
      %v421 = vsel %vm405, %v417, 0.0
      %422 = vadd.xlane.f32.xlu0 %v421
      %v423 = vpop.xlane.xlu0 %422
      %v424 = vpack.c.bf16 %v417, %v415
      %v427 = vunpack.c.l.b16 %v343
      %v428 = vunpack.c.l.b16 %v344
      %v429 = vpack.c.b16 %v428, %v427
      %v432 = vsel %vm405, %v424, 0
      %434 = vmatprep.subr.bf16.mxu0 0
      %435 = vmatpush1.bf16.msra.mxu0 0
      %436 = vmatprep.subr.bf16.mxu0 0
      %437 = vmatpush1.bf16.msra.mxu0 0
      %438 = vmatprep.subr.bf16.mxu0 0
      %439 = vmatpush1.bf16.msra.mxu0 0
      %440 = vmatprep.subr.bf16.mxu0 0
      %441 = vmatpush1.bf16.msra.mxu0 0
      %442 = vmatprep.subr.bf16.mxu0 0
      %443 = vmatpush1.bf16.msra.mxu0 0
      %444 = vmatprep.subr.bf16.mxu0 0
      %445 = vmatpush1.bf16.msra.mxu0 0
      %446 = vmatprep.subr.bf16.mxu0 0
      %447 = vmatpush1.bf16.msra.mxu0 0
      %448 = vmatprep.subr.bf16.mxu0 0
      %449 = vmatpush1.bf16.msra.mxu0 %v429
      %450 = vmatprep.subr.bf16.mxu0 0
      %451 = vmatpush2.bf16.msra.mxu0 0
      %452 = vmatprep.subr.bf16.mxu0 0
      %453 = vmatpush2.bf16.msra.mxu0 0
      %454 = vmatprep.subr.bf16.mxu0 0
      %455 = vmatpush2.bf16.msra.mxu0 0
      %456 = vmatprep.subr.bf16.mxu0 0
      %457 = vmatpush2.bf16.msra.mxu0 0
      %458 = vmatprep.subr.bf16.mxu0 0
      %459 = vmatpush2.bf16.msra.mxu0 0
      %460 = vmatprep.subr.bf16.mxu0 0
      %461 = vmatpush2.bf16.msra.mxu0 0
      %462 = vmatprep.subr.bf16.mxu0 0
      %463 = vmatpush2.bf16.msra.mxu0 0
      %464 = vmatprep.subr.bf16.mxu0 0
      %465 = vmatpush2.bf16.msra.mxu0 0
      %466 = vmatprep.mubr.bf16.mxu0 0
      %467 = vmatmul.mubr.bf16.gmra.mxu0 %v432
      %v468 = vpop.f32.mrf.mxu0
      %v469 = vadd.f32 0.0, %v468
      %v470 = vpop.f32.mrf.mxu0
      %v471 = vpop.f32.mrf.mxu0
      %v472 = vadd.f32 0.0, %v471
      %v473 = vpop.f32.mrf.mxu0
      %474 = vdwg.mxu0
      %v475 = vrcp.pop %v420
      %v476 = vrcp.pop %v423
      %v477 = vmul.f32 %v469, %v475
      %v478 = vmul.f32 %v472, %v476
      %479 = vst.msk [vmem:[#allocation2] sm:$0xff] %vm357, %v477
      %480 = vst.msk [vmem:[#allocation2 + $0x8] sm:$0xff] %vm357, %v478
      %v481 = vld [vmem:[%s298] sm:$0xf]
      %v482 = vld [vmem:[%s298 + $0x4] sm:$0xf]
      %v485 = vunpack.c.l.b16 %v481
      %v486 = vunpack.c.l.b16 %v482
      %v487 = vpack.c.b16 %v486, %v485
      %488 = vrot.lane.b32.xlu0 %v487, 64
      %v489 = vpop.permute.xlu0 %488
      %490 = vrot.lane.b32.xlu0 %v356, 64
      %v491 = vpop.permute.xlu0 %490
      %v493 = vsel %vm357, %v489, 0
      %v496 = vsel %vm357, %v491, 0
      %498 = vmatprep.subr.bf16.mxu0 0
      %499 = vmatpush1.bf16.xpose.msra.mxu0 0
      %500 = vmatprep.subr.bf16.mxu0 0
      %501 = vmatpush1.bf16.xpose.msra.mxu0 0
      %502 = vmatprep.subr.bf16.mxu0 0
      %503 = vmatpush1.bf16.xpose.msra.mxu0 0
      %504 = vmatprep.subr.bf16.mxu0 0
      %505 = vmatpush1.bf16.xpose.msra.mxu0 0
      %506 = vmatprep.subr.bf16.mxu0 0
      %507 = vmatpush1.bf16.xpose.msra.mxu0 0
      %508 = vmatprep.subr.bf16.mxu0 0
      %509 = vmatpush1.bf16.xpose.msra.mxu0 0
      %510 = vmatprep.subr.bf16.mxu0 0
      %511 = vmatpush1.bf16.xpose.msra.mxu0 0
      %512 = vmatprep.subr.bf16.mxu0 0
      %513 = vmatpush1.bf16.xpose.msra.mxu0 %v496
      %514 = vmatprep.subr.bf16.mxu0 0
      %515 = vmatpush2.bf16.xpose.msra.mxu0 0
      %516 = vmatprep.subr.bf16.mxu0 0
      %517 = vmatpush2.bf16.xpose.msra.mxu0 0
      %518 = vmatprep.subr.bf16.mxu0 0
      %519 = vmatpush2.bf16.xpose.msra.mxu0 0
      %520 = vmatprep.subr.bf16.mxu0 0
      %521 = vmatpush2.bf16.xpose.msra.mxu0 0
      %522 = vmatprep.subr.bf16.mxu0 0
      %523 = vmatpush2.bf16.xpose.msra.mxu0 0
      %524 = vmatprep.subr.bf16.mxu0 0
      %525 = vmatpush2.bf16.xpose.msra.mxu0 0
      %526 = vmatprep.subr.bf16.mxu0 0
      %527 = vmatpush2.bf16.xpose.msra.mxu0 0
      %528 = vmatprep.subr.bf16.mxu0 0
      %529 = vmatpush2.bf16.xpose.msra.mxu0 0
      %530 = vmatprep.mubr.bf16.mxu0 0
      %531 = vmatmul.mubr.bf16.gmra.mxu0 %v493
      %v532 = vpop.f32.mrf.mxu0
      %v533 = vadd.f32 0.0, %v532
      %v534 = vpop.f32.mrf.mxu0
      %v535 = vpop.f32.mrf.mxu0
      %v536 = vadd.f32 0.0, %v535
      %v537 = vpop.f32.mrf.mxu0
      %538 = vdwg.mxu0
      %v539 = vsel %vm405, %v533, -inf
      %540 = vmax.xlane.f32.xlu0 %v539
      %v541 = vpop.xlane.xlu0 %540
      %v542 = vsel %vm405, %v536, -inf
      %543 = vmax.xlane.f32.xlu0 %v542
      %v544 = vpop.xlane.xlu0 %543
      %v545 = vsub.f32 %v533, %v541
      %v546 = vsub.f32 %v536, %v544
      %v547 = vmul.f32 %v545, 1.442695
      %v548 = vpow.pop %v547
      %v549 = vmul.f32 %v546, 1.442695
      %v550 = vpow.pop %v549
      %v551 = vsel %vm405, %v548, 0.0
      %552 = vadd.xlane.f32.xlu0 %v551
      %v553 = vpop.xlane.xlu0 %552
      %v554 = vsel %vm405, %v550, 0.0
      %555 = vadd.xlane.f32.xlu0 %v554
      %v556 = vpop.xlane.xlu0 %555
      %v557 = vpack.c.bf16 %v550, %v548
      %558 = vrot.lane.b32.xlu0 %v429, 64
      %v559 = vpop.permute.xlu0 %558
      %v562 = vsel %vm405, %v557, 0
      %564 = vmatprep.subr.bf16.mxu0 0
      %565 = vmatpush1.bf16.msra.mxu0 0
      %566 = vmatprep.subr.bf16.mxu0 0
      %567 = vmatpush1.bf16.msra.mxu0 0
      %568 = vmatprep.subr.bf16.mxu0 0
      %569 = vmatpush1.bf16.msra.mxu0 0
      %570 = vmatprep.subr.bf16.mxu0 0
      %571 = vmatpush1.bf16.msra.mxu0 0
      %572 = vmatprep.subr.bf16.mxu0 0
      %573 = vmatpush1.bf16.msra.mxu0 0
      %574 = vmatprep.subr.bf16.mxu0 0
      %575 = vmatpush1.bf16.msra.mxu0 0
      %576 = vmatprep.subr.bf16.mxu0 0
      %577 = vmatpush1.bf16.msra.mxu0 0
      %578 = vmatprep.subr.bf16.mxu0 0
      %579 = vmatpush1.bf16.msra.mxu0 %v559
      %580 = vmatprep.subr.bf16.mxu0 0
      %581 = vmatpush2.bf16.msra.mxu0 0
      %582 = vmatprep.subr.bf16.mxu0 0
      %583 = vmatpush2.bf16.msra.mxu0 0
      %584 = vmatprep.subr.bf16.mxu0 0
      %585 = vmatpush2.bf16.msra.mxu0 0
      %586 = vmatprep.subr.bf16.mxu0 0
      %587 = vmatpush2.bf16.msra.mxu0 0
      %588 = vmatprep.subr.bf16.mxu0 0
      %589 = vmatpush2.bf16.msra.mxu0 0
      %590 = vmatprep.subr.bf16.mxu0 0
      %591 = vmatpush2.bf16.msra.mxu0 0
      %592 = vmatprep.subr.bf16.mxu0 0
      %593 = vmatpush2.bf16.msra.mxu0 0
      %594 = vmatprep.subr.bf16.mxu0 0
      %595 = vmatpush2.bf16.msra.mxu0 0
      %596 = vmatprep.mubr.bf16.mxu0 0
      %597 = vmatmul.mubr.bf16.gmra.mxu0 %v562
      %v598 = vpop.f32.mrf.mxu0
      %v599 = vadd.f32 0.0, %v598
      %v600 = vpop.f32.mrf.mxu0
      %v601 = vpop.f32.mrf.mxu0
      %v602 = vadd.f32 0.0, %v601
      %v603 = vpop.f32.mrf.mxu0
      %604 = vdwg.mxu0
      %v605 = vrcp.pop %v553
      %v606 = vrcp.pop %v556
      %v607 = vmul.f32 %v599, %v605
      %v608 = vmul.f32 %v602, %v606
      %611 = vrot.lane.b32.xlu0 %v607, 64
      %v612 = vpop.permute.xlu0 %611
      %613 = vrot.lane.b32.xlu0 %v608, 64
      %v614 = vpop.permute.xlu0 %613
      %vm617 = vcmask 1048064
      %618 = vst.msk [vmem:[#allocation2] sm:$0xff] %vm617, %v612
      %619 = vst.msk [vmem:[#allocation2 + $0x8] sm:$0xff] %vm617, %v614
      %v620 = vld [vmem:[#allocation2] sm:$0xff]
      %v621 = vld [vmem:[#allocation2 + $0x8] sm:$0xff]
      %v622 = vand.u32 2147483647, %v620
      %v623 = vand.u32 2147483647, %v621
      %624 = vmax.xlane.f32.xlu0 %v622
      %v625 = vpop.xlane.xlu0 %624
      %626 = vmax.xlane.f32.xlu0 %v623
      %v627 = vpop.xlane.xlu0 %626
      %v628 = vmul.f32 %v625, 0.007874016
      %v629 = vmul.f32 %v627, 0.007874016
      %vm630 = vcmp.gt.f32.partialorder %v628, 0.0
      %vm631 = vcmp.gt.f32.partialorder %v629, 0.0
      %v632 = vsel %vm630, %v628, 1.0
      %v633 = vsel %vm631, %v629, 1.0
      %v634 = vrcp.pop %v632
      %v635 = vrcp.pop %v633
      %v636 = vmul.f32 %v620, %v634
      %v637 = vmul.f32 %v621, %v635
      %v638 = vround.ne.pseudo %v636
      %v639 = vround.ne.pseudo %v637
      %v640 = vmax.f32 %v638, -127.0
      %v641 = vmax.f32 %v639, -127.0
      %v642 = vmin.f32 %v640, 127.0
      %v643 = vmin.f32 %v641, 127.0
      %v644 = vmax.f32 %v642, -128.0
      %v645 = vmax.f32 %v643, -128.0
      %v646 = vmin.f32 %v644, 127.0
      %v647 = vmin.f32 %v645, 127.0
      %v648 = vcvt.f32.s32.to.zero.pseudo %v646
      %v649 = vcvt.f32.s32.to.zero.pseudo %v647
      %v650 = vpack.c.b16 %v648, %v648
      %v651 = vpack.c.b8 %v650, %v650
      %v652 = vpack.c.b16 %v649, %v649
      %v653 = vpack.c.b8 %v652, %v652
      %654 = vst [vmem:[%s328] sm:$0x3] %v651
      %655 = vst [vmem:[%s328 + $0x2] sm:$0x3] %v653
      %vm656 = vcmask 7168
      %657 = vst.msk [vmem:[%s338] sm:$0xff] %vm656, %v628
      %658 = vst.msk [vmem:[%s338 + $0x8] sm:$0xff] %vm656, %v629
      %s659 = smul.u32 2, %s22
      %p660 = scmp.lt.s32.totalorder %s21, 1
      %s661 = scalar_select %p660, %s21, 1
      %p662 = scmp.lt.s32.totalorder %s659, 1
      %s663 = scalar_select %p662, %s659, 1
      %s664 = smul.addr %s661, 2
      %s665 = sadd.s32 %s663, %s664
      %s666 = smul.addr %s665, 2
      %s667 = scalar_lea.vmem %s3, %s666
      %s668 = smul.u32 2, %s22
      %p669 = scmp.lt.s32.totalorder %s21, 1
      %s670 = scalar_select %p669, %s21, 1
      %p671 = scmp.lt.s32.totalorder %s668, 1
      %s672 = scalar_select %p671, %s668, 1
      %s673 = smul.addr %s670, 2
      %s674 = sadd.s32 %s672, %s673
      %s675 = smul.addr %s674, 8
      %s676 = scalar_lea.vmem %s4, %s675
      // Predicated region
      $region33: #{quant_dit_forward.34} parent=31 // pred_check
        %p677 = pneg %p139
      $region34: #{quant_dit_forward.34} parent=31 // pred_check_branch
        %679 = sbr.rel (%p677) target = $region36
      $region35: #{quant_dit_forward.34} parent=31 // pred_region
        %s680 = smul.u32 2, %s22
      $region36: #{quant_dit_forward.34} parent=31 // pred_fallthru
        _
      // Predicated region
      $region37: #{quant_dit_forward.34} parent=31 // pred_check
        %p681 = pneg %p167
      $region38: #{quant_dit_forward.34} parent=31 // pred_check_branch
        %683 = sbr.rel (%p681) target = $region40
      $region39: #{quant_dit_forward.34} parent=31 // pred_region
        %s684 = smul.u32 2, %s22
      $region40: #{quant_dit_forward.34} parent=31 // pred_fallthru
        _
    $region32: #{quant_dit_forward.34} parent=5 // pred_fallthru
      _
    %p685 = scmp.le.s32.totalorder 2, %s11
    // Predicated region
    $region41: #{quant_dit_forward.34} parent=5 // pred_check
      %p686 = pneg %p685
    $region42: #{quant_dit_forward.34} parent=5 // pred_check_branch
      %688 = sbr.rel (%p686) target = $region44
    $region43: #{quant_dit_forward.34} parent=5 // pred_region
      %s689 = ssub.s32 %s11, 2
      // Predicated region
      $region45: #{quant_dit_forward.34} parent=43 // pred_check
        %p690 = pneg %p145
      $region46: #{quant_dit_forward.34} parent=43 // pred_check_branch
        %692 = sbr.rel (%p690) target = $region48
      $region47: #{quant_dit_forward.34} parent=43 // pred_region
        %s693 = smul.u32 2, %s25
        %p694 = scmp.lt.s32.totalorder %s24, 1
        %s695 = scalar_select %p694, %s24, 1
        %p696 = scmp.lt.s32.totalorder %s693, 1
        %s697 = scalar_select %p696, %s693, 1
        %s698 = smul.addr %s695, 2
        %s699 = sadd.s32 %s697, %s698
        %s700 = smul.addr %s699, 2
        %s701 = scalar_lea.vmem %s3, %s700
      $region48: #{quant_dit_forward.34} parent=43 // pred_fallthru
        _
      // Predicated region
      $region49: #{quant_dit_forward.34} parent=43 // pred_check
        %p702 = pneg %p173
      $region50: #{quant_dit_forward.34} parent=43 // pred_check_branch
        %704 = sbr.rel (%p702) target = $region52
      $region51: #{quant_dit_forward.34} parent=43 // pred_region
        %s705 = smul.u32 2, %s25
        %p706 = scmp.lt.s32.totalorder %s24, 1
        %s707 = scalar_select %p706, %s24, 1
        %p708 = scmp.lt.s32.totalorder %s705, 1
        %s709 = scalar_select %p708, %s705, 1
        %s710 = smul.addr %s707, 2
        %s711 = sadd.s32 %s709, %s710
        %s712 = smul.addr %s711, 8
        %s713 = scalar_lea.vmem %s4, %s712
      $region52: #{quant_dit_forward.34} parent=43 // pred_fallthru
        _
    $region44: #{quant_dit_forward.34} parent=5 // pred_fallthru
      _
  $region6: #{quant_dit_forward.34} parent=0 // loop_footer
    %s15 = sadd.s32 1, %s11
  $region7: #{quant_dit_forward.34} parent=0 // loop_footer_branch
    %10 = sbr.rel target = $region3
  $region8: #{quant_dit_forward.34} parent=0 // loop_exit
    _

// kernel: quant_dit_forward.29
$region0: #{quant_dit_forward.29}
  #allocation0 [shape = 'u32[]', space=smem, size = 0x4, offset = 0x4, fixed_abs, tag = 'smem constant byte address 0x4 - core index']
  #allocation1 [shape = 'u32[144,128]{1,0:T(1,128)}', space=vmem, size = 0x12000, scoped, tag = 'internal scratch']
  #allocation2 [shape = 'f32[32,128]{1,0:T(8,128)}', space=vmem, size = 0x4000, scoped, tag = 'scratch operand']
  %s0 = inlined_call_operand.vmem [shape: s8[32,256], index: 0, kind: input, shape index: {}]
  %s1 = inlined_call_operand.vmem [shape: f32[32,1], index: 1, kind: input, shape index: {}]
  %s2 = inlined_call_operand.vmem [shape: s8[256,128], index: 2, kind: input, shape index: {}]
  %s3 = inlined_call_operand.vmem [shape: f32[1,128], index: 3, kind: input, shape index: {}]
  %s4 = inlined_call_operand.vmem [shape: f32[1,128], index: 4, kind: input, shape index: {}]
  %s5 = inlined_call_operand.vmem [shape: bf16[32,128], index: 5, kind: input, shape index: {}]
  %s6 = inlined_call_operand.vmem [shape: bf16[32,128], index: 6, kind: output, shape index: {}]
  %s7 = sld [smem:[#allocation0]]
  $region42: #{quant_dit_forward.29} parent=0
    _
  %s9 = ssub.s32 1, %s7
  %s10 = scalar_select 0, %s9, %s7
  // Predicated region
  $region2: #{quant_dit_forward.29} parent=0 // pred_check
    _
  $region3: #{quant_dit_forward.29} parent=0 // pred_check_branch
    %12 = sbr.rel (0) target = $region5
  $region4: #{quant_dit_forward.29} parent=0 // pred_region
    _
  $region5: #{quant_dit_forward.29} parent=0 // pred_fallthru
    _
  // Predicated region
  $region6: #{quant_dit_forward.29} parent=0 // pred_check
    _
  $region7: #{quant_dit_forward.29} parent=0 // pred_check_branch
    %14 = sbr.rel (0) target = $region9
  $region8: #{quant_dit_forward.29} parent=0 // pred_region
    _
  $region9: #{quant_dit_forward.29} parent=0 // pred_fallthru
    _
  // Predicated region
  $region10: #{quant_dit_forward.29} parent=0 // pred_check
    _
  $region11: #{quant_dit_forward.29} parent=0 // pred_check_branch
    %16 = sbr.rel (0) target = $region13
  $region12: #{quant_dit_forward.29} parent=0 // pred_region
    _
  $region13: #{quant_dit_forward.29} parent=0 // pred_fallthru
    _
  // Predicated region
  $region14: #{quant_dit_forward.29} parent=0 // pred_check
    _
  $region15: #{quant_dit_forward.29} parent=0 // pred_check_branch
    %18 = sbr.rel (0) target = $region17
  $region16: #{quant_dit_forward.29} parent=0 // pred_region
    _
  $region17: #{quant_dit_forward.29} parent=0 // pred_fallthru
    _
  // Predicated region
  $region18: #{quant_dit_forward.29} parent=0 // pred_check
    _
  $region19: #{quant_dit_forward.29} parent=0 // pred_check_branch
    %20 = sbr.rel (0) target = $region21
  $region20: #{quant_dit_forward.29} parent=0 // pred_region
    _
  $region21: #{quant_dit_forward.29} parent=0 // pred_fallthru
    _
  // Predicated region
  $region22: #{quant_dit_forward.29} parent=0 // pred_check
    _
  $region23: #{quant_dit_forward.29} parent=0 // pred_check_branch
    %22 = sbr.rel (0) target = $region25
  $region24: #{quant_dit_forward.29} parent=0 // pred_region
    _
  $region25: #{quant_dit_forward.29} parent=0 // pred_fallthru
    _
  %p24 = scmp.eq.s32.totalorder 0, 0
  // Predicated region
  $region26: #{quant_dit_forward.29} parent=0 // pred_check
    %p25 = pneg %p24
  $region27: #{quant_dit_forward.29} parent=0 // pred_check_branch
    %27 = sbr.rel (%p25) target = $region29
  $region28: #{quant_dit_forward.29} parent=0 // pred_region
    %28 = vst [vmem:[#allocation2] sm:$0xff] 0.0
    %29 = vst [vmem:[#allocation2 + $0x8] sm:$0xff] 0.0
    %30 = vst [vmem:[#allocation2 + $0x10] sm:$0xff] 0.0
    %31 = vst [vmem:[#allocation2 + $0x18] sm:$0xff] 0.0
  $region29: #{quant_dit_forward.29} parent=0 // pred_fallthru
    _
  %v32 = vld [vmem:[#allocation2] sm:$0xff]
  %v33 = vld [vmem:[#allocation2 + $0x8] sm:$0xff]
  %v34 = vld [vmem:[#allocation2 + $0x10] sm:$0xff]
  %v35 = vld [vmem:[#allocation2 + $0x18] sm:$0xff]
  %v36 = vld [vmem:[%s0] sm:$0xff]
  %v37 = vld [vmem:[%s0 + $0x8] sm:$0xff]
  %v38 = vunpack.c.l.s8.bf16 %v36
  %v39 = vunpack.c.l.s8.bf16 %v37
  %v40 = vunpack.c.h.s8.bf16 %v36
  %v41 = vunpack.c.h.s8.bf16 %v37
  %v42 = vld [vmem:[%s2] sm:$0xff]
  %v43 = vld [vmem:[%s2 + $0x8] sm:$0xff]
  %v44 = vld [vmem:[%s2 + $0x10] sm:$0xff]
  %v45 = vld [vmem:[%s2 + $0x18] sm:$0xff]
  %v46 = vld [vmem:[%s2 + $0x20] sm:$0xff]
  %v47 = vld [vmem:[%s2 + $0x28] sm:$0xff]
  %v48 = vld [vmem:[%s2 + $0x30] sm:$0xff]
  %v49 = vld [vmem:[%s2 + $0x38] sm:$0xff]
  %v50 = vunpack.c.l.s8.bf16 %v42
  %v51 = vunpack.c.h.s8.bf16 %v42
  %v52 = vunpack.c.l.s8.bf16 %v43
  %v53 = vunpack.c.h.s8.bf16 %v43
  %v54 = vunpack.c.l.s8.bf16 %v44
  %v55 = vunpack.c.h.s8.bf16 %v44
  %v56 = vunpack.c.l.s8.bf16 %v45
  %v57 = vunpack.c.h.s8.bf16 %v45
  %v58 = vunpack.c.l.s8.bf16 %v46
  %v59 = vunpack.c.h.s8.bf16 %v46
  %v60 = vunpack.c.l.s8.bf16 %v47
  %v61 = vunpack.c.h.s8.bf16 %v47
  %v62 = vunpack.c.l.s8.bf16 %v48
  %v63 = vunpack.c.h.s8.bf16 %v48
  %v64 = vunpack.c.l.s8.bf16 %v49
  %v65 = vunpack.c.h.s8.bf16 %v49
  %66 = vmatprep.subr.bf16.mxu0 0
  %67 = vmatpush1.bf16.msra.mxu0 %v57
  %68 = vmatprep.subr.bf16.mxu0 0
  %69 = vmatpush1.bf16.msra.mxu0 %v56
  %70 = vmatprep.subr.bf16.mxu0 0
  %71 = vmatpush1.bf16.msra.mxu0 %v55
  %72 = vmatprep.subr.bf16.mxu0 0
  %73 = vmatpush1.bf16.msra.mxu0 %v54
  %74 = vmatprep.subr.bf16.mxu0 0
  %75 = vmatpush1.bf16.msra.mxu0 %v53
  %76 = vmatprep.subr.bf16.mxu0 0
  %77 = vmatpush1.bf16.msra.mxu0 %v52
  %78 = vmatprep.subr.bf16.mxu0 0
  %79 = vmatpush1.bf16.msra.mxu0 %v51
  %80 = vmatprep.subr.bf16.mxu0 0
  %81 = vmatpush1.bf16.msra.mxu0 %v50
  %82 = vmatprep.subr.bf16.mxu0 0
  %83 = vmatpush2.bf16.msra.mxu0 %v65
  %84 = vmatprep.subr.bf16.mxu0 0
  %85 = vmatpush2.bf16.msra.mxu0 %v64
  %86 = vmatprep.subr.bf16.mxu0 0
  %87 = vmatpush2.bf16.msra.mxu0 %v63
  %88 = vmatprep.subr.bf16.mxu0 0
  %89 = vmatpush2.bf16.msra.mxu0 %v62
  %90 = vmatprep.subr.bf16.mxu0 0
  %91 = vmatpush2.bf16.msra.mxu0 %v61
  %92 = vmatprep.subr.bf16.mxu0 0
  %93 = vmatpush2.bf16.msra.mxu0 %v60
  %94 = vmatprep.subr.bf16.mxu0 0
  %95 = vmatpush2.bf16.msra.mxu0 %v59
  %96 = vmatprep.subr.bf16.mxu0 0
  %97 = vmatpush2.bf16.msra.mxu0 %v58
  %98 = vmatprep.mubr.bf16.mxu0 %v39
  %99 = vmatmul.mubr.bf16.gmra.mxu0 %v38
  %v100 = vpop.f32.mrf.mxu0
  %v101 = vadd.f32 0.0, %v100
  %v102 = vpop.f32.mrf.mxu0
  %v103 = vpop.f32.mrf.mxu0
  %v104 = vadd.f32 0.0, %v103
  %v105 = vpop.f32.mrf.mxu0
  %106 = vmatprep.mubr.bf16.mxu0 %v41
  %107 = vmatmul.mubr.bf16.gmra.mxu0 %v40
  %v108 = vpop.f32.mrf.mxu0
  %v109 = vadd.f32 0.0, %v108
  %v110 = vpop.f32.mrf.mxu0
  %v111 = vpop.f32.mrf.mxu0
  %v112 = vadd.f32 0.0, %v111
  %v113 = vpop.f32.mrf.mxu0
  %114 = vdwg.mxu0
  %v115 = vadd.f32 %v32, %v101
  %v116 = vadd.f32 %v33, %v104
  %v117 = vadd.f32 %v34, %v109
  %v118 = vadd.f32 %v35, %v112
  %119 = vst [vmem:[#allocation2] sm:$0xff] %v115
  %120 = vst [vmem:[#allocation2 + $0x8] sm:$0xff] %v116
  %121 = vst [vmem:[#allocation2 + $0x10] sm:$0xff] %v117
  %122 = vst [vmem:[#allocation2 + $0x18] sm:$0xff] %v118
  // Predicated region
  $region30: #{quant_dit_forward.29} parent=0 // pred_check
    %p123 = pneg %p24
  $region31: #{quant_dit_forward.29} parent=0 // pred_check_branch
    %125 = sbr.rel (%p123) target = $region33
  $region32: #{quant_dit_forward.29} parent=0 // pred_region
    %v126 = vld [vmem:[#allocation2] sm:$0xff]
    %v127 = vld [vmem:[#allocation2 + $0x8] sm:$0xff]
    %v128 = vld [vmem:[#allocation2 + $0x10] sm:$0xff]
    %v129 = vld [vmem:[#allocation2 + $0x18] sm:$0xff]
    %v130 = vld [vmem:[%s1] sm:$0xff]
    %v131 = vld [vmem:[%s1 + $0x8] sm:$0xff]
    %v132 = vld [vmem:[%s1 + $0x10] sm:$0xff]
    %v133 = vld [vmem:[%s1 + $0x18] sm:$0xff]
    %135 = vset.pattern.permute.xlu0 0
    %136 = vperm.xlu0 %135, %v130
    %v137 = vpop.permute.xlu0 %136
    %140 = vset.pattern.permute.xlu0 0
    %141 = vperm.xlu0 %140, %v131
    %v142 = vpop.permute.xlu0 %141
    %145 = vset.pattern.permute.xlu0 0
    %146 = vperm.xlu0 %145, %v132
    %v147 = vpop.permute.xlu0 %146
    %150 = vset.pattern.permute.xlu0 0
    %151 = vperm.xlu0 %150, %v133
    %v152 = vpop.permute.xlu0 %151
    %v154 = vmul.f32 %v126, %v137
    %v155 = vmul.f32 %v127, %v142
    %v156 = vmul.f32 %v128, %v147
    %v157 = vmul.f32 %v129, %v152
    %v158 = vld [vmem:[%s3] sm:$0x1]
    %v160 = vlaneseq
    %v161 = vshrl.u32 %v160, 7
    %v162 = vsub.s32 0, %v161
    %v163 = vrot.slane %v158, %v162
    %v165 = vmul.f32 %v154, %v163
    %v166 = vmul.f32 %v155, %v163
    %v167 = vmul.f32 %v156, %v163
    %v168 = vmul.f32 %v157, %v163
    %v169 = vld [vmem:[%s4] sm:$0x1]
    %v171 = vlaneseq
    %v172 = vshrl.u32 %v171, 7
    %v173 = vsub.s32 0, %v172
    %v174 = vrot.slane %v169, %v173
    %v176 = vadd.f32 %v165, %v174
    %v177 = vadd.f32 %v166, %v174
    %v178 = vadd.f32 %v167, %v174
    %v179 = vadd.f32 %v168, %v174
    %v180 = vld [vmem:[%s5] sm:$0xf]
    %v181 = vld [vmem:[%s5 + $0x4] sm:$0xf]
    %v182 = vld [vmem:[%s5 + $0x8] sm:$0xf]
    %v183 = vld [vmem:[%s5 + $0xc] sm:$0xf]
    %v184 = vunpack.c.l.bf16 %v180
    %v185 = vunpack.c.l.bf16 %v181
    %v186 = vunpack.c.l.bf16 %v182
    %v187 = vunpack.c.l.bf16 %v183
    %v188 = vadd.f32 %v176, %v184
    %v189 = vadd.f32 %v177, %v185
    %v190 = vadd.f32 %v178, %v186
    %v191 = vadd.f32 %v179, %v187
    %v192 = vpack.c.bf16 %v189, %v188
    %v193 = vpack.c.bf16 %v191, %v190
    %v196 = vunpack.c.l.b16 %v192
    %v197 = vunpack.c.h.b16 %v192
    %v198 = vunpack.c.l.b16 %v193
    %v199 = vunpack.c.h.b16 %v193
    %v200 = vpack.c.b16 %v196, %v196
    %v201 = vpack.c.b16 %v197, %v197
    %v202 = vpack.c.b16 %v198, %v198
    %v203 = vpack.c.b16 %v199, %v199
    %208 = vst [vmem:[%s6] sm:$0xf] %v200
    %209 = vst [vmem:[%s6 + $0x4] sm:$0xf] %v201
    %210 = vst [vmem:[%s6 + $0x8] sm:$0xf] %v202
    %211 = vst [vmem:[%s6 + $0xc] sm:$0xf] %v203
  $region33: #{quant_dit_forward.29} parent=0 // pred_fallthru
    _
  // Predicated region
  $region34: #{quant_dit_forward.29} parent=0 // pred_check
    _
  $region35: #{quant_dit_forward.29} parent=0 // pred_check_branch
    %213 = sbr.rel (0) target = $region37
  $region36: #{quant_dit_forward.29} parent=0 // pred_region
    _
  $region37: #{quant_dit_forward.29} parent=0 // pred_fallthru
    _
  // Predicated region
  $region38: #{quant_dit_forward.29} parent=0 // pred_check
    _
  $region39: #{quant_dit_forward.29} parent=0 // pred_check_branch
    %215 = sbr.rel (0) target = $region41
  $region40: #{quant_dit_forward.29} parent=0 // pred_region
    _
  $region41: #{quant_dit_forward.29} parent=0 // pred_fallthru
    _

</llo_original>
